<compile_context>
chip_gen: v7x
topology: tpu7x:2x2x1
jax: 0.10.0
libtpu: 0.0.40
codegen_flags: <defaults>
</compile_context>

<pallas_src>
import jax
import jax.numpy as jnp
from jax.experimental import pallas as pl
from jax.experimental.pallas import tpu as pltpu  # noqa: F401  (TPU backend)

# ------------------------- config (small, T5-like) -------------------------
D_MODEL = 32
N_HEADS = 4
D_KV = 8
HD = N_HEADS * D_KV          # 32
D_FF = 64
VOCAB = 128
NUM_BUCKETS = 8
MAX_DISTANCE = 16
PAD_ID = 0                   # T5: decoder_start_token_id == pad_token_id == 0
NEG_INF = -1e9
LANES = 128


# ------------------------------ fused Pallas kernel ------------------------------

def _make_fused_kernel(B, S, T, offs):
    """Whole-forward kernel: returns (1,1) masked-mean cross-entropy loss."""
    BS, BT = B * S, B * T

    def kernel(tok_ref, slab_ref, loss_ref):
        def w(name):                                   # static slab slice (8-aligned rows)
            o, r, c = offs[name]
            return slab_ref[o:o + r, 0:c]

        emb = w('emb')                                 # (VOCAB, D_MODEL)
        emb_t = w('emb_t')                             # (D_MODEL, VOCAB)

        def onehot(ids_col, n):
            iota = jax.lax.broadcasted_iota(jnp.int32, (ids_col.shape[0], n), 1)
            return (iota == ids_col).astype(jnp.float32)

        def embed(ids_col):                            # (N,1) int32 -> (N, D_MODEL)
            return jnp.dot(onehot(ids_col, VOCAB), emb,
                           preferred_element_type=jnp.float32)

        def rms(x, wname):                             # T5 LayerNorm: RMS, no mean, no bias
            var = jnp.mean(x * x, axis=-1, keepdims=True)
            return x * jax.lax.rsqrt(var + 1e-6) * w(wname)

        def attention(q_all, k_all, v_all, wo_name, bias_name, Nq, Nk):
            # Batch-merged attention.  q_all: (Nq, HD), k_all/v_all: (Nk, HD).
            # bias (per head, (Nq, Nk)) already contains rel-pos bias + pad mask +
            # causal mask + cross-batch block mask.  T5: NO 1/sqrt(d_k) scaling.
            o_bias, _, _ = offs[bias_name]
            heads = []
            for h in range(N_HEADS):
                q = q_all[:, h * D_KV:(h + 1) * D_KV]
                k = k_all[:, h * D_KV:(h + 1) * D_KV]
                v = v_all[:, h * D_KV:(h + 1) * D_KV]
                bias = slab_ref[o_bias + h * Nq:o_bias + (h + 1) * Nq, 0:Nk]
                s = jax.lax.dot_general(q, k, (((1,), (1,)), ((), ())),
                                        preferred_element_type=jnp.float32) + bias
                m = jnp.max(s, axis=-1, keepdims=True)
                p = jnp.exp(s - m)
                p = p * pl.reciprocal(jnp.sum(p, axis=-1, keepdims=True), approx=True)
                heads.append(jnp.dot(p, v, preferred_element_type=jnp.float32))
            o = jnp.concatenate(heads, axis=-1)        # (Nq, HD)
            # hoisted output projection: single (Nq,HD)@(HD,D_MODEL) matmul
            return jnp.dot(o, w(wo_name), preferred_element_type=jnp.float32)

        ids = tok_ref[0:BS, :]                         # (B*S, 1)
        dec_ids = tok_ref[BS:BS + BT, :]               # (B*T, 1)
        labels = tok_ref[BS + BT:BS + 2 * BT, :]       # (B*T, 1)

        # ---------------- encoder ----------------
        x = embed(ids)                                 # (B*S, D)
        y = rms(x, 'e_ln0')
        qkv = jnp.dot(y, w('e_qkv'), preferred_element_type=jnp.float32)
        x = x + attention(qkv[:, :HD], qkv[:, HD:2 * HD], qkv[:, 2 * HD:],
                          'e_o', 'b_enc', BS, BS)
        y = rms(x, 'e_ln1')
        ff = jnp.maximum(jnp.dot(y, w('e_wi'), preferred_element_type=jnp.float32), 0.0)
        x = x + jnp.dot(ff, w('e_wo'), preferred_element_type=jnp.float32)
        enc_out = rms(x, 'e_lnf')                      # (B*S, D)

        # ---------------- decoder ----------------
        x = embed(dec_ids)                             # (B*T, D)
        y = rms(x, 'd_ln0')
        qkv = jnp.dot(y, w('d_qkv'), preferred_element_type=jnp.float32)
        x = x + attention(qkv[:, :HD], qkv[:, HD:2 * HD], qkv[:, 2 * HD:],
                          'd_o', 'b_dec', BT, BT)
        y = rms(x, 'd_ln1')
        cq = jnp.dot(y, w('d_cq'), preferred_element_type=jnp.float32)         # (B*T, HD)
        ckv = jnp.dot(enc_out, w('d_ckv'), preferred_element_type=jnp.float32)  # (B*S, 2HD)
        x = x + attention(cq, ckv[:, :HD], ckv[:, HD:], 'd_co', 'b_crs', BT, BS)
        y = rms(x, 'd_ln2')
        ff = jnp.maximum(jnp.dot(y, w('d_wi'), preferred_element_type=jnp.float32), 0.0)
        x = x + jnp.dot(ff, w('d_wo'), preferred_element_type=jnp.float32)
        dec_out = rms(x, 'd_lnf')                      # (B*T, D)

        # ------------- LM head + cross entropy (logits never leave VMEM) -------------
        hidden = dec_out * (D_MODEL ** -0.5)           # T5 tied-embedding scaling
        logits = jnp.dot(hidden, emb_t, preferred_element_type=jnp.float32)  # (B*T, VOCAB)
        m = jnp.max(logits, axis=-1, keepdims=True)
        lse = jnp.log(jnp.sum(jnp.exp(logits - m), axis=-1, keepdims=True)) + m
        safe = jnp.where(labels == -100, 0, labels)
        vid = jax.lax.broadcasted_iota(jnp.int32, logits.shape, 1)
        true_logit = jnp.sum(jnp.where(vid == safe, logits, 0.0), axis=-1, keepdims=True)
        tok_loss = lse - true_logit                    # (B*T, 1)
        valid = (labels != -100).astype(jnp.float32)   # (B*T, 1)
        num = jnp.sum(tok_loss * valid, axis=0, keepdims=True)   # (1,1)
        den = jnp.sum(valid, axis=0, keepdims=True)              # (1,1)
        loss_ref[...] = num / jnp.maximum(den, 1.0)

    return kernel


# ------------------------------ wrapper-side glue (tiny XLA ops) ------------------------------

def relative_position_bucket(rel_pos, bidirectional, num_buckets, max_distance):
    rb = jnp.zeros_like(rel_pos)
    if bidirectional:
        num_buckets //= 2
        rb = rb + (rel_pos > 0).astype(jnp.int32) * num_buckets
        rel_pos = jnp.abs(rel_pos)
    else:
        rel_pos = -jnp.minimum(rel_pos, 0)
    max_exact = num_buckets // 2
    is_small = rel_pos < max_exact
    rel_if_large = max_exact + (
        jnp.log(jnp.maximum(rel_pos, 1).astype(jnp.float32) / max_exact)
        / jnp.log(max_distance / max_exact)
        * (num_buckets - max_exact)
    ).astype(jnp.int32)
    rel_if_large = jnp.minimum(rel_if_large, num_buckets - 1)
    return rb + jnp.where(is_small, rel_pos, rel_if_large)


def compute_position_bias(qlen, klen, rel_emb, bidirectional):
    ctx = jnp.arange(qlen)[:, None]
    mem = jnp.arange(klen)[None, :]
    buckets = relative_position_bucket(mem - ctx, bidirectional, NUM_BUCKETS, MAX_DISTANCE)
    values = rel_emb[buckets]                    # (qlen, klen, H)
    return jnp.transpose(values, (2, 0, 1))      # (H, qlen, klen)


def block_diag_bias(pb, key_bias, extra, B, Tq, Tk):
    """Build (H, B*Tq, B*Tk) additive bias: in-batch blocks get pb (+ pad mask / causal),
    cross-batch blocks get NEG_INF."""
    bias = jnp.full((N_HEADS, B * Tq, B * Tk), NEG_INF, jnp.float32)
    for b in range(B):
        blk = pb
        if key_bias is not None:
            blk = blk + key_bias[b][None, None, :]
        if extra is not None:
            blk = blk + extra[None, :, :]
        bias = bias.at[:, b * Tq:(b + 1) * Tq, b * Tk:(b + 1) * Tk].set(blk)
    return bias


def shift_right(labels):
    dec = jnp.concatenate(
        [jnp.full((labels.shape[0], 1), PAD_ID, labels.dtype), labels[:, :-1]], axis=1)
    return jnp.where(dec == -100, PAD_ID, dec)


def _layout_and_pack(named):
    """Pack (name, 2-D f32 array) list into one 128-lane slab, rows 8-aligned per entry."""
    offs = {}
    parts = []
    off = 0
    for name, a in named:
        r, c = a.shape
        rp = ((r + 7) // 8) * 8
        offs[name] = (off, r, c)
        parts.append(jnp.pad(a.astype(jnp.float32), ((0, rp - r), (0, LANES - c))))
        off += rp
    return jnp.concatenate(parts, axis=0), offs


def forward(params, input_ids, attention_mask, labels):
    """Reproduces Model.forward: returns {'loss': cross_entropy(lm_logits, labels)}."""
    B, S = input_ids.shape
    T = labels.shape[1]
    e, d = params['enc'], params['dec']

    dec_ids = shift_right(labels)
    pb_enc = compute_position_bias(S, S, e['rel_emb'], bidirectional=True)    # (H,S,S)
    pb_dec = compute_position_bias(T, T, d['rel_emb'], bidirectional=False)   # (H,T,T)
    enc_pad = (1.0 - attention_mask.astype(jnp.float32)) * NEG_INF            # (B,S)
    causal = jnp.where(jnp.arange(T)[None, :] > jnp.arange(T)[:, None], NEG_INF, 0.0)

    b_enc = block_diag_bias(pb_enc, enc_pad, None, B, S, S)                   # (H,BS,BS)
    b_dec = block_diag_bias(pb_dec, None, causal, B, T, T)                    # (H,BT,BT)
    b_crs = block_diag_bias(jnp.zeros((N_HEADS, T, S), jnp.float32),
                            enc_pad, None, B, T, S)                           # (H,BT,BS)

    named = [
        ('emb', params['emb']), ('emb_t', params['emb'].T),
        ('e_ln0', e['ln0']), ('e_ln1', e['ln1']), ('e_lnf', e['ln_f']),
        ('e_qkv', e['qkv']), ('e_o', e['o']), ('e_wi', e['wi']), ('e_wo', e['wo']),
        ('d_ln0', d['ln0']), ('d_ln1', d['ln1']), ('d_ln2', d['ln2']), ('d_lnf', d['ln_f']),
        ('d_qkv', d['qkv']), ('d_o', d['o']),
        ('d_cq', d['cq']), ('d_ckv', d['ckv']), ('d_co', d['co']),
        ('d_wi', d['wi']), ('d_wo', d['wo']),
        ('b_enc', b_enc.reshape(N_HEADS * B * S, B * S)),
        ('b_dec', b_dec.reshape(N_HEADS * B * T, B * T)),
        ('b_crs', b_crs.reshape(N_HEADS * B * T, B * S)),
    ]
    slab, offs = _layout_and_pack(named)

    toks = jnp.concatenate([
        input_ids.reshape(B * S, 1),
        dec_ids.reshape(B * T, 1),
        labels.reshape(B * T, 1),
    ], axis=0).astype(jnp.int32)                        # (B*S + 2*B*T, 1)

    loss = pl.pallas_call(
        _make_fused_kernel(B, S, T, offs),
        out_shape=jax.ShapeDtypeStruct((1, 1), jnp.float32),
    )(toks, slab)
    return {'loss': loss[0, 0]}


# ------------------------------ params ------------------------------

def init_params(key):
    keys = iter(jax.random.split(key, 32))

    def nrm(shape, scale=0.05):
        return scale * jax.random.normal(next(keys), shape, dtype=jnp.float32)

    ones = jnp.ones((1, D_MODEL), jnp.float32)
    params = {
        'emb': nrm((VOCAB, D_MODEL), scale=1.0),
        'enc': {
            'qkv': nrm((D_MODEL, 3 * HD)), 'o': nrm((HD, D_MODEL)),
            'ln0': ones, 'ln1': ones, 'ln_f': ones,
            'wi': nrm((D_MODEL, D_FF)), 'wo': nrm((D_FF, D_MODEL)),
            'rel_emb': nrm((NUM_BUCKETS, N_HEADS)),
        },
        'dec': {
            'qkv': nrm((D_MODEL, 3 * HD)), 'o': nrm((HD, D_MODEL)),
            'cq': nrm((D_MODEL, HD)), 'ckv': nrm((D_MODEL, 2 * HD)), 'co': nrm((HD, D_MODEL)),
            'ln0': ones, 'ln1': ones, 'ln2': ones, 'ln_f': ones,
            'wi': nrm((D_MODEL, D_FF)), 'wo': nrm((D_FF, D_MODEL)),
            'rel_emb': nrm((NUM_BUCKETS, N_HEADS)),
        },
    }
    return params


# ------------------------------ main ------------------------------

if __name__ == "__main__":
    key = jax.random.PRNGKey(0)
    pkey, ikey, lkey = jax.random.split(key, 3)
    params = init_params(pkey)

    B, S, T = 2, 8, 8
    input_ids = jax.random.randint(ikey, (B, S), 1, VOCAB, dtype=jnp.int32)
    attention_mask = jnp.ones((B, S), dtype=jnp.int32).at[1, 6:].set(0)
    labels = jax.random.randint(lkey, (B, T), 1, VOCAB, dtype=jnp.int32)
    labels = labels.at[1, 7:].set(-100)   # padded label positions are ignored (HF semantics)

    out = jax.jit(forward)(params, input_ids, attention_mask, labels)
    loss = jax.block_until_ready(out['loss'])
    assert jnp.isfinite(loss), "NaN loss (module would pdb.set_trace here)"
    print("KERNEL_OK")
</pallas_src>

<mosaic_0001>
module attributes {stable_mosaic.version = 11 : i64} {
  func.func @kernel(%arg0: memref<48x1xi32, #tpu.memory_space<vmem>>, %arg1: memref<824x128xf32, #tpu.memory_space<vmem>>, %arg2: memref<1x1xf32, #tpu.memory_space<vmem>>) attributes {dimension_semantics = [], scalar_prefetch = 0 : i64, scratch_operands = 0 : i64, tpu.core_type = #tpu.core_type<tc>} {
    %c0 = arith.constant 0 : index
    %c0_0 = arith.constant 0 : index
    %0 = vector.load %arg1[%c0, %c0_0] : memref<824x128xf32, #tpu.memory_space<vmem>>, vector<128x32xf32>
    %c128 = arith.constant 128 : index
    %c0_1 = arith.constant 0 : index
    %1 = vector.load %arg1[%c128, %c0_1] : memref<824x128xf32, #tpu.memory_space<vmem>>, vector<32x128xf32>
    %c0_2 = arith.constant 0 : index
    %c0_3 = arith.constant 0 : index
    %2 = vector.load %arg0[%c0_2, %c0_3] : memref<48x1xi32, #tpu.memory_space<vmem>>, vector<16x1xi32>
    %c16 = arith.constant 16 : index
    %c0_4 = arith.constant 0 : index
    %3 = vector.load %arg0[%c16, %c0_4] : memref<48x1xi32, #tpu.memory_space<vmem>>, vector<16x1xi32>
    %c32 = arith.constant 32 : index
    %c0_5 = arith.constant 0 : index
    %4 = vector.load %arg0[%c32, %c0_5] : memref<48x1xi32, #tpu.memory_space<vmem>>, vector<16x1xi32>
    %5 = tpu.iota {dimensions = array<i32: 1>} : vector<16x128xi32>
    %6 = vector.broadcast %2 : vector<16x1xi32> to vector<16x128xi32>
    %7 = arith.cmpi eq, %5, %6 : vector<16x128xi32>
    %8 = arith.extui %7 : vector<16x128xi1> to vector<16x128xi32>
    %9 = arith.sitofp %8 : vector<16x128xi32> to vector<16x128xf32>
    %cst = arith.constant dense<0.000000e+00> : vector<16x32xf32>
    %10 = tpu.matmul %9, %0, %cst {dimension_numbers = #tpu.dot_dimension_numbers<[1], [0], [0], [1], [0, 0, 1, 1], [], []>} : vector<16x128xf32>, vector<128x32xf32>, vector<16x32xf32> -> vector<16x32xf32>
    %11 = arith.mulf %10, %10 : vector<16x32xf32>
    %cst_6 = arith.constant dense<0.000000e+00> : vector<16xf32>
    %12 = vector.multi_reduction <add>, %11, %cst_6 [1] : vector<16x32xf32> to vector<16xf32>
    %13 = vector.shape_cast %12 : vector<16xf32> to vector<16x1xf32>
    %cst_7 = arith.constant 3.200000e+01 : f32
    %14 = vector.broadcast %cst_7 : f32 to vector<16x1xf32>
    %15 = arith.divf %13, %14 : vector<16x1xf32>
    %cst_8 = arith.constant 9.99999997E-7 : f32
    %16 = vector.broadcast %cst_8 : f32 to vector<16x1xf32>
    %17 = arith.addf %15, %16 : vector<16x1xf32>
    %18 = math.rsqrt %17 : vector<16x1xf32>
    %19 = vector.broadcast %18 : vector<16x1xf32> to vector<16x32xf32>
    %20 = arith.mulf %10, %19 : vector<16x32xf32>
    %c160 = arith.constant 160 : index
    %c0_9 = arith.constant 0 : index
    %21 = vector.load %arg1[%c160, %c0_9] : memref<824x128xf32, #tpu.memory_space<vmem>>, vector<1x32xf32>
    %22 = vector.broadcast %21 : vector<1x32xf32> to vector<16x32xf32>
    %23 = arith.mulf %20, %22 : vector<16x32xf32>
    %c184 = arith.constant 184 : index
    %c0_10 = arith.constant 0 : index
    %24 = vector.load %arg1[%c184, %c0_10] : memref<824x128xf32, #tpu.memory_space<vmem>>, vector<32x96xf32>
    %cst_11 = arith.constant dense<0.000000e+00> : vector<16x96xf32>
    %25 = tpu.matmul %23, %24, %cst_11 {dimension_numbers = #tpu.dot_dimension_numbers<[1], [0], [0], [1], [0, 0, 1, 1], [], []>} : vector<16x32xf32>, vector<32x96xf32>, vector<16x96xf32> -> vector<16x96xf32>
    %26 = vector.extract_strided_slice %25 {offsets = [0, 0], sizes = [16, 32], strides = [1, 1]} : vector<16x96xf32> to vector<16x32xf32>
    %27 = vector.extract_strided_slice %25 {offsets = [0, 32], sizes = [16, 32], strides = [1, 1]} : vector<16x96xf32> to vector<16x32xf32>
    %28 = vector.extract_strided_slice %25 {offsets = [0, 64], sizes = [16, 32], strides = [1, 1]} : vector<16x96xf32> to vector<16x32xf32>
    %29 = vector.extract_strided_slice %26 {offsets = [0, 0], sizes = [16, 8], strides = [1, 1]} : vector<16x32xf32> to vector<16x8xf32>
    %30 = vector.extract_strided_slice %27 {offsets = [0, 0], sizes = [16, 8], strides = [1, 1]} : vector<16x32xf32> to vector<16x8xf32>
    %31 = vector.extract_strided_slice %28 {offsets = [0, 0], sizes = [16, 8], strides = [1, 1]} : vector<16x32xf32> to vector<16x8xf32>
    %c632 = arith.constant 632 : index
    %c0_12 = arith.constant 0 : index
    %32 = vector.load %arg1[%c632, %c0_12] : memref<824x128xf32, #tpu.memory_space<vmem>>, vector<16x16xf32>
    %cst_13 = arith.constant dense<0.000000e+00> : vector<16x16xf32>
    %33 = tpu.matmul %29, %30, %cst_13 {dimension_numbers = #tpu.dot_dimension_numbers<[1], [1], [0], [0], [0, 0, 1, 0], [], []>} : vector<16x8xf32>, vector<16x8xf32>, vector<16x16xf32> -> vector<16x16xf32>
    %34 = arith.addf %33, %32 : vector<16x16xf32>
    %cst_14 = arith.constant dense<0xFF800000> : vector<16xf32>
    %35 = vector.multi_reduction <maximumf>, %34, %cst_14 [1] : vector<16x16xf32> to vector<16xf32>
    %36 = vector.shape_cast %35 : vector<16xf32> to vector<16x1xf32>
    %37 = vector.broadcast %36 : vector<16x1xf32> to vector<16x16xf32>
    %38 = arith.subf %34, %37 : vector<16x16xf32>
    %39 = math.exp %38 : vector<16x16xf32>
    %cst_15 = arith.constant dense<0.000000e+00> : vector<16xf32>
    %40 = vector.multi_reduction <add>, %39, %cst_15 [1] : vector<16x16xf32> to vector<16xf32>
    %41 = vector.shape_cast %40 : vector<16xf32> to vector<16x1xf32>
    %42 = tpu.reciprocal %41 {approx = true} : vector<16x1xf32> -> vector<16x1xf32>
    %43 = vector.broadcast %42 : vector<16x1xf32> to vector<16x16xf32>
    %44 = arith.mulf %39, %43 : vector<16x16xf32>
    %cst_16 = arith.constant dense<0.000000e+00> : vector<16x8xf32>
    %45 = tpu.matmul %44, %31, %cst_16 {dimension_numbers = #tpu.dot_dimension_numbers<[1], [0], [0], [1], [0, 0, 1, 1], [], []>} : vector<16x16xf32>, vector<16x8xf32>, vector<16x8xf32> -> vector<16x8xf32>
    %46 = vector.extract_strided_slice %26 {offsets = [0, 8], sizes = [16, 8], strides = [1, 1]} : vector<16x32xf32> to vector<16x8xf32>
    %47 = vector.extract_strided_slice %27 {offsets = [0, 8], sizes = [16, 8], strides = [1, 1]} : vector<16x32xf32> to vector<16x8xf32>
    %48 = vector.extract_strided_slice %28 {offsets = [0, 8], sizes = [16, 8], strides = [1, 1]} : vector<16x32xf32> to vector<16x8xf32>
    %c648 = arith.constant 648 : index
    %c0_17 = arith.constant 0 : index
    %49 = vector.load %arg1[%c648, %c0_17] : memref<824x128xf32, #tpu.memory_space<vmem>>, vector<16x16xf32>
    %cst_18 = arith.constant dense<0.000000e+00> : vector<16x16xf32>
    %50 = tpu.matmul %46, %47, %cst_18 {dimension_numbers = #tpu.dot_dimension_numbers<[1], [1], [0], [0], [0, 0, 1, 0], [], []>} : vector<16x8xf32>, vector<16x8xf32>, vector<16x16xf32> -> vector<16x16xf32>
    %51 = arith.addf %50, %49 : vector<16x16xf32>
    %cst_19 = arith.constant dense<0xFF800000> : vector<16xf32>
    %52 = vector.multi_reduction <maximumf>, %51, %cst_19 [1] : vector<16x16xf32> to vector<16xf32>
    %53 = vector.shape_cast %52 : vector<16xf32> to vector<16x1xf32>
    %54 = vector.broadcast %53 : vector<16x1xf32> to vector<16x16xf32>
    %55 = arith.subf %51, %54 : vector<16x16xf32>
    %56 = math.exp %55 : vector<16x16xf32>
    %cst_20 = arith.constant dense<0.000000e+00> : vector<16xf32>
    %57 = vector.multi_reduction <add>, %56, %cst_20 [1] : vector<16x16xf32> to vector<16xf32>
    %58 = vector.shape_cast %57 : vector<16xf32> to vector<16x1xf32>
    %59 = tpu.reciprocal %58 {approx = true} : vector<16x1xf32> -> vector<16x1xf32>
    %60 = vector.broadcast %59 : vector<16x1xf32> to vector<16x16xf32>
    %61 = arith.mulf %56, %60 : vector<16x16xf32>
    %cst_21 = arith.constant dense<0.000000e+00> : vector<16x8xf32>
    %62 = tpu.matmul %61, %48, %cst_21 {dimension_numbers = #tpu.dot_dimension_numbers<[1], [0], [0], [1], [0, 0, 1, 1], [], []>} : vector<16x16xf32>, vector<16x8xf32>, vector<16x8xf32> -> vector<16x8xf32>
    %63 = vector.extract_strided_slice %26 {offsets = [0, 16], sizes = [16, 8], strides = [1, 1]} : vector<16x32xf32> to vector<16x8xf32>
    %64 = vector.extract_strided_slice %27 {offsets = [0, 16], sizes = [16, 8], strides = [1, 1]} : vector<16x32xf32> to vector<16x8xf32>
    %65 = vector.extract_strided_slice %28 {offsets = [0, 16], sizes = [16, 8], strides = [1, 1]} : vector<16x32xf32> to vector<16x8xf32>
    %c664 = arith.constant 664 : index
    %c0_22 = arith.constant 0 : index
    %66 = vector.load %arg1[%c664, %c0_22] : memref<824x128xf32, #tpu.memory_space<vmem>>, vector<16x16xf32>
    %cst_23 = arith.constant dense<0.000000e+00> : vector<16x16xf32>
    %67 = tpu.matmul %63, %64, %cst_23 {dimension_numbers = #tpu.dot_dimension_numbers<[1], [1], [0], [0], [0, 0, 1, 0], [], []>} : vector<16x8xf32>, vector<16x8xf32>, vector<16x16xf32> -> vector<16x16xf32>
    %68 = arith.addf %67, %66 : vector<16x16xf32>
    %cst_24 = arith.constant dense<0xFF800000> : vector<16xf32>
    %69 = vector.multi_reduction <maximumf>, %68, %cst_24 [1] : vector<16x16xf32> to vector<16xf32>
    %70 = vector.shape_cast %69 : vector<16xf32> to vector<16x1xf32>
    %71 = vector.broadcast %70 : vector<16x1xf32> to vector<16x16xf32>
    %72 = arith.subf %68, %71 : vector<16x16xf32>
    %73 = math.exp %72 : vector<16x16xf32>
    %cst_25 = arith.constant dense<0.000000e+00> : vector<16xf32>
    %74 = vector.multi_reduction <add>, %73, %cst_25 [1] : vector<16x16xf32> to vector<16xf32>
    %75 = vector.shape_cast %74 : vector<16xf32> to vector<16x1xf32>
    %76 = tpu.reciprocal %75 {approx = true} : vector<16x1xf32> -> vector<16x1xf32>
    %77 = vector.broadcast %76 : vector<16x1xf32> to vector<16x16xf32>
    %78 = arith.mulf %73, %77 : vector<16x16xf32>
    %cst_26 = arith.constant dense<0.000000e+00> : vector<16x8xf32>
    %79 = tpu.matmul %78, %65, %cst_26 {dimension_numbers = #tpu.dot_dimension_numbers<[1], [0], [0], [1], [0, 0, 1, 1], [], []>} : vector<16x16xf32>, vector<16x8xf32>, vector<16x8xf32> -> vector<16x8xf32>
    %80 = vector.extract_strided_slice %26 {offsets = [0, 24], sizes = [16, 8], strides = [1, 1]} : vector<16x32xf32> to vector<16x8xf32>
    %81 = vector.extract_strided_slice %27 {offsets = [0, 24], sizes = [16, 8], strides = [1, 1]} : vector<16x32xf32> to vector<16x8xf32>
    %82 = vector.extract_strided_slice %28 {offsets = [0, 24], sizes = [16, 8], strides = [1, 1]} : vector<16x32xf32> to vector<16x8xf32>
    %c680 = arith.constant 680 : index
    %c0_27 = arith.constant 0 : index
    %83 = vector.load %arg1[%c680, %c0_27] : memref<824x128xf32, #tpu.memory_space<vmem>>, vector<16x16xf32>
    %cst_28 = arith.constant dense<0.000000e+00> : vector<16x16xf32>
    %84 = tpu.matmul %80, %81, %cst_28 {dimension_numbers = #tpu.dot_dimension_numbers<[1], [1], [0], [0], [0, 0, 1, 0], [], []>} : vector<16x8xf32>, vector<16x8xf32>, vector<16x16xf32> -> vector<16x16xf32>
    %85 = arith.addf %84, %83 : vector<16x16xf32>
    %cst_29 = arith.constant dense<0xFF800000> : vector<16xf32>
    %86 = vector.multi_reduction <maximumf>, %85, %cst_29 [1] : vector<16x16xf32> to vector<16xf32>
    %87 = vector.shape_cast %86 : vector<16xf32> to vector<16x1xf32>
    %88 = vector.broadcast %87 : vector<16x1xf32> to vector<16x16xf32>
    %89 = arith.subf %85, %88 : vector<16x16xf32>
    %90 = math.exp %89 : vector<16x16xf32>
    %cst_30 = arith.constant dense<0.000000e+00> : vector<16xf32>
    %91 = vector.multi_reduction <add>, %90, %cst_30 [1] : vector<16x16xf32> to vector<16xf32>
    %92 = vector.shape_cast %91 : vector<16xf32> to vector<16x1xf32>
    %93 = tpu.reciprocal %92 {approx = true} : vector<16x1xf32> -> vector<16x1xf32>
    %94 = vector.broadcast %93 : vector<16x1xf32> to vector<16x16xf32>
    %95 = arith.mulf %90, %94 : vector<16x16xf32>
    %cst_31 = arith.constant dense<0.000000e+00> : vector<16x8xf32>
    %96 = tpu.matmul %95, %82, %cst_31 {dimension_numbers = #tpu.dot_dimension_numbers<[1], [0], [0], [1], [0, 0, 1, 1], [], []>} : vector<16x16xf32>, vector<16x8xf32>, vector<16x8xf32> -> vector<16x8xf32>
    %97 = tpu.concatenate %45, %62, %79, %96 in 1 : vector<16x8xf32>, vector<16x8xf32>, vector<16x8xf32>, vector<16x8xf32> -> vector<16x32xf32>
    %c216 = arith.constant 216 : index
    %c0_32 = arith.constant 0 : index
    %98 = vector.load %arg1[%c216, %c0_32] : memref<824x128xf32, #tpu.memory_space<vmem>>, vector<32x32xf32>
    %cst_33 = arith.constant dense<0.000000e+00> : vector<16x32xf32>
    %99 = tpu.matmul %97, %98, %cst_33 {dimension_numbers = #tpu.dot_dimension_numbers<[1], [0], [0], [1], [0, 0, 1, 1], [], []>} : vector<16x32xf32>, vector<32x32xf32>, vector<16x32xf32> -> vector<16x32xf32>
    %100 = arith.addf %10, %99 : vector<16x32xf32>
    %101 = arith.mulf %100, %100 : vector<16x32xf32>
    %cst_34 = arith.constant dense<0.000000e+00> : vector<16xf32>
    %102 = vector.multi_reduction <add>, %101, %cst_34 [1] : vector<16x32xf32> to vector<16xf32>
    %103 = vector.shape_cast %102 : vector<16xf32> to vector<16x1xf32>
    %cst_35 = arith.constant 3.200000e+01 : f32
    %104 = vector.broadcast %cst_35 : f32 to vector<16x1xf32>
    %105 = arith.divf %103, %104 : vector<16x1xf32>
    %cst_36 = arith.constant 9.99999997E-7 : f32
    %106 = vector.broadcast %cst_36 : f32 to vector<16x1xf32>
    %107 = arith.addf %105, %106 : vector<16x1xf32>
    %108 = math.rsqrt %107 : vector<16x1xf32>
    %109 = vector.broadcast %108 : vector<16x1xf32> to vector<16x32xf32>
    %110 = arith.mulf %100, %109 : vector<16x32xf32>
    %c168 = arith.constant 168 : index
    %c0_37 = arith.constant 0 : index
    %111 = vector.load %arg1[%c168, %c0_37] : memref<824x128xf32, #tpu.memory_space<vmem>>, vector<1x32xf32>
    %112 = vector.broadcast %111 : vector<1x32xf32> to vector<16x32xf32>
    %113 = arith.mulf %110, %112 : vector<16x32xf32>
    %c248 = arith.constant 248 : index
    %c0_38 = arith.constant 0 : index
    %114 = vector.load %arg1[%c248, %c0_38] : memref<824x128xf32, #tpu.memory_space<vmem>>, vector<32x64xf32>
    %cst_39 = arith.constant dense<0.000000e+00> : vector<16x64xf32>
    %115 = tpu.matmul %113, %114, %cst_39 {dimension_numbers = #tpu.dot_dimension_numbers<[1], [0], [0], [1], [0, 0, 1, 1], [], []>} : vector<16x32xf32>, vector<32x64xf32>, vector<16x64xf32> -> vector<16x64xf32>
    %cst_40 = arith.constant 0.000000e+00 : f32
    %116 = vector.broadcast %cst_40 : f32 to vector<16x64xf32>
    %117 = arith.maximumf %115, %116 : vector<16x64xf32>
    %c280 = arith.constant 280 : index
    %c0_41 = arith.constant 0 : index
    %118 = vector.load %arg1[%c280, %c0_41] : memref<824x128xf32, #tpu.memory_space<vmem>>, vector<64x32xf32>
    %cst_42 = arith.constant dense<0.000000e+00> : vector<16x32xf32>
    %119 = tpu.matmul %117, %118, %cst_42 {dimension_numbers = #tpu.dot_dimension_numbers<[1], [0], [0], [1], [0, 0, 1, 1], [], []>} : vector<16x64xf32>, vector<64x32xf32>, vector<16x32xf32> -> vector<16x32xf32>
    %120 = arith.addf %100, %119 : vector<16x32xf32>
    %121 = arith.mulf %120, %120 : vector<16x32xf32>
    %cst_43 = arith.constant dense<0.000000e+00> : vector<16xf32>
    %122 = vector.multi_reduction <add>, %121, %cst_43 [1] : vector<16x32xf32> to vector<16xf32>
    %123 = vector.shape_cast %122 : vector<16xf32> to vector<16x1xf32>
    %cst_44 = arith.constant 3.200000e+01 : f32
    %124 = vector.broadcast %cst_44 : f32 to vector<16x1xf32>
    %125 = arith.divf %123, %124 : vector<16x1xf32>
    %cst_45 = arith.constant 9.99999997E-7 : f32
    %126 = vector.broadcast %cst_45 : f32 to vector<16x1xf32>
    %127 = arith.addf %125, %126 : vector<16x1xf32>
    %128 = math.rsqrt %127 : vector<16x1xf32>
    %129 = vector.broadcast %128 : vector<16x1xf32> to vector<16x32xf32>
    %130 = arith.mulf %120, %129 : vector<16x32xf32>
    %c176 = arith.constant 176 : index
    %c0_46 = arith.constant 0 : index
    %131 = vector.load %arg1[%c176, %c0_46] : memref<824x128xf32, #tpu.memory_space<vmem>>, vector<1x32xf32>
    %132 = vector.broadcast %131 : vector<1x32xf32> to vector<16x32xf32>
    %133 = arith.mulf %130, %132 : vector<16x32xf32>
    %134 = tpu.iota {dimensions = array<i32: 1>} : vector<16x128xi32>
    %135 = vector.broadcast %3 : vector<16x1xi32> to vector<16x128xi32>
    %136 = arith.cmpi eq, %134, %135 : vector<16x128xi32>
    %137 = arith.extui %136 : vector<16x128xi1> to vector<16x128xi32>
    %138 = arith.sitofp %137 : vector<16x128xi32> to vector<16x128xf32>
    %cst_47 = arith.constant dense<0.000000e+00> : vector<16x32xf32>
    %139 = tpu.matmul %138, %0, %cst_47 {dimension_numbers = #tpu.dot_dimension_numbers<[1], [0], [0], [1], [0, 0, 1, 1], [], []>} : vector<16x128xf32>, vector<128x32xf32>, vector<16x32xf32> -> vector<16x32xf32>
    %140 = arith.mulf %139, %139 : vector<16x32xf32>
    %cst_48 = arith.constant dense<0.000000e+00> : vector<16xf32>
    %141 = vector.multi_reduction <add>, %140, %cst_48 [1] : vector<16x32xf32> to vector<16xf32>
    %142 = vector.shape_cast %141 : vector<16xf32> to vector<16x1xf32>
    %cst_49 = arith.constant 3.200000e+01 : f32
    %143 = vector.broadcast %cst_49 : f32 to vector<16x1xf32>
    %144 = arith.divf %142, %143 : vector<16x1xf32>
    %cst_50 = arith.constant 9.99999997E-7 : f32
    %145 = vector.broadcast %cst_50 : f32 to vector<16x1xf32>
    %146 = arith.addf %144, %145 : vector<16x1xf32>
    %147 = math.rsqrt %146 : vector<16x1xf32>
    %148 = vector.broadcast %147 : vector<16x1xf32> to vector<16x32xf32>
    %149 = arith.mulf %139, %148 : vector<16x32xf32>
    %c344 = arith.constant 344 : index
    %c0_51 = arith.constant 0 : index
    %150 = vector.load %arg1[%c344, %c0_51] : memref<824x128xf32, #tpu.memory_space<vmem>>, vector<1x32xf32>
    %151 = vector.broadcast %150 : vector<1x32xf32> to vector<16x32xf32>
    %152 = arith.mulf %149, %151 : vector<16x32xf32>
    %c376 = arith.constant 376 : index
    %c0_52 = arith.constant 0 : index
    %153 = vector.load %arg1[%c376, %c0_52] : memref<824x128xf32, #tpu.memory_space<vmem>>, vector<32x96xf32>
    %cst_53 = arith.constant dense<0.000000e+00> : vector<16x96xf32>
    %154 = tpu.matmul %152, %153, %cst_53 {dimension_numbers = #tpu.dot_dimension_numbers<[1], [0], [0], [1], [0, 0, 1, 1], [], []>} : vector<16x32xf32>, vector<32x96xf32>, vector<16x96xf32> -> vector<16x96xf32>
    %155 = vector.extract_strided_slice %154 {offsets = [0, 0], sizes = [16, 32], strides = [1, 1]} : vector<16x96xf32> to vector<16x32xf32>
    %156 = vector.extract_strided_slice %154 {offsets = [0, 32], sizes = [16, 32], strides = [1, 1]} : vector<16x96xf32> to vector<16x32xf32>
    %157 = vector.extract_strided_slice %154 {offsets = [0, 64], sizes = [16, 32], strides = [1, 1]} : vector<16x96xf32> to vector<16x32xf32>
    %158 = vector.extract_strided_slice %155 {offsets = [0, 0], sizes = [16, 8], strides = [1, 1]} : vector<16x32xf32> to vector<16x8xf32>
    %159 = vector.extract_strided_slice %156 {offsets = [0, 0], sizes = [16, 8], strides = [1, 1]} : vector<16x32xf32> to vector<16x8xf32>
    %160 = vector.extract_strided_slice %157 {offsets = [0, 0], sizes = [16, 8], strides = [1, 1]} : vector<16x32xf32> to vector<16x8xf32>
    %c696 = arith.constant 696 : index
    %c0_54 = arith.constant 0 : index
    %161 = vector.load %arg1[%c696, %c0_54] : memref<824x128xf32, #tpu.memory_space<vmem>>, vector<16x16xf32>
    %cst_55 = arith.constant dense<0.000000e+00> : vector<16x16xf32>
    %162 = tpu.matmul %158, %159, %cst_55 {dimension_numbers = #tpu.dot_dimension_numbers<[1], [1], [0], [0], [0, 0, 1, 0], [], []>} : vector<16x8xf32>, vector<16x8xf32>, vector<16x16xf32> -> vector<16x16xf32>
    %163 = arith.addf %162, %161 : vector<16x16xf32>
    %cst_56 = arith.constant dense<0xFF800000> : vector<16xf32>
    %164 = vector.multi_reduction <maximumf>, %163, %cst_56 [1] : vector<16x16xf32> to vector<16xf32>
    %165 = vector.shape_cast %164 : vector<16xf32> to vector<16x1xf32>
    %166 = vector.broadcast %165 : vector<16x1xf32> to vector<16x16xf32>
    %167 = arith.subf %163, %166 : vector<16x16xf32>
    %168 = math.exp %167 : vector<16x16xf32>
    %cst_57 = arith.constant dense<0.000000e+00> : vector<16xf32>
    %169 = vector.multi_reduction <add>, %168, %cst_57 [1] : vector<16x16xf32> to vector<16xf32>
    %170 = vector.shape_cast %169 : vector<16xf32> to vector<16x1xf32>
    %171 = tpu.reciprocal %170 {approx = true} : vector<16x1xf32> -> vector<16x1xf32>
    %172 = vector.broadcast %171 : vector<16x1xf32> to vector<16x16xf32>
    %173 = arith.mulf %168, %172 : vector<16x16xf32>
    %cst_58 = arith.constant dense<0.000000e+00> : vector<16x8xf32>
    %174 = tpu.matmul %173, %160, %cst_58 {dimension_numbers = #tpu.dot_dimension_numbers<[1], [0], [0], [1], [0, 0, 1, 1], [], []>} : vector<16x16xf32>, vector<16x8xf32>, vector<16x8xf32> -> vector<16x8xf32>
    %175 = vector.extract_strided_slice %155 {offsets = [0, 8], sizes = [16, 8], strides = [1, 1]} : vector<16x32xf32> to vector<16x8xf32>
    %176 = vector.extract_strided_slice %156 {offsets = [0, 8], sizes = [16, 8], strides = [1, 1]} : vector<16x32xf32> to vector<16x8xf32>
    %177 = vector.extract_strided_slice %157 {offsets = [0, 8], sizes = [16, 8], strides = [1, 1]} : vector<16x32xf32> to vector<16x8xf32>
    %c712 = arith.constant 712 : index
    %c0_59 = arith.constant 0 : index
    %178 = vector.load %arg1[%c712, %c0_59] : memref<824x128xf32, #tpu.memory_space<vmem>>, vector<16x16xf32>
    %cst_60 = arith.constant dense<0.000000e+00> : vector<16x16xf32>
    %179 = tpu.matmul %175, %176, %cst_60 {dimension_numbers = #tpu.dot_dimension_numbers<[1], [1], [0], [0], [0, 0, 1, 0], [], []>} : vector<16x8xf32>, vector<16x8xf32>, vector<16x16xf32> -> vector<16x16xf32>
    %180 = arith.addf %179, %178 : vector<16x16xf32>
    %cst_61 = arith.constant dense<0xFF800000> : vector<16xf32>
    %181 = vector.multi_reduction <maximumf>, %180, %cst_61 [1] : vector<16x16xf32> to vector<16xf32>
    %182 = vector.shape_cast %181 : vector<16xf32> to vector<16x1xf32>
    %183 = vector.broadcast %182 : vector<16x1xf32> to vector<16x16xf32>
    %184 = arith.subf %180, %183 : vector<16x16xf32>
    %185 = math.exp %184 : vector<16x16xf32>
    %cst_62 = arith.constant dense<0.000000e+00> : vector<16xf32>
    %186 = vector.multi_reduction <add>, %185, %cst_62 [1] : vector<16x16xf32> to vector<16xf32>
    %187 = vector.shape_cast %186 : vector<16xf32> to vector<16x1xf32>
    %188 = tpu.reciprocal %187 {approx = true} : vector<16x1xf32> -> vector<16x1xf32>
    %189 = vector.broadcast %188 : vector<16x1xf32> to vector<16x16xf32>
    %190 = arith.mulf %185, %189 : vector<16x16xf32>
    %cst_63 = arith.constant dense<0.000000e+00> : vector<16x8xf32>
    %191 = tpu.matmul %190, %177, %cst_63 {dimension_numbers = #tpu.dot_dimension_numbers<[1], [0], [0], [1], [0, 0, 1, 1], [], []>} : vector<16x16xf32>, vector<16x8xf32>, vector<16x8xf32> -> vector<16x8xf32>
    %192 = vector.extract_strided_slice %155 {offsets = [0, 16], sizes = [16, 8], strides = [1, 1]} : vector<16x32xf32> to vector<16x8xf32>
    %193 = vector.extract_strided_slice %156 {offsets = [0, 16], sizes = [16, 8], strides = [1, 1]} : vector<16x32xf32> to vector<16x8xf32>
    %194 = vector.extract_strided_slice %157 {offsets = [0, 16], sizes = [16, 8], strides = [1, 1]} : vector<16x32xf32> to vector<16x8xf32>
    %c728 = arith.constant 728 : index
    %c0_64 = arith.constant 0 : index
    %195 = vector.load %arg1[%c728, %c0_64] : memref<824x128xf32, #tpu.memory_space<vmem>>, vector<16x16xf32>
    %cst_65 = arith.constant dense<0.000000e+00> : vector<16x16xf32>
    %196 = tpu.matmul %192, %193, %cst_65 {dimension_numbers = #tpu.dot_dimension_numbers<[1], [1], [0], [0], [0, 0, 1, 0], [], []>} : vector<16x8xf32>, vector<16x8xf32>, vector<16x16xf32> -> vector<16x16xf32>
    %197 = arith.addf %196, %195 : vector<16x16xf32>
    %cst_66 = arith.constant dense<0xFF800000> : vector<16xf32>
    %198 = vector.multi_reduction <maximumf>, %197, %cst_66 [1] : vector<16x16xf32> to vector<16xf32>
    %199 = vector.shape_cast %198 : vector<16xf32> to vector<16x1xf32>
    %200 = vector.broadcast %199 : vector<16x1xf32> to vector<16x16xf32>
    %201 = arith.subf %197, %200 : vector<16x16xf32>
    %202 = math.exp %201 : vector<16x16xf32>
    %cst_67 = arith.constant dense<0.000000e+00> : vector<16xf32>
    %203 = vector.multi_reduction <add>, %202, %cst_67 [1] : vector<16x16xf32> to vector<16xf32>
    %204 = vector.shape_cast %203 : vector<16xf32> to vector<16x1xf32>
    %205 = tpu.reciprocal %204 {approx = true} : vector<16x1xf32> -> vector<16x1xf32>
    %206 = vector.broadcast %205 : vector<16x1xf32> to vector<16x16xf32>
    %207 = arith.mulf %202, %206 : vector<16x16xf32>
    %cst_68 = arith.constant dense<0.000000e+00> : vector<16x8xf32>
    %208 = tpu.matmul %207, %194, %cst_68 {dimension_numbers = #tpu.dot_dimension_numbers<[1], [0], [0], [1], [0, 0, 1, 1], [], []>} : vector<16x16xf32>, vector<16x8xf32>, vector<16x8xf32> -> vector<16x8xf32>
    %209 = vector.extract_strided_slice %155 {offsets = [0, 24], sizes = [16, 8], strides = [1, 1]} : vector<16x32xf32> to vector<16x8xf32>
    %210 = vector.extract_strided_slice %156 {offsets = [0, 24], sizes = [16, 8], strides = [1, 1]} : vector<16x32xf32> to vector<16x8xf32>
    %211 = vector.extract_strided_slice %157 {offsets = [0, 24], sizes = [16, 8], strides = [1, 1]} : vector<16x32xf32> to vector<16x8xf32>
    %c744 = arith.constant 744 : index
    %c0_69 = arith.constant 0 : index
    %212 = vector.load %arg1[%c744, %c0_69] : memref<824x128xf32, #tpu.memory_space<vmem>>, vector<16x16xf32>
    %cst_70 = arith.constant dense<0.000000e+00> : vector<16x16xf32>
    %213 = tpu.matmul %209, %210, %cst_70 {dimension_numbers = #tpu.dot_dimension_numbers<[1], [1], [0], [0], [0, 0, 1, 0], [], []>} : vector<16x8xf32>, vector<16x8xf32>, vector<16x16xf32> -> vector<16x16xf32>
    %214 = arith.addf %213, %212 : vector<16x16xf32>
    %cst_71 = arith.constant dense<0xFF800000> : vector<16xf32>
    %215 = vector.multi_reduction <maximumf>, %214, %cst_71 [1] : vector<16x16xf32> to vector<16xf32>
    %216 = vector.shape_cast %215 : vector<16xf32> to vector<16x1xf32>
    %217 = vector.broadcast %216 : vector<16x1xf32> to vector<16x16xf32>
    %218 = arith.subf %214, %217 : vector<16x16xf32>
    %219 = math.exp %218 : vector<16x16xf32>
    %cst_72 = arith.constant dense<0.000000e+00> : vector<16xf32>
    %220 = vector.multi_reduction <add>, %219, %cst_72 [1] : vector<16x16xf32> to vector<16xf32>
    %221 = vector.shape_cast %220 : vector<16xf32> to vector<16x1xf32>
    %222 = tpu.reciprocal %221 {approx = true} : vector<16x1xf32> -> vector<16x1xf32>
    %223 = vector.broadcast %222 : vector<16x1xf32> to vector<16x16xf32>
    %224 = arith.mulf %219, %223 : vector<16x16xf32>
    %cst_73 = arith.constant dense<0.000000e+00> : vector<16x8xf32>
    %225 = tpu.matmul %224, %211, %cst_73 {dimension_numbers = #tpu.dot_dimension_numbers<[1], [0], [0], [1], [0, 0, 1, 1], [], []>} : vector<16x16xf32>, vector<16x8xf32>, vector<16x8xf32> -> vector<16x8xf32>
    %226 = tpu.concatenate %174, %191, %208, %225 in 1 : vector<16x8xf32>, vector<16x8xf32>, vector<16x8xf32>, vector<16x8xf32> -> vector<16x32xf32>
    %c408 = arith.constant 408 : index
    %c0_74 = arith.constant 0 : index
    %227 = vector.load %arg1[%c408, %c0_74] : memref<824x128xf32, #tpu.memory_space<vmem>>, vector<32x32xf32>
    %cst_75 = arith.constant dense<0.000000e+00> : vector<16x32xf32>
    %228 = tpu.matmul %226, %227, %cst_75 {dimension_numbers = #tpu.dot_dimension_numbers<[1], [0], [0], [1], [0, 0, 1, 1], [], []>} : vector<16x32xf32>, vector<32x32xf32>, vector<16x32xf32> -> vector<16x32xf32>
    %229 = arith.addf %139, %228 : vector<16x32xf32>
    %230 = arith.mulf %229, %229 : vector<16x32xf32>
    %cst_76 = arith.constant dense<0.000000e+00> : vector<16xf32>
    %231 = vector.multi_reduction <add>, %230, %cst_76 [1] : vector<16x32xf32> to vector<16xf32>
    %232 = vector.shape_cast %231 : vector<16xf32> to vector<16x1xf32>
    %cst_77 = arith.constant 3.200000e+01 : f32
    %233 = vector.broadcast %cst_77 : f32 to vector<16x1xf32>
    %234 = arith.divf %232, %233 : vector<16x1xf32>
    %cst_78 = arith.constant 9.99999997E-7 : f32
    %235 = vector.broadcast %cst_78 : f32 to vector<16x1xf32>
    %236 = arith.addf %234, %235 : vector<16x1xf32>
    %237 = math.rsqrt %236 : vector<16x1xf32>
    %238 = vector.broadcast %237 : vector<16x1xf32> to vector<16x32xf32>
    %239 = arith.mulf %229, %238 : vector<16x32xf32>
    %c352 = arith.constant 352 : index
    %c0_79 = arith.constant 0 : index
    %240 = vector.load %arg1[%c352, %c0_79] : memref<824x128xf32, #tpu.memory_space<vmem>>, vector<1x32xf32>
    %241 = vector.broadcast %240 : vector<1x32xf32> to vector<16x32xf32>
    %242 = arith.mulf %239, %241 : vector<16x32xf32>
    %c440 = arith.constant 440 : index
    %c0_80 = arith.constant 0 : index
    %243 = vector.load %arg1[%c440, %c0_80] : memref<824x128xf32, #tpu.memory_space<vmem>>, vector<32x32xf32>
    %cst_81 = arith.constant dense<0.000000e+00> : vector<16x32xf32>
    %244 = tpu.matmul %242, %243, %cst_81 {dimension_numbers = #tpu.dot_dimension_numbers<[1], [0], [0], [1], [0, 0, 1, 1], [], []>} : vector<16x32xf32>, vector<32x32xf32>, vector<16x32xf32> -> vector<16x32xf32>
    %c472 = arith.constant 472 : index
    %c0_82 = arith.constant 0 : index
    %245 = vector.load %arg1[%c472, %c0_82] : memref<824x128xf32, #tpu.memory_space<vmem>>, vector<32x64xf32>
    %cst_83 = arith.constant dense<0.000000e+00> : vector<16x64xf32>
    %246 = tpu.matmul %133, %245, %cst_83 {dimension_numbers = #tpu.dot_dimension_numbers<[1], [0], [0], [1], [0, 0, 1, 1], [], []>} : vector<16x32xf32>, vector<32x64xf32>, vector<16x64xf32> -> vector<16x64xf32>
    %247 = vector.extract_strided_slice %246 {offsets = [0, 0], sizes = [16, 32], strides = [1, 1]} : vector<16x64xf32> to vector<16x32xf32>
    %248 = vector.extract_strided_slice %246 {offsets = [0, 32], sizes = [16, 32], strides = [1, 1]} : vector<16x64xf32> to vector<16x32xf32>
    %249 = vector.extract_strided_slice %244 {offsets = [0, 0], sizes = [16, 8], strides = [1, 1]} : vector<16x32xf32> to vector<16x8xf32>
    %250 = vector.extract_strided_slice %247 {offsets = [0, 0], sizes = [16, 8], strides = [1, 1]} : vector<16x32xf32> to vector<16x8xf32>
    %251 = vector.extract_strided_slice %248 {offsets = [0, 0], sizes = [16, 8], strides = [1, 1]} : vector<16x32xf32> to vector<16x8xf32>
    %c760 = arith.constant 760 : index
    %c0_84 = arith.constant 0 : index
    %252 = vector.load %arg1[%c760, %c0_84] : memref<824x128xf32, #tpu.memory_space<vmem>>, vector<16x16xf32>
    %cst_85 = arith.constant dense<0.000000e+00> : vector<16x16xf32>
    %253 = tpu.matmul %249, %250, %cst_85 {dimension_numbers = #tpu.dot_dimension_numbers<[1], [1], [0], [0], [0, 0, 1, 0], [], []>} : vector<16x8xf32>, vector<16x8xf32>, vector<16x16xf32> -> vector<16x16xf32>
    %254 = arith.addf %253, %252 : vector<16x16xf32>
    %cst_86 = arith.constant dense<0xFF800000> : vector<16xf32>
    %255 = vector.multi_reduction <maximumf>, %254, %cst_86 [1] : vector<16x16xf32> to vector<16xf32>
    %256 = vector.shape_cast %255 : vector<16xf32> to vector<16x1xf32>
    %257 = vector.broadcast %256 : vector<16x1xf32> to vector<16x16xf32>
    %258 = arith.subf %254, %257 : vector<16x16xf32>
    %259 = math.exp %258 : vector<16x16xf32>
    %cst_87 = arith.constant dense<0.000000e+00> : vector<16xf32>
    %260 = vector.multi_reduction <add>, %259, %cst_87 [1] : vector<16x16xf32> to vector<16xf32>
    %261 = vector.shape_cast %260 : vector<16xf32> to vector<16x1xf32>
    %262 = tpu.reciprocal %261 {approx = true} : vector<16x1xf32> -> vector<16x1xf32>
    %263 = vector.broadcast %262 : vector<16x1xf32> to vector<16x16xf32>
    %264 = arith.mulf %259, %263 : vector<16x16xf32>
    %cst_88 = arith.constant dense<0.000000e+00> : vector<16x8xf32>
    %265 = tpu.matmul %264, %251, %cst_88 {dimension_numbers = #tpu.dot_dimension_numbers<[1], [0], [0], [1], [0, 0, 1, 1], [], []>} : vector<16x16xf32>, vector<16x8xf32>, vector<16x8xf32> -> vector<16x8xf32>
    %266 = vector.extract_strided_slice %244 {offsets = [0, 8], sizes = [16, 8], strides = [1, 1]} : vector<16x32xf32> to vector<16x8xf32>
    %267 = vector.extract_strided_slice %247 {offsets = [0, 8], sizes = [16, 8], strides = [1, 1]} : vector<16x32xf32> to vector<16x8xf32>
    %268 = vector.extract_strided_slice %248 {offsets = [0, 8], sizes = [16, 8], strides = [1, 1]} : vector<16x32xf32> to vector<16x8xf32>
    %c776 = arith.constant 776 : index
    %c0_89 = arith.constant 0 : index
    %269 = vector.load %arg1[%c776, %c0_89] : memref<824x128xf32, #tpu.memory_space<vmem>>, vector<16x16xf32>
    %cst_90 = arith.constant dense<0.000000e+00> : vector<16x16xf32>
    %270 = tpu.matmul %266, %267, %cst_90 {dimension_numbers = #tpu.dot_dimension_numbers<[1], [1], [0], [0], [0, 0, 1, 0], [], []>} : vector<16x8xf32>, vector<16x8xf32>, vector<16x16xf32> -> vector<16x16xf32>
    %271 = arith.addf %270, %269 : vector<16x16xf32>
    %cst_91 = arith.constant dense<0xFF800000> : vector<16xf32>
    %272 = vector.multi_reduction <maximumf>, %271, %cst_91 [1] : vector<16x16xf32> to vector<16xf32>
    %273 = vector.shape_cast %272 : vector<16xf32> to vector<16x1xf32>
    %274 = vector.broadcast %273 : vector<16x1xf32> to vector<16x16xf32>
    %275 = arith.subf %271, %274 : vector<16x16xf32>
    %276 = math.exp %275 : vector<16x16xf32>
    %cst_92 = arith.constant dense<0.000000e+00> : vector<16xf32>
    %277 = vector.multi_reduction <add>, %276, %cst_92 [1] : vector<16x16xf32> to vector<16xf32>
    %278 = vector.shape_cast %277 : vector<16xf32> to vector<16x1xf32>
    %279 = tpu.reciprocal %278 {approx = true} : vector<16x1xf32> -> vector<16x1xf32>
    %280 = vector.broadcast %279 : vector<16x1xf32> to vector<16x16xf32>
    %281 = arith.mulf %276, %280 : vector<16x16xf32>
    %cst_93 = arith.constant dense<0.000000e+00> : vector<16x8xf32>
    %282 = tpu.matmul %281, %268, %cst_93 {dimension_numbers = #tpu.dot_dimension_numbers<[1], [0], [0], [1], [0, 0, 1, 1], [], []>} : vector<16x16xf32>, vector<16x8xf32>, vector<16x8xf32> -> vector<16x8xf32>
    %283 = vector.extract_strided_slice %244 {offsets = [0, 16], sizes = [16, 8], strides = [1, 1]} : vector<16x32xf32> to vector<16x8xf32>
    %284 = vector.extract_strided_slice %247 {offsets = [0, 16], sizes = [16, 8], strides = [1, 1]} : vector<16x32xf32> to vector<16x8xf32>
    %285 = vector.extract_strided_slice %248 {offsets = [0, 16], sizes = [16, 8], strides = [1, 1]} : vector<16x32xf32> to vector<16x8xf32>
    %c792 = arith.constant 792 : index
    %c0_94 = arith.constant 0 : index
    %286 = vector.load %arg1[%c792, %c0_94] : memref<824x128xf32, #tpu.memory_space<vmem>>, vector<16x16xf32>
    %cst_95 = arith.constant dense<0.000000e+00> : vector<16x16xf32>
    %287 = tpu.matmul %283, %284, %cst_95 {dimension_numbers = #tpu.dot_dimension_numbers<[1], [1], [0], [0], [0, 0, 1, 0], [], []>} : vector<16x8xf32>, vector<16x8xf32>, vector<16x16xf32> -> vector<16x16xf32>
    %288 = arith.addf %287, %286 : vector<16x16xf32>
    %cst_96 = arith.constant dense<0xFF800000> : vector<16xf32>
    %289 = vector.multi_reduction <maximumf>, %288, %cst_96 [1] : vector<16x16xf32> to vector<16xf32>
    %290 = vector.shape_cast %289 : vector<16xf32> to vector<16x1xf32>
    %291 = vector.broadcast %290 : vector<16x1xf32> to vector<16x16xf32>
    %292 = arith.subf %288, %291 : vector<16x16xf32>
    %293 = math.exp %292 : vector<16x16xf32>
    %cst_97 = arith.constant dense<0.000000e+00> : vector<16xf32>
    %294 = vector.multi_reduction <add>, %293, %cst_97 [1] : vector<16x16xf32> to vector<16xf32>
    %295 = vector.shape_cast %294 : vector<16xf32> to vector<16x1xf32>
    %296 = tpu.reciprocal %295 {approx = true} : vector<16x1xf32> -> vector<16x1xf32>
    %297 = vector.broadcast %296 : vector<16x1xf32> to vector<16x16xf32>
    %298 = arith.mulf %293, %297 : vector<16x16xf32>
    %cst_98 = arith.constant dense<0.000000e+00> : vector<16x8xf32>
    %299 = tpu.matmul %298, %285, %cst_98 {dimension_numbers = #tpu.dot_dimension_numbers<[1], [0], [0], [1], [0, 0, 1, 1], [], []>} : vector<16x16xf32>, vector<16x8xf32>, vector<16x8xf32> -> vector<16x8xf32>
    %300 = vector.extract_strided_slice %244 {offsets = [0, 24], sizes = [16, 8], strides = [1, 1]} : vector<16x32xf32> to vector<16x8xf32>
    %301 = vector.extract_strided_slice %247 {offsets = [0, 24], sizes = [16, 8], strides = [1, 1]} : vector<16x32xf32> to vector<16x8xf32>
    %302 = vector.extract_strided_slice %248 {offsets = [0, 24], sizes = [16, 8], strides = [1, 1]} : vector<16x32xf32> to vector<16x8xf32>
    %c808 = arith.constant 808 : index
    %c0_99 = arith.constant 0 : index
    %303 = vector.load %arg1[%c808, %c0_99] : memref<824x128xf32, #tpu.memory_space<vmem>>, vector<16x16xf32>
    %cst_100 = arith.constant dense<0.000000e+00> : vector<16x16xf32>
    %304 = tpu.matmul %300, %301, %cst_100 {dimension_numbers = #tpu.dot_dimension_numbers<[1], [1], [0], [0], [0, 0, 1, 0], [], []>} : vector<16x8xf32>, vector<16x8xf32>, vector<16x16xf32> -> vector<16x16xf32>
    %305 = arith.addf %304, %303 : vector<16x16xf32>
    %cst_101 = arith.constant dense<0xFF800000> : vector<16xf32>
    %306 = vector.multi_reduction <maximumf>, %305, %cst_101 [1] : vector<16x16xf32> to vector<16xf32>
    %307 = vector.shape_cast %306 : vector<16xf32> to vector<16x1xf32>
    %308 = vector.broadcast %307 : vector<16x1xf32> to vector<16x16xf32>
    %309 = arith.subf %305, %308 : vector<16x16xf32>
    %310 = math.exp %309 : vector<16x16xf32>
    %cst_102 = arith.constant dense<0.000000e+00> : vector<16xf32>
    %311 = vector.multi_reduction <add>, %310, %cst_102 [1] : vector<16x16xf32> to vector<16xf32>
    %312 = vector.shape_cast %311 : vector<16xf32> to vector<16x1xf32>
    %313 = tpu.reciprocal %312 {approx = true} : vector<16x1xf32> -> vector<16x1xf32>
    %314 = vector.broadcast %313 : vector<16x1xf32> to vector<16x16xf32>
    %315 = arith.mulf %310, %314 : vector<16x16xf32>
    %cst_103 = arith.constant dense<0.000000e+00> : vector<16x8xf32>
    %316 = tpu.matmul %315, %302, %cst_103 {dimension_numbers = #tpu.dot_dimension_numbers<[1], [0], [0], [1], [0, 0, 1, 1], [], []>} : vector<16x16xf32>, vector<16x8xf32>, vector<16x8xf32> -> vector<16x8xf32>
    %317 = tpu.concatenate %265, %282, %299, %316 in 1 : vector<16x8xf32>, vector<16x8xf32>, vector<16x8xf32>, vector<16x8xf32> -> vector<16x32xf32>
    %c504 = arith.constant 504 : index
    %c0_104 = arith.constant 0 : index
    %318 = vector.load %arg1[%c504, %c0_104] : memref<824x128xf32, #tpu.memory_space<vmem>>, vector<32x32xf32>
    %cst_105 = arith.constant dense<0.000000e+00> : vector<16x32xf32>
    %319 = tpu.matmul %317, %318, %cst_105 {dimension_numbers = #tpu.dot_dimension_numbers<[1], [0], [0], [1], [0, 0, 1, 1], [], []>} : vector<16x32xf32>, vector<32x32xf32>, vector<16x32xf32> -> vector<16x32xf32>
    %320 = arith.addf %229, %319 : vector<16x32xf32>
    %321 = arith.mulf %320, %320 : vector<16x32xf32>
    %cst_106 = arith.constant dense<0.000000e+00> : vector<16xf32>
    %322 = vector.multi_reduction <add>, %321, %cst_106 [1] : vector<16x32xf32> to vector<16xf32>
    %323 = vector.shape_cast %322 : vector<16xf32> to vector<16x1xf32>
    %cst_107 = arith.constant 3.200000e+01 : f32
    %324 = vector.broadcast %cst_107 : f32 to vector<16x1xf32>
    %325 = arith.divf %323, %324 : vector<16x1xf32>
    %cst_108 = arith.constant 9.99999997E-7 : f32
    %326 = vector.broadcast %cst_108 : f32 to vector<16x1xf32>
    %327 = arith.addf %325, %326 : vector<16x1xf32>
    %328 = math.rsqrt %327 : vector<16x1xf32>
    %329 = vector.broadcast %328 : vector<16x1xf32> to vector<16x32xf32>
    %330 = arith.mulf %320, %329 : vector<16x32xf32>
    %c360 = arith.constant 360 : index
    %c0_109 = arith.constant 0 : index
    %331 = vector.load %arg1[%c360, %c0_109] : memref<824x128xf32, #tpu.memory_space<vmem>>, vector<1x32xf32>
    %332 = vector.broadcast %331 : vector<1x32xf32> to vector<16x32xf32>
    %333 = arith.mulf %330, %332 : vector<16x32xf32>
    %c536 = arith.constant 536 : index
    %c0_110 = arith.constant 0 : index
    %334 = vector.load %arg1[%c536, %c0_110] : memref<824x128xf32, #tpu.memory_space<vmem>>, vector<32x64xf32>
    %cst_111 = arith.constant dense<0.000000e+00> : vector<16x64xf32>
    %335 = tpu.matmul %333, %334, %cst_111 {dimension_numbers = #tpu.dot_dimension_numbers<[1], [0], [0], [1], [0, 0, 1, 1], [], []>} : vector<16x32xf32>, vector<32x64xf32>, vector<16x64xf32> -> vector<16x64xf32>
    %cst_112 = arith.constant 0.000000e+00 : f32
    %336 = vector.broadcast %cst_112 : f32 to vector<16x64xf32>
    %337 = arith.maximumf %335, %336 : vector<16x64xf32>
    %c568 = arith.constant 568 : index
    %c0_113 = arith.constant 0 : index
    %338 = vector.load %arg1[%c568, %c0_113] : memref<824x128xf32, #tpu.memory_space<vmem>>, vector<64x32xf32>
    %cst_114 = arith.constant dense<0.000000e+00> : vector<16x32xf32>
    %339 = tpu.matmul %337, %338, %cst_114 {dimension_numbers = #tpu.dot_dimension_numbers<[1], [0], [0], [1], [0, 0, 1, 1], [], []>} : vector<16x64xf32>, vector<64x32xf32>, vector<16x32xf32> -> vector<16x32xf32>
    %340 = arith.addf %320, %339 : vector<16x32xf32>
    %341 = arith.mulf %340, %340 : vector<16x32xf32>
    %cst_115 = arith.constant dense<0.000000e+00> : vector<16xf32>
    %342 = vector.multi_reduction <add>, %341, %cst_115 [1] : vector<16x32xf32> to vector<16xf32>
    %343 = vector.shape_cast %342 : vector<16xf32> to vector<16x1xf32>
    %cst_116 = arith.constant 3.200000e+01 : f32
    %344 = vector.broadcast %cst_116 : f32 to vector<16x1xf32>
    %345 = arith.divf %343, %344 : vector<16x1xf32>
    %cst_117 = arith.constant 9.99999997E-7 : f32
    %346 = vector.broadcast %cst_117 : f32 to vector<16x1xf32>
    %347 = arith.addf %345, %346 : vector<16x1xf32>
    %348 = math.rsqrt %347 : vector<16x1xf32>
    %349 = vector.broadcast %348 : vector<16x1xf32> to vector<16x32xf32>
    %350 = arith.mulf %340, %349 : vector<16x32xf32>
    %c368 = arith.constant 368 : index
    %c0_118 = arith.constant 0 : index
    %351 = vector.load %arg1[%c368, %c0_118] : memref<824x128xf32, #tpu.memory_space<vmem>>, vector<1x32xf32>
    %352 = vector.broadcast %351 : vector<1x32xf32> to vector<16x32xf32>
    %353 = arith.mulf %350, %352 : vector<16x32xf32>
    %cst_119 = arith.constant 0.176776692 : f32
    %354 = vector.broadcast %cst_119 : f32 to vector<16x32xf32>
    %355 = arith.mulf %353, %354 : vector<16x32xf32>
    %cst_120 = arith.constant dense<0.000000e+00> : vector<16x128xf32>
    %356 = tpu.matmul %355, %1, %cst_120 {dimension_numbers = #tpu.dot_dimension_numbers<[1], [0], [0], [1], [0, 0, 1, 1], [], []>} : vector<16x32xf32>, vector<32x128xf32>, vector<16x128xf32> -> vector<16x128xf32>
    %cst_121 = arith.constant dense<0xFF800000> : vector<16xf32>
    %357 = vector.multi_reduction <maximumf>, %356, %cst_121 [1] : vector<16x128xf32> to vector<16xf32>
    %358 = vector.shape_cast %357 : vector<16xf32> to vector<16x1xf32>
    %359 = vector.broadcast %358 : vector<16x1xf32> to vector<16x128xf32>
    %360 = arith.subf %356, %359 : vector<16x128xf32>
    %361 = math.exp %360 : vector<16x128xf32>
    %cst_122 = arith.constant dense<0.000000e+00> : vector<16xf32>
    %362 = vector.multi_reduction <add>, %361, %cst_122 [1] : vector<16x128xf32> to vector<16xf32>
    %363 = vector.shape_cast %362 : vector<16xf32> to vector<16x1xf32>
    %364 = math.log %363 : vector<16x1xf32>
    %365 = arith.addf %364, %358 : vector<16x1xf32>
    %c-100_i32 = arith.constant -100 : i32
    %366 = vector.broadcast %c-100_i32 : i32 to vector<16x1xi32>
    %367 = arith.cmpi eq, %4, %366 : vector<16x1xi32>
    %c0_i32 = arith.constant 0 : i32
    %368 = vector.broadcast %c0_i32 : i32 to vector<16x1xi32>
    %369 = arith.select %367, %368, %4 : vector<16x1xi1>, vector<16x1xi32>
    %370 = tpu.iota {dimensions = array<i32: 1>} : vector<16x128xi32>
    %371 = vector.broadcast %369 : vector<16x1xi32> to vector<16x128xi32>
    %372 = arith.cmpi eq, %370, %371 : vector<16x128xi32>
    %cst_123 = arith.constant 0.000000e+00 : f32
    %373 = vector.broadcast %cst_123 : f32 to vector<16x128xf32>
    %374 = arith.select %372, %356, %373 : vector<16x128xi1>, vector<16x128xf32>
    %cst_124 = arith.constant dense<0.000000e+00> : vector<16xf32>
    %375 = vector.multi_reduction <add>, %374, %cst_124 [1] : vector<16x128xf32> to vector<16xf32>
    %376 = vector.shape_cast %375 : vector<16xf32> to vector<16x1xf32>
    %377 = arith.subf %365, %376 : vector<16x1xf32>
    %c-100_i32_125 = arith.constant -100 : i32
    %378 = vector.broadcast %c-100_i32_125 : i32 to vector<16x1xi32>
    %379 = arith.cmpi ne, %4, %378 : vector<16x1xi32>
    %380 = arith.extui %379 : vector<16x1xi1> to vector<16x1xi32>
    %381 = arith.sitofp %380 : vector<16x1xi32> to vector<16x1xf32>
    %382 = arith.mulf %377, %381 : vector<16x1xf32>
    %cst_126 = arith.constant dense<0.000000e+00> : vector<1xf32>
    %383 = vector.multi_reduction <add>, %382, %cst_126 [0] : vector<16x1xf32> to vector<1xf32>
    %384 = vector.shape_cast %383 : vector<1xf32> to vector<1x1xf32>
    %cst_127 = arith.constant dense<0.000000e+00> : vector<1xf32>
    %385 = vector.multi_reduction <add>, %381, %cst_127 [0] : vector<16x1xf32> to vector<1xf32>
    %386 = vector.shape_cast %385 : vector<1xf32> to vector<1x1xf32>
    %cst_128 = arith.constant 1.000000e+00 : f32
    %387 = vector.broadcast %cst_128 : f32 to vector<1x1xf32>
    %388 = arith.maximumf %386, %387 : vector<1x1xf32>
    %389 = arith.divf %384, %388 : vector<1x1xf32>
    %c0_129 = arith.constant 0 : index
    %c0_130 = arith.constant 0 : index
    %390 = vector.load %arg2[%c0_129, %c0_130] : memref<1x1xf32, #tpu.memory_space<vmem>>, vector<1x1xf32>
    tpu.vector_store %arg2[%c0_129, %c0_130], %389 {strides = array<i32>} : memref<1x1xf32, #tpu.memory_space<vmem>>, vector<1x1xf32>,
    return
  }
}

</mosaic_0001>

<llo_original>
// kernel: forward.1
$region0: #{forward.1}
  #allocation0 [shape = 'u32[]', space=smem, size = 0x4, offset = 0x4, fixed_abs, tag = 'smem constant byte address 0x4 - core index']
  #allocation1 [shape = 'u32[144,128]{1,0:T(1,128)}', space=vmem, size = 0x12000, scoped, tag = 'internal scratch']
  %s0 = inlined_call_operand.vmem [shape: s32[48,1], index: 0, kind: input, shape index: {}]
  %s1 = inlined_call_operand.vmem [shape: f32[824,128], index: 1, kind: input, shape index: {}]
  %s2 = inlined_call_operand.hbm [shape: f32[1,1], index: 2, kind: output, shape index: {}]
  %s3 = sld [smem:[#allocation0]]
  $region18: #{forward.1} parent=0
    _
  %s5 = ssub.s32 1, %s3
  %s6 = scalar_select 0, %s5, %s3
  $region1: #{forward.1} parent=0
    #allocation2 [shape = 'u8[512]{0}', space=vmem, size = 0x400, scoped, tag = 'output window, operand 0, single buffered']
    #allocation3 [shape = 's32[1]{0}', space=sflag, size = 0x4, scoped, tag = 'scoped memory for forward.1']
    %7 = vsyncpa [#allocation3], 0
    // Predicated region
    $region2: #{forward.1} parent=1 // pred_check
      _
    $region3: #{forward.1} parent=1 // pred_check_branch
      %9 = sbr.rel (0) target = $region5
    $region4: #{forward.1} parent=1 // pred_region
      _
    $region5: #{forward.1} parent=1 // pred_fallthru
      _
    // Predicated region
    $region6: #{forward.1} parent=1 // pred_check
      _
    $region7: #{forward.1} parent=1 // pred_check_branch
      %11 = sbr.rel (0) target = $region9
    $region8: #{forward.1} parent=1 // pred_region
      _
    $region9: #{forward.1} parent=1 // pred_fallthru
      _
    %v12 = vld [vmem:[%s1] sm:$0xff]
    %v13 = vld [vmem:[%s1 + $0x8] sm:$0xff]
    %v14 = vld [vmem:[%s1 + $0x10] sm:$0xff]
    %v15 = vld [vmem:[%s1 + $0x18] sm:$0xff]
    %v16 = vld [vmem:[%s1 + $0x20] sm:$0xff]
    %v17 = vld [vmem:[%s1 + $0x28] sm:$0xff]
    %v18 = vld [vmem:[%s1 + $0x30] sm:$0xff]
    %v19 = vld [vmem:[%s1 + $0x38] sm:$0xff]
    %v20 = vld [vmem:[%s1 + $0x40] sm:$0xff]
    %v21 = vld [vmem:[%s1 + $0x48] sm:$0xff]
    %v22 = vld [vmem:[%s1 + $0x50] sm:$0xff]
    %v23 = vld [vmem:[%s1 + $0x58] sm:$0xff]
    %v24 = vld [vmem:[%s1 + $0x60] sm:$0xff]
    %v25 = vld [vmem:[%s1 + $0x68] sm:$0xff]
    %v26 = vld [vmem:[%s1 + $0x70] sm:$0xff]
    %v27 = vld [vmem:[%s1 + $0x78] sm:$0xff]
    %v28 = vld [vmem:[%s1 + $0x80] sm:$0xff]
    %v29 = vld [vmem:[%s1 + $0x88] sm:$0xff]
    %v30 = vld [vmem:[%s1 + $0x90] sm:$0xff]
    %v31 = vld [vmem:[%s1 + $0x98] sm:$0xff]
    %v32 = vld [vmem:[%s0] sm:$0xff]
    %v33 = vld [vmem:[%s0 + $0x8] sm:$0xff]
    %v34 = vld [vmem:[%s0 + $0x10] sm:$0xff]
    %v35 = vld [vmem:[%s0 + $0x18] sm:$0xff]
    %v36 = vld [vmem:[%s0 + $0x20] sm:$0xff]
    %v37 = vld [vmem:[%s0 + $0x28] sm:$0xff]
    %v38 = vlaneseq
    %v39 = vand.u32 %v38, 127
    %40 = vset.pattern.permute.xlu0 0
    %41 = vperm.xlu0 %40, %v32
    %v42 = vpop.permute.xlu0 %41
    %43 = vset.pattern.permute.xlu0 0
    %44 = vperm.xlu0 %43, %v33
    %v45 = vpop.permute.xlu0 %44
    %vm46 = vcmp.eq.s32.totalorder %v39, %v42
    %vm47 = vcmp.eq.s32.totalorder %v39, %v45
    %v48 = vsel %vm46, 1, 0
    %v49 = vsel %vm47, 1, 0
    %v50 = vcvt.s32.f32 %v48
    %v51 = vcvt.s32.f32 %v49
    %52 = vmatprep.subr.mxu0 0.0
    %53 = vmatpush1.msra.mxu0 %v12
    %54 = vmatprep.subr.mxu0 0.0
    %55 = vmatpush1.msra.mxu0 %v13
    %56 = vmatprep.subr.mxu0 0.0
    %57 = vmatpush1.msra.mxu0 %v14
    %58 = vmatprep.subr.mxu0 0.0
    %59 = vmatpush1.msra.mxu0 %v15
    %60 = vmatprep.subr.mxu0 0.0
    %61 = vmatpush1.msra.mxu0 %v16
    %62 = vmatprep.subr.mxu0 0.0
    %63 = vmatpush1.msra.mxu0 %v17
    %64 = vmatprep.subr.mxu0 0.0
    %65 = vmatpush1.msra.mxu0 %v18
    %66 = vmatprep.subr.mxu0 0.0
    %67 = vmatpush1.msra.mxu0 %v19
    %68 = vmatprep.subr.mxu0 0.0
    %69 = vmatpush1.msra.mxu0 %v20
    %70 = vmatprep.subr.mxu0 0.0
    %71 = vmatpush1.msra.mxu0 %v21
    %72 = vmatprep.subr.mxu0 0.0
    %73 = vmatpush1.msra.mxu0 %v22
    %74 = vmatprep.subr.mxu0 0.0
    %75 = vmatpush1.msra.mxu0 %v23
    %76 = vmatprep.subr.mxu0 0.0
    %77 = vmatpush1.msra.mxu0 %v24
    %78 = vmatprep.subr.mxu0 0.0
    %79 = vmatpush1.msra.mxu0 %v25
    %80 = vmatprep.subr.mxu0 0.0
    %81 = vmatpush1.msra.mxu0 %v26
    %82 = vmatprep.subr.mxu0 0.0
    %83 = vmatpush1.msra.mxu0 %v27
    %84 = vmatprep.subr.mxu0 0.0
    %85 = vmatpush1.msra.mxu0 0.0
    %86 = vmatprep.subr.mxu0 0.0
    %87 = vmatpush1.msra.mxu0 0.0
    %88 = vmatprep.subr.mxu0 0.0
    %89 = vmatpush1.msra.mxu0 0.0
    %90 = vmatprep.subr.mxu0 0.0
    %91 = vmatpush1.msra.mxu0 0.0
    %92 = vmatprep.subr.mxu0 0.0
    %93 = vmatpush1.msra.mxu0 0.0
    %94 = vmatprep.subr.mxu0 0.0
    %95 = vmatpush1.msra.mxu0 0.0
    %96 = vmatprep.subr.mxu0 0.0
    %97 = vmatpush1.msra.mxu0 0.0
    %98 = vmatprep.subr.mxu0 0.0
    %99 = vmatpush1.msra.mxu0 0.0
    %100 = vmatprep.subr.mxu0 0.0
    %101 = vmatpush1.msra.mxu0 0.0
    %102 = vmatprep.subr.mxu0 0.0
    %103 = vmatpush1.msra.mxu0 0.0
    %104 = vmatprep.subr.mxu0 0.0
    %105 = vmatpush1.msra.mxu0 0.0
    %106 = vmatprep.subr.mxu0 0.0
    %107 = vmatpush1.msra.mxu0 0.0
    %108 = vmatprep.subr.mxu0 0.0
    %109 = vmatpush1.msra.mxu0 0.0
    %110 = vmatprep.subr.mxu0 0.0
    %111 = vmatpush1.msra.mxu0 0.0
    %112 = vmatprep.subr.mxu0 0.0
    %113 = vmatpush1.msra.mxu0 0.0
    %114 = vmatprep.subr.mxu0 0.0
    %115 = vmatpush1.msra.mxu0 0.0
    %116 = vmatprep.mubr.f32.mxu0 0.0
    %117 = vmatmul.mubr.f32.gmra.mrb[0].mxu0 %v50
    %v118 = vpop.f32.mrb[0].mxu0
    %v119 = vadd.f32 0.0, %v118
    %v120 = vpop.f32.mrb[0].mxu0
    %121 = vmatprep.mubr.f32.mxu0 0.0
    %122 = vmatmul.mubr.f32.gmra.mrb[0].mxu0 %v51
    %v123 = vpop.f32.mrb[0].mxu0
    %v124 = vadd.f32 0.0, %v123
    %v125 = vpop.f32.mrb[0].mxu0
    %126 = vdwg.mxu0
    %v127 = vmul.f32 %v119, %v119
    %v128 = vmul.f32 %v124, %v124
    %vm129 = vcmask 261120
    %v130 = vsel %vm129, %v127, 0.0
    %131 = vadd.xlane.f32.xlu0 %v130
    %v132 = vpop.xlane.xlu0 %131
    %v133 = vsel %vm129, %v128, 0.0
    %134 = vadd.xlane.f32.xlu0 %v133
    %v135 = vpop.xlane.xlu0 %134
    %v136 = vrcp.pop 32.0
    %v137 = vmul.f32 %v132, %v136
    %v138 = vmul.f32 %v135, %v136
    %v139 = vadd.f32 %v137, 1e-06
    %v140 = vadd.f32 %v138, 1e-06
    %v141 = vrsqrt.pop %v139
    %v142 = vrsqrt.pop %v140
    %v143 = vmul.f32 %v119, %v141
    %v144 = vmul.f32 %v124, %v142
    %v145 = vld [vmem:[%s1 + $0xa0] sm:$0x1]
    %v146 = vlaneseq
    %v147 = vshrl.u32 %v146, 7
    %v148 = vsub.s32 0, %v147
    %v149 = vrot.slane %v145, %v148
    %v150 = vmul.f32 %v143, %v149
    %v151 = vmul.f32 %v144, %v149
    %v152 = vld [vmem:[%s1 + $0xb8] sm:$0xff]
    %v153 = vld [vmem:[%s1 + $0xc0] sm:$0xff]
    %v154 = vld [vmem:[%s1 + $0xc8] sm:$0xff]
    %v155 = vld [vmem:[%s1 + $0xd0] sm:$0xff]
    %v157 = vsel %vm129, %v150, 0
    %v160 = vsel %vm129, %v151, 0
    %162 = vmatprep.subr.mxu0 0.0
    %163 = vmatpush1.msra.mxu0 %v152
    %164 = vmatprep.subr.mxu0 0.0
    %165 = vmatpush1.msra.mxu0 %v153
    %166 = vmatprep.subr.mxu0 0.0
    %167 = vmatpush1.msra.mxu0 %v154
    %168 = vmatprep.subr.mxu0 0.0
    %169 = vmatpush1.msra.mxu0 %v155
    %170 = vmatprep.subr.mxu0 0.0
    %171 = vmatpush1.msra.mxu0 0.0
    %172 = vmatprep.subr.mxu0 0.0
    %173 = vmatpush1.msra.mxu0 0.0
    %174 = vmatprep.subr.mxu0 0.0
    %175 = vmatpush1.msra.mxu0 0.0
    %176 = vmatprep.subr.mxu0 0.0
    %177 = vmatpush1.msra.mxu0 0.0
    %178 = vmatprep.subr.mxu0 0.0
    %179 = vmatpush1.msra.mxu0 0.0
    %180 = vmatprep.subr.mxu0 0.0
    %181 = vmatpush1.msra.mxu0 0.0
    %182 = vmatprep.subr.mxu0 0.0
    %183 = vmatpush1.msra.mxu0 0.0
    %184 = vmatprep.subr.mxu0 0.0
    %185 = vmatpush1.msra.mxu0 0.0
    %186 = vmatprep.subr.mxu0 0.0
    %187 = vmatpush1.msra.mxu0 0.0
    %188 = vmatprep.subr.mxu0 0.0
    %189 = vmatpush1.msra.mxu0 0.0
    %190 = vmatprep.subr.mxu0 0.0
    %191 = vmatpush1.msra.mxu0 0.0
    %192 = vmatprep.subr.mxu0 0.0
    %193 = vmatpush1.msra.mxu0 0.0
    %194 = vmatprep.subr.mxu0 0.0
    %195 = vmatpush1.msra.mxu0 0.0
    %196 = vmatprep.subr.mxu0 0.0
    %197 = vmatpush1.msra.mxu0 0.0
    %198 = vmatprep.subr.mxu0 0.0
    %199 = vmatpush1.msra.mxu0 0.0
    %200 = vmatprep.subr.mxu0 0.0
    %201 = vmatpush1.msra.mxu0 0.0
    %202 = vmatprep.subr.mxu0 0.0
    %203 = vmatpush1.msra.mxu0 0.0
    %204 = vmatprep.subr.mxu0 0.0
    %205 = vmatpush1.msra.mxu0 0.0
    %206 = vmatprep.subr.mxu0 0.0
    %207 = vmatpush1.msra.mxu0 0.0
    %208 = vmatprep.subr.mxu0 0.0
    %209 = vmatpush1.msra.mxu0 0.0
    %210 = vmatprep.subr.mxu0 0.0
    %211 = vmatpush1.msra.mxu0 0.0
    %212 = vmatprep.subr.mxu0 0.0
    %213 = vmatpush1.msra.mxu0 0.0
    %214 = vmatprep.subr.mxu0 0.0
    %215 = vmatpush1.msra.mxu0 0.0
    %216 = vmatprep.subr.mxu0 0.0
    %217 = vmatpush1.msra.mxu0 0.0
    %218 = vmatprep.subr.mxu0 0.0
    %219 = vmatpush1.msra.mxu0 0.0
    %220 = vmatprep.subr.mxu0 0.0
    %221 = vmatpush1.msra.mxu0 0.0
    %222 = vmatprep.subr.mxu0 0.0
    %223 = vmatpush1.msra.mxu0 0.0
    %224 = vmatprep.subr.mxu0 0.0
    %225 = vmatpush1.msra.mxu0 0.0
    %226 = vmatprep.mubr.f32.mxu0 0.0
    %227 = vmatmul.mubr.f32.gmra.mrb[0].mxu0 %v157
    %v228 = vpop.f32.mrb[0].mxu0
    %v229 = vadd.f32 0.0, %v228
    %v230 = vpop.f32.mrb[0].mxu0
    %231 = vmatprep.mubr.f32.mxu0 0.0
    %232 = vmatmul.mubr.f32.gmra.mrb[0].mxu0 %v160
    %v233 = vpop.f32.mrb[0].mxu0
    %v234 = vadd.f32 0.0, %v233
    %v235 = vpop.f32.mrb[0].mxu0
    %236 = vdwg.mxu0
    %v237 = vld [vmem:[%s1 + $0x278] sm:$0xff]
    %v238 = vld [vmem:[%s1 + $0x280] sm:$0xff]
    %241 = vrot.lane.b32.xlu0 %v229, 96
    %v242 = vpop.permute.xlu0 %241
    %243 = vrot.lane.b32.xlu0 %v234, 96
    %v244 = vpop.permute.xlu0 %243
    %vm245 = vcmask 64512
    %v246 = vsel %vm245, %v229, 0
    %v248 = vsel %vm245, %v234, 0
    %v250 = vsel %vm245, %v242, 0
    %v252 = vsel %vm245, %v244, 0
    %254 = vmatprep.subr.mxu0 0.0
    %255 = vmatpush1.xpose.msra.mxu0 %v250
    %256 = vmatprep.subr.mxu0 0.0
    %257 = vmatpush1.xpose.msra.mxu0 %v252
    %258 = vmatprep.subr.mxu0 0.0
    %259 = vmatpush1.xpose.msra.mxu0 0.0
    %260 = vmatprep.subr.mxu0 0.0
    %261 = vmatpush1.xpose.msra.mxu0 0.0
    %262 = vmatprep.subr.mxu0 0.0
    %263 = vmatpush1.xpose.msra.mxu0 0.0
    %264 = vmatprep.subr.mxu0 0.0
    %265 = vmatpush1.xpose.msra.mxu0 0.0
    %266 = vmatprep.subr.mxu0 0.0
    %267 = vmatpush1.xpose.msra.mxu0 0.0
    %268 = vmatprep.subr.mxu0 0.0
    %269 = vmatpush1.xpose.msra.mxu0 0.0
    %270 = vmatprep.subr.mxu0 0.0
    %271 = vmatpush1.xpose.msra.mxu0 0.0
    %272 = vmatprep.subr.mxu0 0.0
    %273 = vmatpush1.xpose.msra.mxu0 0.0
    %274 = vmatprep.subr.mxu0 0.0
    %275 = vmatpush1.xpose.msra.mxu0 0.0
    %276 = vmatprep.subr.mxu0 0.0
    %277 = vmatpush1.xpose.msra.mxu0 0.0
    %278 = vmatprep.subr.mxu0 0.0
    %279 = vmatpush1.xpose.msra.mxu0 0.0
    %280 = vmatprep.subr.mxu0 0.0
    %281 = vmatpush1.xpose.msra.mxu0 0.0
    %282 = vmatprep.subr.mxu0 0.0
    %283 = vmatpush1.xpose.msra.mxu0 0.0
    %284 = vmatprep.subr.mxu0 0.0
    %285 = vmatpush1.xpose.msra.mxu0 0.0
    %286 = vmatprep.subr.mxu0 0.0
    %287 = vmatpush1.xpose.msra.mxu0 0.0
    %288 = vmatprep.subr.mxu0 0.0
    %289 = vmatpush1.xpose.msra.mxu0 0.0
    %290 = vmatprep.subr.mxu0 0.0
    %291 = vmatpush1.xpose.msra.mxu0 0.0
    %292 = vmatprep.subr.mxu0 0.0
    %293 = vmatpush1.xpose.msra.mxu0 0.0
    %294 = vmatprep.subr.mxu0 0.0
    %295 = vmatpush1.xpose.msra.mxu0 0.0
    %296 = vmatprep.subr.mxu0 0.0
    %297 = vmatpush1.xpose.msra.mxu0 0.0
    %298 = vmatprep.subr.mxu0 0.0
    %299 = vmatpush1.xpose.msra.mxu0 0.0
    %300 = vmatprep.subr.mxu0 0.0
    %301 = vmatpush1.xpose.msra.mxu0 0.0
    %302 = vmatprep.subr.mxu0 0.0
    %303 = vmatpush1.xpose.msra.mxu0 0.0
    %304 = vmatprep.subr.mxu0 0.0
    %305 = vmatpush1.xpose.msra.mxu0 0.0
    %306 = vmatprep.subr.mxu0 0.0
    %307 = vmatpush1.xpose.msra.mxu0 0.0
    %308 = vmatprep.subr.mxu0 0.0
    %309 = vmatpush1.xpose.msra.mxu0 0.0
    %310 = vmatprep.subr.mxu0 0.0
    %311 = vmatpush1.xpose.msra.mxu0 0.0
    %312 = vmatprep.subr.mxu0 0.0
    %313 = vmatpush1.xpose.msra.mxu0 0.0
    %314 = vmatprep.subr.mxu0 0.0
    %315 = vmatpush1.xpose.msra.mxu0 0.0
    %316 = vmatprep.subr.mxu0 0.0
    %317 = vmatpush1.xpose.msra.mxu0 0.0
    %318 = vmatprep.mubr.f32.mxu0 0.0
    %319 = vmatmul.mubr.f32.gmra.mrb[0].mxu0 %v246
    %v320 = vpop.f32.mrb[0].mxu0
    %v321 = vadd.f32 %v237, %v320
    %v322 = vpop.f32.mrb[0].mxu0
    %323 = vmatprep.mubr.f32.mxu0 0.0
    %324 = vmatmul.mubr.f32.gmra.mrb[0].mxu0 %v248
    %v325 = vpop.f32.mrb[0].mxu0
    %v326 = vadd.f32 %v238, %v325
    %v327 = vpop.f32.mrb[0].mxu0
    %328 = vdwg.mxu0
    %vm329 = vcmask 130048
    %v330 = vsel %vm329, %v321, -inf
    %331 = vmax.xlane.f32.xlu0 %v330
    %v332 = vpop.xlane.xlu0 %331
    %v333 = vsel %vm329, %v326, -inf
    %334 = vmax.xlane.f32.xlu0 %v333
    %v335 = vpop.xlane.xlu0 %334
    %v336 = vsub.f32 %v321, %v332
    %v337 = vsub.f32 %v326, %v335
    %v338 = vmul.f32 %v336, 1.442695
    %v339 = vpow.pop %v338
    %v340 = vmul.f32 %v337, 1.442695
    %v341 = vpow.pop %v340
    %v342 = vsel %vm329, %v339, 0.0
    %343 = vadd.xlane.f32.xlu0 %v342
    %v344 = vpop.xlane.xlu0 %343
    %v345 = vsel %vm329, %v341, 0.0
    %346 = vadd.xlane.f32.xlu0 %v345
    %v347 = vpop.xlane.xlu0 %346
    %v348 = vrcp.pop %v344
    %v349 = vrcp.pop %v347
    %v350 = vmul.f32 %v339, %v348
    %v351 = vmul.f32 %v341, %v349
    %352 = vrot.lane.b32.xlu0 %v229, 64
    %v353 = vpop.permute.xlu0 %352
    %354 = vrot.lane.b32.xlu0 %v234, 64
    %v355 = vpop.permute.xlu0 %354
    %v359 = vsel %vm329, %v350, 0
    %v362 = vsel %vm329, %v351, 0
    %364 = vmatprep.subr.mxu0 0.0
    %365 = vmatpush1.msra.mxu0 %v353
    %366 = vmatprep.subr.mxu0 0.0
    %367 = vmatpush1.msra.mxu0 %v355
    %368 = vmatprep.subr.mxu0 0.0
    %369 = vmatpush1.msra.mxu0 0.0
    %370 = vmatprep.subr.mxu0 0.0
    %371 = vmatpush1.msra.mxu0 0.0
    %372 = vmatprep.subr.mxu0 0.0
    %373 = vmatpush1.msra.mxu0 0.0
    %374 = vmatprep.subr.mxu0 0.0
    %375 = vmatpush1.msra.mxu0 0.0
    %376 = vmatprep.subr.mxu0 0.0
    %377 = vmatpush1.msra.mxu0 0.0
    %378 = vmatprep.subr.mxu0 0.0
    %379 = vmatpush1.msra.mxu0 0.0
    %380 = vmatprep.subr.mxu0 0.0
    %381 = vmatpush1.msra.mxu0 0.0
    %382 = vmatprep.subr.mxu0 0.0
    %383 = vmatpush1.msra.mxu0 0.0
    %384 = vmatprep.subr.mxu0 0.0
    %385 = vmatpush1.msra.mxu0 0.0
    %386 = vmatprep.subr.mxu0 0.0
    %387 = vmatpush1.msra.mxu0 0.0
    %388 = vmatprep.subr.mxu0 0.0
    %389 = vmatpush1.msra.mxu0 0.0
    %390 = vmatprep.subr.mxu0 0.0
    %391 = vmatpush1.msra.mxu0 0.0
    %392 = vmatprep.subr.mxu0 0.0
    %393 = vmatpush1.msra.mxu0 0.0
    %394 = vmatprep.subr.mxu0 0.0
    %395 = vmatpush1.msra.mxu0 0.0
    %396 = vmatprep.subr.mxu0 0.0
    %397 = vmatpush1.msra.mxu0 0.0
    %398 = vmatprep.subr.mxu0 0.0
    %399 = vmatpush1.msra.mxu0 0.0
    %400 = vmatprep.subr.mxu0 0.0
    %401 = vmatpush1.msra.mxu0 0.0
    %402 = vmatprep.subr.mxu0 0.0
    %403 = vmatpush1.msra.mxu0 0.0
    %404 = vmatprep.subr.mxu0 0.0
    %405 = vmatpush1.msra.mxu0 0.0
    %406 = vmatprep.subr.mxu0 0.0
    %407 = vmatpush1.msra.mxu0 0.0
    %408 = vmatprep.subr.mxu0 0.0
    %409 = vmatpush1.msra.mxu0 0.0
    %410 = vmatprep.subr.mxu0 0.0
    %411 = vmatpush1.msra.mxu0 0.0
    %412 = vmatprep.subr.mxu0 0.0
    %413 = vmatpush1.msra.mxu0 0.0
    %414 = vmatprep.subr.mxu0 0.0
    %415 = vmatpush1.msra.mxu0 0.0
    %416 = vmatprep.subr.mxu0 0.0
    %417 = vmatpush1.msra.mxu0 0.0
    %418 = vmatprep.subr.mxu0 0.0
    %419 = vmatpush1.msra.mxu0 0.0
    %420 = vmatprep.subr.mxu0 0.0
    %421 = vmatpush1.msra.mxu0 0.0
    %422 = vmatprep.subr.mxu0 0.0
    %423 = vmatpush1.msra.mxu0 0.0
    %424 = vmatprep.subr.mxu0 0.0
    %425 = vmatpush1.msra.mxu0 0.0
    %426 = vmatprep.subr.mxu0 0.0
    %427 = vmatpush1.msra.mxu0 0.0
    %428 = vmatprep.mubr.f32.mxu0 0.0
    %429 = vmatmul.mubr.f32.gmra.mrb[0].mxu0 %v359
    %v430 = vpop.f32.mrb[0].mxu0
    %v431 = vadd.f32 0.0, %v430
    %v432 = vpop.f32.mrb[0].mxu0
    %433 = vmatprep.mubr.f32.mxu0 0.0
    %434 = vmatmul.mubr.f32.gmra.mrb[0].mxu0 %v362
    %v435 = vpop.f32.mrb[0].mxu0
    %v436 = vadd.f32 0.0, %v435
    %v437 = vpop.f32.mrb[0].mxu0
    %438 = vdwg.mxu0
    %v439 = vld [vmem:[%s1 + $0x288] sm:$0xff]
    %v440 = vld [vmem:[%s1 + $0x290] sm:$0xff]
    %441 = vrot.lane.b32.xlu0 %v229, 120
    %v442 = vpop.permute.xlu0 %441
    %443 = vrot.lane.b32.xlu0 %v234, 120
    %v444 = vpop.permute.xlu0 %443
    %445 = vrot.lane.b32.xlu0 %v229, 88
    %v446 = vpop.permute.xlu0 %445
    %447 = vrot.lane.b32.xlu0 %v234, 88
    %v448 = vpop.permute.xlu0 %447
    %v449 = vsel %vm245, %v442, 0
    %v451 = vsel %vm245, %v444, 0
    %v453 = vsel %vm245, %v446, 0
    %v455 = vsel %vm245, %v448, 0
    %457 = vmatprep.subr.mxu0 0.0
    %458 = vmatpush1.xpose.msra.mxu0 %v453
    %459 = vmatprep.subr.mxu0 0.0
    %460 = vmatpush1.xpose.msra.mxu0 %v455
    %461 = vmatprep.subr.mxu0 0.0
    %462 = vmatpush1.xpose.msra.mxu0 0.0
    %463 = vmatprep.subr.mxu0 0.0
    %464 = vmatpush1.xpose.msra.mxu0 0.0
    %465 = vmatprep.subr.mxu0 0.0
    %466 = vmatpush1.xpose.msra.mxu0 0.0
    %467 = vmatprep.subr.mxu0 0.0
    %468 = vmatpush1.xpose.msra.mxu0 0.0
    %469 = vmatprep.subr.mxu0 0.0
    %470 = vmatpush1.xpose.msra.mxu0 0.0
    %471 = vmatprep.subr.mxu0 0.0
    %472 = vmatpush1.xpose.msra.mxu0 0.0
    %473 = vmatprep.subr.mxu0 0.0
    %474 = vmatpush1.xpose.msra.mxu0 0.0
    %475 = vmatprep.subr.mxu0 0.0
    %476 = vmatpush1.xpose.msra.mxu0 0.0
    %477 = vmatprep.subr.mxu0 0.0
    %478 = vmatpush1.xpose.msra.mxu0 0.0
    %479 = vmatprep.subr.mxu0 0.0
    %480 = vmatpush1.xpose.msra.mxu0 0.0
    %481 = vmatprep.subr.mxu0 0.0
    %482 = vmatpush1.xpose.msra.mxu0 0.0
    %483 = vmatprep.subr.mxu0 0.0
    %484 = vmatpush1.xpose.msra.mxu0 0.0
    %485 = vmatprep.subr.mxu0 0.0
    %486 = vmatpush1.xpose.msra.mxu0 0.0
    %487 = vmatprep.subr.mxu0 0.0
    %488 = vmatpush1.xpose.msra.mxu0 0.0
    %489 = vmatprep.subr.mxu0 0.0
    %490 = vmatpush1.xpose.msra.mxu0 0.0
    %491 = vmatprep.subr.mxu0 0.0
    %492 = vmatpush1.xpose.msra.mxu0 0.0
    %493 = vmatprep.subr.mxu0 0.0
    %494 = vmatpush1.xpose.msra.mxu0 0.0
    %495 = vmatprep.subr.mxu0 0.0
    %496 = vmatpush1.xpose.msra.mxu0 0.0
    %497 = vmatprep.subr.mxu0 0.0
    %498 = vmatpush1.xpose.msra.mxu0 0.0
    %499 = vmatprep.subr.mxu0 0.0
    %500 = vmatpush1.xpose.msra.mxu0 0.0
    %501 = vmatprep.subr.mxu0 0.0
    %502 = vmatpush1.xpose.msra.mxu0 0.0
    %503 = vmatprep.subr.mxu0 0.0
    %504 = vmatpush1.xpose.msra.mxu0 0.0
    %505 = vmatprep.subr.mxu0 0.0
    %506 = vmatpush1.xpose.msra.mxu0 0.0
    %507 = vmatprep.subr.mxu0 0.0
    %508 = vmatpush1.xpose.msra.mxu0 0.0
    %509 = vmatprep.subr.mxu0 0.0
    %510 = vmatpush1.xpose.msra.mxu0 0.0
    %511 = vmatprep.subr.mxu0 0.0
    %512 = vmatpush1.xpose.msra.mxu0 0.0
    %513 = vmatprep.subr.mxu0 0.0
    %514 = vmatpush1.xpose.msra.mxu0 0.0
    %515 = vmatprep.subr.mxu0 0.0
    %516 = vmatpush1.xpose.msra.mxu0 0.0
    %517 = vmatprep.subr.mxu0 0.0
    %518 = vmatpush1.xpose.msra.mxu0 0.0
    %519 = vmatprep.subr.mxu0 0.0
    %520 = vmatpush1.xpose.msra.mxu0 0.0
    %521 = vmatprep.mubr.f32.mxu0 0.0
    %522 = vmatmul.mubr.f32.gmra.mrb[0].mxu0 %v449
    %v523 = vpop.f32.mrb[0].mxu0
    %v524 = vadd.f32 %v439, %v523
    %v525 = vpop.f32.mrb[0].mxu0
    %526 = vmatprep.mubr.f32.mxu0 0.0
    %527 = vmatmul.mubr.f32.gmra.mrb[0].mxu0 %v451
    %v528 = vpop.f32.mrb[0].mxu0
    %v529 = vadd.f32 %v440, %v528
    %v530 = vpop.f32.mrb[0].mxu0
    %531 = vdwg.mxu0
    %v532 = vsel %vm329, %v524, -inf
    %533 = vmax.xlane.f32.xlu0 %v532
    %v534 = vpop.xlane.xlu0 %533
    %v535 = vsel %vm329, %v529, -inf
    %536 = vmax.xlane.f32.xlu0 %v535
    %v537 = vpop.xlane.xlu0 %536
    %v538 = vsub.f32 %v524, %v534
    %v539 = vsub.f32 %v529, %v537
    %v540 = vmul.f32 %v538, 1.442695
    %v541 = vpow.pop %v540
    %v542 = vmul.f32 %v539, 1.442695
    %v543 = vpow.pop %v542
    %v544 = vsel %vm329, %v541, 0.0
    %545 = vadd.xlane.f32.xlu0 %v544
    %v546 = vpop.xlane.xlu0 %545
    %v547 = vsel %vm329, %v543, 0.0
    %548 = vadd.xlane.f32.xlu0 %v547
    %v549 = vpop.xlane.xlu0 %548
    %v550 = vrcp.pop %v546
    %v551 = vrcp.pop %v549
    %v552 = vmul.f32 %v541, %v550
    %v553 = vmul.f32 %v543, %v551
    %554 = vrot.lane.b32.xlu0 %v229, 56
    %v555 = vpop.permute.xlu0 %554
    %556 = vrot.lane.b32.xlu0 %v234, 56
    %v557 = vpop.permute.xlu0 %556
    %v561 = vsel %vm329, %v552, 0
    %v564 = vsel %vm329, %v553, 0
    %566 = vmatprep.subr.mxu0 0.0
    %567 = vmatpush1.msra.mxu0 %v555
    %568 = vmatprep.subr.mxu0 0.0
    %569 = vmatpush1.msra.mxu0 %v557
    %570 = vmatprep.subr.mxu0 0.0
    %571 = vmatpush1.msra.mxu0 0.0
    %572 = vmatprep.subr.mxu0 0.0
    %573 = vmatpush1.msra.mxu0 0.0
    %574 = vmatprep.subr.mxu0 0.0
    %575 = vmatpush1.msra.mxu0 0.0
    %576 = vmatprep.subr.mxu0 0.0
    %577 = vmatpush1.msra.mxu0 0.0
    %578 = vmatprep.subr.mxu0 0.0
    %579 = vmatpush1.msra.mxu0 0.0
    %580 = vmatprep.subr.mxu0 0.0
    %581 = vmatpush1.msra.mxu0 0.0
    %582 = vmatprep.subr.mxu0 0.0
    %583 = vmatpush1.msra.mxu0 0.0
    %584 = vmatprep.subr.mxu0 0.0
    %585 = vmatpush1.msra.mxu0 0.0
    %586 = vmatprep.subr.mxu0 0.0
    %587 = vmatpush1.msra.mxu0 0.0
    %588 = vmatprep.subr.mxu0 0.0
    %589 = vmatpush1.msra.mxu0 0.0
    %590 = vmatprep.subr.mxu0 0.0
    %591 = vmatpush1.msra.mxu0 0.0
    %592 = vmatprep.subr.mxu0 0.0
    %593 = vmatpush1.msra.mxu0 0.0
    %594 = vmatprep.subr.mxu0 0.0
    %595 = vmatpush1.msra.mxu0 0.0
    %596 = vmatprep.subr.mxu0 0.0
    %597 = vmatpush1.msra.mxu0 0.0
    %598 = vmatprep.subr.mxu0 0.0
    %599 = vmatpush1.msra.mxu0 0.0
    %600 = vmatprep.subr.mxu0 0.0
    %601 = vmatpush1.msra.mxu0 0.0
    %602 = vmatprep.subr.mxu0 0.0
    %603 = vmatpush1.msra.mxu0 0.0
    %604 = vmatprep.subr.mxu0 0.0
    %605 = vmatpush1.msra.mxu0 0.0
    %606 = vmatprep.subr.mxu0 0.0
    %607 = vmatpush1.msra.mxu0 0.0
    %608 = vmatprep.subr.mxu0 0.0
    %609 = vmatpush1.msra.mxu0 0.0
    %610 = vmatprep.subr.mxu0 0.0
    %611 = vmatpush1.msra.mxu0 0.0
    %612 = vmatprep.subr.mxu0 0.0
    %613 = vmatpush1.msra.mxu0 0.0
    %614 = vmatprep.subr.mxu0 0.0
    %615 = vmatpush1.msra.mxu0 0.0
    %616 = vmatprep.subr.mxu0 0.0
    %617 = vmatpush1.msra.mxu0 0.0
    %618 = vmatprep.subr.mxu0 0.0
    %619 = vmatpush1.msra.mxu0 0.0
    %620 = vmatprep.subr.mxu0 0.0
    %621 = vmatpush1.msra.mxu0 0.0
    %622 = vmatprep.subr.mxu0 0.0
    %623 = vmatpush1.msra.mxu0 0.0
    %624 = vmatprep.subr.mxu0 0.0
    %625 = vmatpush1.msra.mxu0 0.0
    %626 = vmatprep.subr.mxu0 0.0
    %627 = vmatpush1.msra.mxu0 0.0
    %628 = vmatprep.subr.mxu0 0.0
    %629 = vmatpush1.msra.mxu0 0.0
    %630 = vmatprep.mubr.f32.mxu0 0.0
    %631 = vmatmul.mubr.f32.gmra.mrb[0].mxu0 %v561
    %v632 = vpop.f32.mrb[0].mxu0
    %v633 = vadd.f32 0.0, %v632
    %v634 = vpop.f32.mrb[0].mxu0
    %635 = vmatprep.mubr.f32.mxu0 0.0
    %636 = vmatmul.mubr.f32.gmra.mrb[0].mxu0 %v564
    %v637 = vpop.f32.mrb[0].mxu0
    %v638 = vadd.f32 0.0, %v637
    %v639 = vpop.f32.mrb[0].mxu0
    %640 = vdwg.mxu0
    %v641 = vld [vmem:[%s1 + $0x298] sm:$0xff]
    %v642 = vld [vmem:[%s1 + $0x2a0] sm:$0xff]
    %643 = vrot.lane.b32.xlu0 %v229, 112
    %v644 = vpop.permute.xlu0 %643
    %645 = vrot.lane.b32.xlu0 %v234, 112
    %v646 = vpop.permute.xlu0 %645
    %647 = vrot.lane.b32.xlu0 %v229, 80
    %v648 = vpop.permute.xlu0 %647
    %649 = vrot.lane.b32.xlu0 %v234, 80
    %v650 = vpop.permute.xlu0 %649
    %v651 = vsel %vm245, %v644, 0
    %v653 = vsel %vm245, %v646, 0
    %v655 = vsel %vm245, %v648, 0
    %v657 = vsel %vm245, %v650, 0
    %659 = vmatprep.subr.mxu0 0.0
    %660 = vmatpush1.xpose.msra.mxu0 %v655
    %661 = vmatprep.subr.mxu0 0.0
    %662 = vmatpush1.xpose.msra.mxu0 %v657
    %663 = vmatprep.subr.mxu0 0.0
    %664 = vmatpush1.xpose.msra.mxu0 0.0
    %665 = vmatprep.subr.mxu0 0.0
    %666 = vmatpush1.xpose.msra.mxu0 0.0
    %667 = vmatprep.subr.mxu0 0.0
    %668 = vmatpush1.xpose.msra.mxu0 0.0
    %669 = vmatprep.subr.mxu0 0.0
    %670 = vmatpush1.xpose.msra.mxu0 0.0
    %671 = vmatprep.subr.mxu0 0.0
    %672 = vmatpush1.xpose.msra.mxu0 0.0
    %673 = vmatprep.subr.mxu0 0.0
    %674 = vmatpush1.xpose.msra.mxu0 0.0
    %675 = vmatprep.subr.mxu0 0.0
    %676 = vmatpush1.xpose.msra.mxu0 0.0
    %677 = vmatprep.subr.mxu0 0.0
    %678 = vmatpush1.xpose.msra.mxu0 0.0
    %679 = vmatprep.subr.mxu0 0.0
    %680 = vmatpush1.xpose.msra.mxu0 0.0
    %681 = vmatprep.subr.mxu0 0.0
    %682 = vmatpush1.xpose.msra.mxu0 0.0
    %683 = vmatprep.subr.mxu0 0.0
    %684 = vmatpush1.xpose.msra.mxu0 0.0
    %685 = vmatprep.subr.mxu0 0.0
    %686 = vmatpush1.xpose.msra.mxu0 0.0
    %687 = vmatprep.subr.mxu0 0.0
    %688 = vmatpush1.xpose.msra.mxu0 0.0
    %689 = vmatprep.subr.mxu0 0.0
    %690 = vmatpush1.xpose.msra.mxu0 0.0
    %691 = vmatprep.subr.mxu0 0.0
    %692 = vmatpush1.xpose.msra.mxu0 0.0
    %693 = vmatprep.subr.mxu0 0.0
    %694 = vmatpush1.xpose.msra.mxu0 0.0
    %695 = vmatprep.subr.mxu0 0.0
    %696 = vmatpush1.xpose.msra.mxu0 0.0
    %697 = vmatprep.subr.mxu0 0.0
    %698 = vmatpush1.xpose.msra.mxu0 0.0
    %699 = vmatprep.subr.mxu0 0.0
    %700 = vmatpush1.xpose.msra.mxu0 0.0
    %701 = vmatprep.subr.mxu0 0.0
    %702 = vmatpush1.xpose.msra.mxu0 0.0
    %703 = vmatprep.subr.mxu0 0.0
    %704 = vmatpush1.xpose.msra.mxu0 0.0
    %705 = vmatprep.subr.mxu0 0.0
    %706 = vmatpush1.xpose.msra.mxu0 0.0
    %707 = vmatprep.subr.mxu0 0.0
    %708 = vmatpush1.xpose.msra.mxu0 0.0
    %709 = vmatprep.subr.mxu0 0.0
    %710 = vmatpush1.xpose.msra.mxu0 0.0
    %711 = vmatprep.subr.mxu0 0.0
    %712 = vmatpush1.xpose.msra.mxu0 0.0
    %713 = vmatprep.subr.mxu0 0.0
    %714 = vmatpush1.xpose.msra.mxu0 0.0
    %715 = vmatprep.subr.mxu0 0.0
    %716 = vmatpush1.xpose.msra.mxu0 0.0
    %717 = vmatprep.subr.mxu0 0.0
    %718 = vmatpush1.xpose.msra.mxu0 0.0
    %719 = vmatprep.subr.mxu0 0.0
    %720 = vmatpush1.xpose.msra.mxu0 0.0
    %721 = vmatprep.subr.mxu0 0.0
    %722 = vmatpush1.xpose.msra.mxu0 0.0
    %723 = vmatprep.mubr.f32.mxu0 0.0
    %724 = vmatmul.mubr.f32.gmra.mrb[0].mxu0 %v651
    %v725 = vpop.f32.mrb[0].mxu0
    %v726 = vadd.f32 %v641, %v725
    %v727 = vpop.f32.mrb[0].mxu0
    %728 = vmatprep.mubr.f32.mxu0 0.0
    %729 = vmatmul.mubr.f32.gmra.mrb[0].mxu0 %v653
    %v730 = vpop.f32.mrb[0].mxu0
    %v731 = vadd.f32 %v642, %v730
    %v732 = vpop.f32.mrb[0].mxu0
    %733 = vdwg.mxu0
    %v734 = vsel %vm329, %v726, -inf
    %735 = vmax.xlane.f32.xlu0 %v734
    %v736 = vpop.xlane.xlu0 %735
    %v737 = vsel %vm329, %v731, -inf
    %738 = vmax.xlane.f32.xlu0 %v737
    %v739 = vpop.xlane.xlu0 %738
    %v740 = vsub.f32 %v726, %v736
    %v741 = vsub.f32 %v731, %v739
    %v742 = vmul.f32 %v740, 1.442695
    %v743 = vpow.pop %v742
    %v744 = vmul.f32 %v741, 1.442695
    %v745 = vpow.pop %v744
    %v746 = vsel %vm329, %v743, 0.0
    %747 = vadd.xlane.f32.xlu0 %v746
    %v748 = vpop.xlane.xlu0 %747
    %v749 = vsel %vm329, %v745, 0.0
    %750 = vadd.xlane.f32.xlu0 %v749
    %v751 = vpop.xlane.xlu0 %750
    %v752 = vrcp.pop %v748
    %v753 = vrcp.pop %v751
    %v754 = vmul.f32 %v743, %v752
    %v755 = vmul.f32 %v745, %v753
    %756 = vrot.lane.b32.xlu0 %v229, 48
    %v757 = vpop.permute.xlu0 %756
    %758 = vrot.lane.b32.xlu0 %v234, 48
    %v759 = vpop.permute.xlu0 %758
    %v763 = vsel %vm329, %v754, 0
    %v766 = vsel %vm329, %v755, 0
    %768 = vmatprep.subr.mxu0 0.0
    %769 = vmatpush1.msra.mxu0 %v757
    %770 = vmatprep.subr.mxu0 0.0
    %771 = vmatpush1.msra.mxu0 %v759
    %772 = vmatprep.subr.mxu0 0.0
    %773 = vmatpush1.msra.mxu0 0.0
    %774 = vmatprep.subr.mxu0 0.0
    %775 = vmatpush1.msra.mxu0 0.0
    %776 = vmatprep.subr.mxu0 0.0
    %777 = vmatpush1.msra.mxu0 0.0
    %778 = vmatprep.subr.mxu0 0.0
    %779 = vmatpush1.msra.mxu0 0.0
    %780 = vmatprep.subr.mxu0 0.0
    %781 = vmatpush1.msra.mxu0 0.0
    %782 = vmatprep.subr.mxu0 0.0
    %783 = vmatpush1.msra.mxu0 0.0
    %784 = vmatprep.subr.mxu0 0.0
    %785 = vmatpush1.msra.mxu0 0.0
    %786 = vmatprep.subr.mxu0 0.0
    %787 = vmatpush1.msra.mxu0 0.0
    %788 = vmatprep.subr.mxu0 0.0
    %789 = vmatpush1.msra.mxu0 0.0
    %790 = vmatprep.subr.mxu0 0.0
    %791 = vmatpush1.msra.mxu0 0.0
    %792 = vmatprep.subr.mxu0 0.0
    %793 = vmatpush1.msra.mxu0 0.0
    %794 = vmatprep.subr.mxu0 0.0
    %795 = vmatpush1.msra.mxu0 0.0
    %796 = vmatprep.subr.mxu0 0.0
    %797 = vmatpush1.msra.mxu0 0.0
    %798 = vmatprep.subr.mxu0 0.0
    %799 = vmatpush1.msra.mxu0 0.0
    %800 = vmatprep.subr.mxu0 0.0
    %801 = vmatpush1.msra.mxu0 0.0
    %802 = vmatprep.subr.mxu0 0.0
    %803 = vmatpush1.msra.mxu0 0.0
    %804 = vmatprep.subr.mxu0 0.0
    %805 = vmatpush1.msra.mxu0 0.0
    %806 = vmatprep.subr.mxu0 0.0
    %807 = vmatpush1.msra.mxu0 0.0
    %808 = vmatprep.subr.mxu0 0.0
    %809 = vmatpush1.msra.mxu0 0.0
    %810 = vmatprep.subr.mxu0 0.0
    %811 = vmatpush1.msra.mxu0 0.0
    %812 = vmatprep.subr.mxu0 0.0
    %813 = vmatpush1.msra.mxu0 0.0
    %814 = vmatprep.subr.mxu0 0.0
    %815 = vmatpush1.msra.mxu0 0.0
    %816 = vmatprep.subr.mxu0 0.0
    %817 = vmatpush1.msra.mxu0 0.0
    %818 = vmatprep.subr.mxu0 0.0
    %819 = vmatpush1.msra.mxu0 0.0
    %820 = vmatprep.subr.mxu0 0.0
    %821 = vmatpush1.msra.mxu0 0.0
    %822 = vmatprep.subr.mxu0 0.0
    %823 = vmatpush1.msra.mxu0 0.0
    %824 = vmatprep.subr.mxu0 0.0
    %825 = vmatpush1.msra.mxu0 0.0
    %826 = vmatprep.subr.mxu0 0.0
    %827 = vmatpush1.msra.mxu0 0.0
    %828 = vmatprep.subr.mxu0 0.0
    %829 = vmatpush1.msra.mxu0 0.0
    %830 = vmatprep.subr.mxu0 0.0
    %831 = vmatpush1.msra.mxu0 0.0
    %832 = vmatprep.mubr.f32.mxu0 0.0
    %833 = vmatmul.mubr.f32.gmra.mrb[0].mxu0 %v763
    %v834 = vpop.f32.mrb[0].mxu0
    %v835 = vadd.f32 0.0, %v834
    %v836 = vpop.f32.mrb[0].mxu0
    %837 = vmatprep.mubr.f32.mxu0 0.0
    %838 = vmatmul.mubr.f32.gmra.mrb[0].mxu0 %v766
    %v839 = vpop.f32.mrb[0].mxu0
    %v840 = vadd.f32 0.0, %v839
    %v841 = vpop.f32.mrb[0].mxu0
    %842 = vdwg.mxu0
    %v843 = vld [vmem:[%s1 + $0x2a8] sm:$0xff]
    %v844 = vld [vmem:[%s1 + $0x2b0] sm:$0xff]
    %845 = vrot.lane.b32.xlu0 %v229, 104
    %v846 = vpop.permute.xlu0 %845
    %847 = vrot.lane.b32.xlu0 %v234, 104
    %v848 = vpop.permute.xlu0 %847
    %849 = vrot.lane.b32.xlu0 %v229, 72
    %v850 = vpop.permute.xlu0 %849
    %851 = vrot.lane.b32.xlu0 %v234, 72
    %v852 = vpop.permute.xlu0 %851
    %v853 = vsel %vm245, %v846, 0
    %v855 = vsel %vm245, %v848, 0
    %v857 = vsel %vm245, %v850, 0
    %v859 = vsel %vm245, %v852, 0
    %861 = vmatprep.subr.mxu0 0.0
    %862 = vmatpush1.xpose.msra.mxu0 %v857
    %863 = vmatprep.subr.mxu0 0.0
    %864 = vmatpush1.xpose.msra.mxu0 %v859
    %865 = vmatprep.subr.mxu0 0.0
    %866 = vmatpush1.xpose.msra.mxu0 0.0
    %867 = vmatprep.subr.mxu0 0.0
    %868 = vmatpush1.xpose.msra.mxu0 0.0
    %869 = vmatprep.subr.mxu0 0.0
    %870 = vmatpush1.xpose.msra.mxu0 0.0
    %871 = vmatprep.subr.mxu0 0.0
    %872 = vmatpush1.xpose.msra.mxu0 0.0
    %873 = vmatprep.subr.mxu0 0.0
    %874 = vmatpush1.xpose.msra.mxu0 0.0
    %875 = vmatprep.subr.mxu0 0.0
    %876 = vmatpush1.xpose.msra.mxu0 0.0
    %877 = vmatprep.subr.mxu0 0.0
    %878 = vmatpush1.xpose.msra.mxu0 0.0
    %879 = vmatprep.subr.mxu0 0.0
    %880 = vmatpush1.xpose.msra.mxu0 0.0
    %881 = vmatprep.subr.mxu0 0.0
    %882 = vmatpush1.xpose.msra.mxu0 0.0
    %883 = vmatprep.subr.mxu0 0.0
    %884 = vmatpush1.xpose.msra.mxu0 0.0
    %885 = vmatprep.subr.mxu0 0.0
    %886 = vmatpush1.xpose.msra.mxu0 0.0
    %887 = vmatprep.subr.mxu0 0.0
    %888 = vmatpush1.xpose.msra.mxu0 0.0
    %889 = vmatprep.subr.mxu0 0.0
    %890 = vmatpush1.xpose.msra.mxu0 0.0
    %891 = vmatprep.subr.mxu0 0.0
    %892 = vmatpush1.xpose.msra.mxu0 0.0
    %893 = vmatprep.subr.mxu0 0.0
    %894 = vmatpush1.xpose.msra.mxu0 0.0
    %895 = vmatprep.subr.mxu0 0.0
    %896 = vmatpush1.xpose.msra.mxu0 0.0
    %897 = vmatprep.subr.mxu0 0.0
    %898 = vmatpush1.xpose.msra.mxu0 0.0
    %899 = vmatprep.subr.mxu0 0.0
    %900 = vmatpush1.xpose.msra.mxu0 0.0
    %901 = vmatprep.subr.mxu0 0.0
    %902 = vmatpush1.xpose.msra.mxu0 0.0
    %903 = vmatprep.subr.mxu0 0.0
    %904 = vmatpush1.xpose.msra.mxu0 0.0
    %905 = vmatprep.subr.mxu0 0.0
    %906 = vmatpush1.xpose.msra.mxu0 0.0
    %907 = vmatprep.subr.mxu0 0.0
    %908 = vmatpush1.xpose.msra.mxu0 0.0
    %909 = vmatprep.subr.mxu0 0.0
    %910 = vmatpush1.xpose.msra.mxu0 0.0
    %911 = vmatprep.subr.mxu0 0.0
    %912 = vmatpush1.xpose.msra.mxu0 0.0
    %913 = vmatprep.subr.mxu0 0.0
    %914 = vmatpush1.xpose.msra.mxu0 0.0
    %915 = vmatprep.subr.mxu0 0.0
    %916 = vmatpush1.xpose.msra.mxu0 0.0
    %917 = vmatprep.subr.mxu0 0.0
    %918 = vmatpush1.xpose.msra.mxu0 0.0
    %919 = vmatprep.subr.mxu0 0.0
    %920 = vmatpush1.xpose.msra.mxu0 0.0
    %921 = vmatprep.subr.mxu0 0.0
    %922 = vmatpush1.xpose.msra.mxu0 0.0
    %923 = vmatprep.subr.mxu0 0.0
    %924 = vmatpush1.xpose.msra.mxu0 0.0
    %925 = vmatprep.mubr.f32.mxu0 0.0
    %926 = vmatmul.mubr.f32.gmra.mrb[0].mxu0 %v853
    %v927 = vpop.f32.mrb[0].mxu0
    %v928 = vadd.f32 %v843, %v927
    %v929 = vpop.f32.mrb[0].mxu0
    %930 = vmatprep.mubr.f32.mxu0 0.0
    %931 = vmatmul.mubr.f32.gmra.mrb[0].mxu0 %v855
    %v932 = vpop.f32.mrb[0].mxu0
    %v933 = vadd.f32 %v844, %v932
    %v934 = vpop.f32.mrb[0].mxu0
    %935 = vdwg.mxu0
    %v936 = vsel %vm329, %v928, -inf
    %937 = vmax.xlane.f32.xlu0 %v936
    %v938 = vpop.xlane.xlu0 %937
    %v939 = vsel %vm329, %v933, -inf
    %940 = vmax.xlane.f32.xlu0 %v939
    %v941 = vpop.xlane.xlu0 %940
    %v942 = vsub.f32 %v928, %v938
    %v943 = vsub.f32 %v933, %v941
    %v944 = vmul.f32 %v942, 1.442695
    %v945 = vpow.pop %v944
    %v946 = vmul.f32 %v943, 1.442695
    %v947 = vpow.pop %v946
    %v948 = vsel %vm329, %v945, 0.0
    %949 = vadd.xlane.f32.xlu0 %v948
    %v950 = vpop.xlane.xlu0 %949
    %v951 = vsel %vm329, %v947, 0.0
    %952 = vadd.xlane.f32.xlu0 %v951
    %v953 = vpop.xlane.xlu0 %952
    %v954 = vrcp.pop %v950
    %v955 = vrcp.pop %v953
    %v956 = vmul.f32 %v945, %v954
    %v957 = vmul.f32 %v947, %v955
    %958 = vrot.lane.b32.xlu0 %v229, 40
    %v959 = vpop.permute.xlu0 %958
    %960 = vrot.lane.b32.xlu0 %v234, 40
    %v961 = vpop.permute.xlu0 %960
    %v965 = vsel %vm329, %v956, 0
    %v968 = vsel %vm329, %v957, 0
    %970 = vmatprep.subr.mxu0 0.0
    %971 = vmatpush1.msra.mxu0 %v959
    %972 = vmatprep.subr.mxu0 0.0
    %973 = vmatpush1.msra.mxu0 %v961
    %974 = vmatprep.subr.mxu0 0.0
    %975 = vmatpush1.msra.mxu0 0.0
    %976 = vmatprep.subr.mxu0 0.0
    %977 = vmatpush1.msra.mxu0 0.0
    %978 = vmatprep.subr.mxu0 0.0
    %979 = vmatpush1.msra.mxu0 0.0
    %980 = vmatprep.subr.mxu0 0.0
    %981 = vmatpush1.msra.mxu0 0.0
    %982 = vmatprep.subr.mxu0 0.0
    %983 = vmatpush1.msra.mxu0 0.0
    %984 = vmatprep.subr.mxu0 0.0
    %985 = vmatpush1.msra.mxu0 0.0
    %986 = vmatprep.subr.mxu0 0.0
    %987 = vmatpush1.msra.mxu0 0.0
    %988 = vmatprep.subr.mxu0 0.0
    %989 = vmatpush1.msra.mxu0 0.0
    %990 = vmatprep.subr.mxu0 0.0
    %991 = vmatpush1.msra.mxu0 0.0
    %992 = vmatprep.subr.mxu0 0.0
    %993 = vmatpush1.msra.mxu0 0.0
    %994 = vmatprep.subr.mxu0 0.0
    %995 = vmatpush1.msra.mxu0 0.0
    %996 = vmatprep.subr.mxu0 0.0
    %997 = vmatpush1.msra.mxu0 0.0
    %998 = vmatprep.subr.mxu0 0.0
    %999 = vmatpush1.msra.mxu0 0.0
    %1000 = vmatprep.subr.mxu0 0.0
    %1001 = vmatpush1.msra.mxu0 0.0
    %1002 = vmatprep.subr.mxu0 0.0
    %1003 = vmatpush1.msra.mxu0 0.0
    %1004 = vmatprep.subr.mxu0 0.0
    %1005 = vmatpush1.msra.mxu0 0.0
    %1006 = vmatprep.subr.mxu0 0.0
    %1007 = vmatpush1.msra.mxu0 0.0
    %1008 = vmatprep.subr.mxu0 0.0
    %1009 = vmatpush1.msra.mxu0 0.0
    %1010 = vmatprep.subr.mxu0 0.0
    %1011 = vmatpush1.msra.mxu0 0.0
    %1012 = vmatprep.subr.mxu0 0.0
    %1013 = vmatpush1.msra.mxu0 0.0
    %1014 = vmatprep.subr.mxu0 0.0
    %1015 = vmatpush1.msra.mxu0 0.0
    %1016 = vmatprep.subr.mxu0 0.0
    %1017 = vmatpush1.msra.mxu0 0.0
    %1018 = vmatprep.subr.mxu0 0.0
    %1019 = vmatpush1.msra.mxu0 0.0
    %1020 = vmatprep.subr.mxu0 0.0
    %1021 = vmatpush1.msra.mxu0 0.0
    %1022 = vmatprep.subr.mxu0 0.0
    %1023 = vmatpush1.msra.mxu0 0.0
    %1024 = vmatprep.subr.mxu0 0.0
    %1025 = vmatpush1.msra.mxu0 0.0
    %1026 = vmatprep.subr.mxu0 0.0
    %1027 = vmatpush1.msra.mxu0 0.0
    %1028 = vmatprep.subr.mxu0 0.0
    %1029 = vmatpush1.msra.mxu0 0.0
    %1030 = vmatprep.subr.mxu0 0.0
    %1031 = vmatpush1.msra.mxu0 0.0
    %1032 = vmatprep.subr.mxu0 0.0
    %1033 = vmatpush1.msra.mxu0 0.0
    %1034 = vmatprep.mubr.f32.mxu0 0.0
    %1035 = vmatmul.mubr.f32.gmra.mrb[0].mxu0 %v965
    %v1036 = vpop.f32.mrb[0].mxu0
    %v1037 = vadd.f32 0.0, %v1036
    %v1038 = vpop.f32.mrb[0].mxu0
    %1039 = vmatprep.mubr.f32.mxu0 0.0
    %1040 = vmatmul.mubr.f32.gmra.mrb[0].mxu0 %v968
    %v1041 = vpop.f32.mrb[0].mxu0
    %v1042 = vadd.f32 0.0, %v1041
    %v1043 = vpop.f32.mrb[0].mxu0
    %1044 = vdwg.mxu0
    %1047 = vrot.lane.b32.xlu0 %v633, 8
    %v1048 = vpop.permute.xlu0 %1047
    %1049 = vrot.lane.b32.xlu0 %v638, 8
    %v1050 = vpop.permute.xlu0 %1049
    %1055 = vrot.lane.b32.xlu0 %v835, 16
    %v1056 = vpop.permute.xlu0 %1055
    %1057 = vrot.lane.b32.xlu0 %v840, 16
    %v1058 = vpop.permute.xlu0 %1057
    %1063 = vrot.lane.b32.xlu0 %v1037, 24
    %v1064 = vpop.permute.xlu0 %1063
    %1065 = vrot.lane.b32.xlu0 %v1042, 24
    %v1066 = vpop.permute.xlu0 %1065
    %v1069 = vsel %vm245, %v431, %v1048
    %v1070 = vsel %vm245, %v436, %v1050
    %v1071 = vsel %vm329, %v1069, %v1056
    %v1072 = vsel %vm329, %v1070, %v1058
    %vm1073 = vcmask 195584
    %v1074 = vsel %vm1073, %v1071, %v1064
    %v1075 = vsel %vm1073, %v1072, %v1066
    %v1076 = vld [vmem:[%s1 + $0xd8] sm:$0xff]
    %v1077 = vld [vmem:[%s1 + $0xe0] sm:$0xff]
    %v1078 = vld [vmem:[%s1 + $0xe8] sm:$0xff]
    %v1079 = vld [vmem:[%s1 + $0xf0] sm:$0xff]
    %v1081 = vsel %vm129, %v1074, 0
    %v1084 = vsel %vm129, %v1075, 0
    %1086 = vmatprep.subr.mxu0 0.0
    %1087 = vmatpush1.msra.mxu0 %v1076
    %1088 = vmatprep.subr.mxu0 0.0
    %1089 = vmatpush1.msra.mxu0 %v1077
    %1090 = vmatprep.subr.mxu0 0.0
    %1091 = vmatpush1.msra.mxu0 %v1078
    %1092 = vmatprep.subr.mxu0 0.0
    %1093 = vmatpush1.msra.mxu0 %v1079
    %1094 = vmatprep.subr.mxu0 0.0
    %1095 = vmatpush1.msra.mxu0 0.0
    %1096 = vmatprep.subr.mxu0 0.0
    %1097 = vmatpush1.msra.mxu0 0.0
    %1098 = vmatprep.subr.mxu0 0.0
    %1099 = vmatpush1.msra.mxu0 0.0
    %1100 = vmatprep.subr.mxu0 0.0
    %1101 = vmatpush1.msra.mxu0 0.0
    %1102 = vmatprep.subr.mxu0 0.0
    %1103 = vmatpush1.msra.mxu0 0.0
    %1104 = vmatprep.subr.mxu0 0.0
    %1105 = vmatpush1.msra.mxu0 0.0
    %1106 = vmatprep.subr.mxu0 0.0
    %1107 = vmatpush1.msra.mxu0 0.0
    %1108 = vmatprep.subr.mxu0 0.0
    %1109 = vmatpush1.msra.mxu0 0.0
    %1110 = vmatprep.subr.mxu0 0.0
    %1111 = vmatpush1.msra.mxu0 0.0
    %1112 = vmatprep.subr.mxu0 0.0
    %1113 = vmatpush1.msra.mxu0 0.0
    %1114 = vmatprep.subr.mxu0 0.0
    %1115 = vmatpush1.msra.mxu0 0.0
    %1116 = vmatprep.subr.mxu0 0.0
    %1117 = vmatpush1.msra.mxu0 0.0
    %1118 = vmatprep.subr.mxu0 0.0
    %1119 = vmatpush1.msra.mxu0 0.0
    %1120 = vmatprep.subr.mxu0 0.0
    %1121 = vmatpush1.msra.mxu0 0.0
    %1122 = vmatprep.subr.mxu0 0.0
    %1123 = vmatpush1.msra.mxu0 0.0
    %1124 = vmatprep.subr.mxu0 0.0
    %1125 = vmatpush1.msra.mxu0 0.0
    %1126 = vmatprep.subr.mxu0 0.0
    %1127 = vmatpush1.msra.mxu0 0.0
    %1128 = vmatprep.subr.mxu0 0.0
    %1129 = vmatpush1.msra.mxu0 0.0
    %1130 = vmatprep.subr.mxu0 0.0
    %1131 = vmatpush1.msra.mxu0 0.0
    %1132 = vmatprep.subr.mxu0 0.0
    %1133 = vmatpush1.msra.mxu0 0.0
    %1134 = vmatprep.subr.mxu0 0.0
    %1135 = vmatpush1.msra.mxu0 0.0
    %1136 = vmatprep.subr.mxu0 0.0
    %1137 = vmatpush1.msra.mxu0 0.0
    %1138 = vmatprep.subr.mxu0 0.0
    %1139 = vmatpush1.msra.mxu0 0.0
    %1140 = vmatprep.subr.mxu0 0.0
    %1141 = vmatpush1.msra.mxu0 0.0
    %1142 = vmatprep.subr.mxu0 0.0
    %1143 = vmatpush1.msra.mxu0 0.0
    %1144 = vmatprep.subr.mxu0 0.0
    %1145 = vmatpush1.msra.mxu0 0.0
    %1146 = vmatprep.subr.mxu0 0.0
    %1147 = vmatpush1.msra.mxu0 0.0
    %1148 = vmatprep.subr.mxu0 0.0
    %1149 = vmatpush1.msra.mxu0 0.0
    %1150 = vmatprep.mubr.f32.mxu0 0.0
    %1151 = vmatmul.mubr.f32.gmra.mrb[0].mxu0 %v1081
    %v1152 = vpop.f32.mrb[0].mxu0
    %v1153 = vadd.f32 0.0, %v1152
    %v1154 = vpop.f32.mrb[0].mxu0
    %1155 = vmatprep.mubr.f32.mxu0 0.0
    %1156 = vmatmul.mubr.f32.gmra.mrb[0].mxu0 %v1084
    %v1157 = vpop.f32.mrb[0].mxu0
    %v1158 = vadd.f32 0.0, %v1157
    %v1159 = vpop.f32.mrb[0].mxu0
    %1160 = vdwg.mxu0
    %v1161 = vadd.f32 %v119, %v1153
    %v1162 = vadd.f32 %v124, %v1158
    %v1163 = vmul.f32 %v1161, %v1161
    %v1164 = vmul.f32 %v1162, %v1162
    %v1165 = vsel %vm129, %v1163, 0.0
    %1166 = vadd.xlane.f32.xlu0 %v1165
    %v1167 = vpop.xlane.xlu0 %1166
    %v1168 = vsel %vm129, %v1164, 0.0
    %1169 = vadd.xlane.f32.xlu0 %v1168
    %v1170 = vpop.xlane.xlu0 %1169
    %v1171 = vmul.f32 %v1167, %v136
    %v1172 = vmul.f32 %v1170, %v136
    %v1173 = vadd.f32 %v1171, 1e-06
    %v1174 = vadd.f32 %v1172, 1e-06
    %v1175 = vrsqrt.pop %v1173
    %v1176 = vrsqrt.pop %v1174
    %v1177 = vmul.f32 %v1161, %v1175
    %v1178 = vmul.f32 %v1162, %v1176
    %v1179 = vld [vmem:[%s1 + $0xa8] sm:$0x1]
    %v1180 = vlaneseq
    %v1181 = vshrl.u32 %v1180, 7
    %v1182 = vsub.s32 0, %v1181
    %v1183 = vrot.slane %v1179, %v1182
    %v1184 = vmul.f32 %v1177, %v1183
    %v1185 = vmul.f32 %v1178, %v1183
    %v1186 = vld [vmem:[%s1 + $0xf8] sm:$0xff]
    %v1187 = vld [vmem:[%s1 + $0x100] sm:$0xff]
    %v1188 = vld [vmem:[%s1 + $0x108] sm:$0xff]
    %v1189 = vld [vmem:[%s1 + $0x110] sm:$0xff]
    %v1191 = vsel %vm129, %v1184, 0
    %v1194 = vsel %vm129, %v1185, 0
    %1196 = vmatprep.subr.mxu0 0.0
    %1197 = vmatpush1.msra.mxu0 %v1186
    %1198 = vmatprep.subr.mxu0 0.0
    %1199 = vmatpush1.msra.mxu0 %v1187
    %1200 = vmatprep.subr.mxu0 0.0
    %1201 = vmatpush1.msra.mxu0 %v1188
    %1202 = vmatprep.subr.mxu0 0.0
    %1203 = vmatpush1.msra.mxu0 %v1189
    %1204 = vmatprep.subr.mxu0 0.0
    %1205 = vmatpush1.msra.mxu0 0.0
    %1206 = vmatprep.subr.mxu0 0.0
    %1207 = vmatpush1.msra.mxu0 0.0
    %1208 = vmatprep.subr.mxu0 0.0
    %1209 = vmatpush1.msra.mxu0 0.0
    %1210 = vmatprep.subr.mxu0 0.0
    %1211 = vmatpush1.msra.mxu0 0.0
    %1212 = vmatprep.subr.mxu0 0.0
    %1213 = vmatpush1.msra.mxu0 0.0
    %1214 = vmatprep.subr.mxu0 0.0
    %1215 = vmatpush1.msra.mxu0 0.0
    %1216 = vmatprep.subr.mxu0 0.0
    %1217 = vmatpush1.msra.mxu0 0.0
    %1218 = vmatprep.subr.mxu0 0.0
    %1219 = vmatpush1.msra.mxu0 0.0
    %1220 = vmatprep.subr.mxu0 0.0
    %1221 = vmatpush1.msra.mxu0 0.0
    %1222 = vmatprep.subr.mxu0 0.0
    %1223 = vmatpush1.msra.mxu0 0.0
    %1224 = vmatprep.subr.mxu0 0.0
    %1225 = vmatpush1.msra.mxu0 0.0
    %1226 = vmatprep.subr.mxu0 0.0
    %1227 = vmatpush1.msra.mxu0 0.0
    %1228 = vmatprep.subr.mxu0 0.0
    %1229 = vmatpush1.msra.mxu0 0.0
    %1230 = vmatprep.subr.mxu0 0.0
    %1231 = vmatpush1.msra.mxu0 0.0
    %1232 = vmatprep.subr.mxu0 0.0
    %1233 = vmatpush1.msra.mxu0 0.0
    %1234 = vmatprep.subr.mxu0 0.0
    %1235 = vmatpush1.msra.mxu0 0.0
    %1236 = vmatprep.subr.mxu0 0.0
    %1237 = vmatpush1.msra.mxu0 0.0
    %1238 = vmatprep.subr.mxu0 0.0
    %1239 = vmatpush1.msra.mxu0 0.0
    %1240 = vmatprep.subr.mxu0 0.0
    %1241 = vmatpush1.msra.mxu0 0.0
    %1242 = vmatprep.subr.mxu0 0.0
    %1243 = vmatpush1.msra.mxu0 0.0
    %1244 = vmatprep.subr.mxu0 0.0
    %1245 = vmatpush1.msra.mxu0 0.0
    %1246 = vmatprep.subr.mxu0 0.0
    %1247 = vmatpush1.msra.mxu0 0.0
    %1248 = vmatprep.subr.mxu0 0.0
    %1249 = vmatpush1.msra.mxu0 0.0
    %1250 = vmatprep.subr.mxu0 0.0
    %1251 = vmatpush1.msra.mxu0 0.0
    %1252 = vmatprep.subr.mxu0 0.0
    %1253 = vmatpush1.msra.mxu0 0.0
    %1254 = vmatprep.subr.mxu0 0.0
    %1255 = vmatpush1.msra.mxu0 0.0
    %1256 = vmatprep.subr.mxu0 0.0
    %1257 = vmatpush1.msra.mxu0 0.0
    %1258 = vmatprep.subr.mxu0 0.0
    %1259 = vmatpush1.msra.mxu0 0.0
    %1260 = vmatprep.mubr.f32.mxu0 0.0
    %1261 = vmatmul.mubr.f32.gmra.mrb[0].mxu0 %v1191
    %v1262 = vpop.f32.mrb[0].mxu0
    %v1263 = vadd.f32 0.0, %v1262
    %v1264 = vpop.f32.mrb[0].mxu0
    %1265 = vmatprep.mubr.f32.mxu0 0.0
    %1266 = vmatmul.mubr.f32.gmra.mrb[0].mxu0 %v1194
    %v1267 = vpop.f32.mrb[0].mxu0
    %v1268 = vadd.f32 0.0, %v1267
    %v1269 = vpop.f32.mrb[0].mxu0
    %1270 = vdwg.mxu0
    %v1271 = vmax.f32 %v1263, 0.0
    %v1272 = vmax.f32 %v1268, 0.0
    %v1273 = vld [vmem:[%s1 + $0x118] sm:$0xff]
    %v1274 = vld [vmem:[%s1 + $0x120] sm:$0xff]
    %v1275 = vld [vmem:[%s1 + $0x128] sm:$0xff]
    %v1276 = vld [vmem:[%s1 + $0x130] sm:$0xff]
    %v1277 = vld [vmem:[%s1 + $0x138] sm:$0xff]
    %v1278 = vld [vmem:[%s1 + $0x140] sm:$0xff]
    %v1279 = vld [vmem:[%s1 + $0x148] sm:$0xff]
    %v1280 = vld [vmem:[%s1 + $0x150] sm:$0xff]
    %vm1281 = vcmask 523264
    %v1283 = vsel %vm1281, %v1271, 0
    %v1286 = vsel %vm1281, %v1272, 0
    %1288 = vmatprep.subr.mxu0 0.0
    %1289 = vmatpush1.msra.mxu0 %v1273
    %1290 = vmatprep.subr.mxu0 0.0
    %1291 = vmatpush1.msra.mxu0 %v1274
    %1292 = vmatprep.subr.mxu0 0.0
    %1293 = vmatpush1.msra.mxu0 %v1275
    %1294 = vmatprep.subr.mxu0 0.0
    %1295 = vmatpush1.msra.mxu0 %v1276
    %1296 = vmatprep.subr.mxu0 0.0
    %1297 = vmatpush1.msra.mxu0 %v1277
    %1298 = vmatprep.subr.mxu0 0.0
    %1299 = vmatpush1.msra.mxu0 %v1278
    %1300 = vmatprep.subr.mxu0 0.0
    %1301 = vmatpush1.msra.mxu0 %v1279
    %1302 = vmatprep.subr.mxu0 0.0
    %1303 = vmatpush1.msra.mxu0 %v1280
    %1304 = vmatprep.subr.mxu0 0.0
    %1305 = vmatpush1.msra.mxu0 0.0
    %1306 = vmatprep.subr.mxu0 0.0
    %1307 = vmatpush1.msra.mxu0 0.0
    %1308 = vmatprep.subr.mxu0 0.0
    %1309 = vmatpush1.msra.mxu0 0.0
    %1310 = vmatprep.subr.mxu0 0.0
    %1311 = vmatpush1.msra.mxu0 0.0
    %1312 = vmatprep.subr.mxu0 0.0
    %1313 = vmatpush1.msra.mxu0 0.0
    %1314 = vmatprep.subr.mxu0 0.0
    %1315 = vmatpush1.msra.mxu0 0.0
    %1316 = vmatprep.subr.mxu0 0.0
    %1317 = vmatpush1.msra.mxu0 0.0
    %1318 = vmatprep.subr.mxu0 0.0
    %1319 = vmatpush1.msra.mxu0 0.0
    %1320 = vmatprep.subr.mxu0 0.0
    %1321 = vmatpush1.msra.mxu0 0.0
    %1322 = vmatprep.subr.mxu0 0.0
    %1323 = vmatpush1.msra.mxu0 0.0
    %1324 = vmatprep.subr.mxu0 0.0
    %1325 = vmatpush1.msra.mxu0 0.0
    %1326 = vmatprep.subr.mxu0 0.0
    %1327 = vmatpush1.msra.mxu0 0.0
    %1328 = vmatprep.subr.mxu0 0.0
    %1329 = vmatpush1.msra.mxu0 0.0
    %1330 = vmatprep.subr.mxu0 0.0
    %1331 = vmatpush1.msra.mxu0 0.0
    %1332 = vmatprep.subr.mxu0 0.0
    %1333 = vmatpush1.msra.mxu0 0.0
    %1334 = vmatprep.subr.mxu0 0.0
    %1335 = vmatpush1.msra.mxu0 0.0
    %1336 = vmatprep.subr.mxu0 0.0
    %1337 = vmatpush1.msra.mxu0 0.0
    %1338 = vmatprep.subr.mxu0 0.0
    %1339 = vmatpush1.msra.mxu0 0.0
    %1340 = vmatprep.subr.mxu0 0.0
    %1341 = vmatpush1.msra.mxu0 0.0
    %1342 = vmatprep.subr.mxu0 0.0
    %1343 = vmatpush1.msra.mxu0 0.0
    %1344 = vmatprep.subr.mxu0 0.0
    %1345 = vmatpush1.msra.mxu0 0.0
    %1346 = vmatprep.subr.mxu0 0.0
    %1347 = vmatpush1.msra.mxu0 0.0
    %1348 = vmatprep.subr.mxu0 0.0
    %1349 = vmatpush1.msra.mxu0 0.0
    %1350 = vmatprep.subr.mxu0 0.0
    %1351 = vmatpush1.msra.mxu0 0.0
    %1352 = vmatprep.mubr.f32.mxu0 0.0
    %1353 = vmatmul.mubr.f32.gmra.mrb[0].mxu0 %v1283
    %v1354 = vpop.f32.mrb[0].mxu0
    %v1355 = vadd.f32 0.0, %v1354
    %v1356 = vpop.f32.mrb[0].mxu0
    %1357 = vmatprep.mubr.f32.mxu0 0.0
    %1358 = vmatmul.mubr.f32.gmra.mrb[0].mxu0 %v1286
    %v1359 = vpop.f32.mrb[0].mxu0
    %v1360 = vadd.f32 0.0, %v1359
    %v1361 = vpop.f32.mrb[0].mxu0
    %1362 = vdwg.mxu0
    %v1363 = vadd.f32 %v1161, %v1355
    %v1364 = vadd.f32 %v1162, %v1360
    %v1365 = vmul.f32 %v1363, %v1363
    %v1366 = vmul.f32 %v1364, %v1364
    %v1367 = vsel %vm129, %v1365, 0.0
    %1368 = vadd.xlane.f32.xlu0 %v1367
    %v1369 = vpop.xlane.xlu0 %1368
    %v1370 = vsel %vm129, %v1366, 0.0
    %1371 = vadd.xlane.f32.xlu0 %v1370
    %v1372 = vpop.xlane.xlu0 %1371
    %v1373 = vmul.f32 %v1369, %v136
    %v1374 = vmul.f32 %v1372, %v136
    %v1375 = vadd.f32 %v1373, 1e-06
    %v1376 = vadd.f32 %v1374, 1e-06
    %v1377 = vrsqrt.pop %v1375
    %v1378 = vrsqrt.pop %v1376
    %v1379 = vmul.f32 %v1363, %v1377
    %v1380 = vmul.f32 %v1364, %v1378
    %v1381 = vld [vmem:[%s1 + $0xb0] sm:$0x1]
    %v1382 = vlaneseq
    %v1383 = vshrl.u32 %v1382, 7
    %v1384 = vsub.s32 0, %v1383
    %v1385 = vrot.slane %v1381, %v1384
    %v1386 = vmul.f32 %v1379, %v1385
    %v1387 = vmul.f32 %v1380, %v1385
    %1388 = vset.pattern.permute.xlu0 0
    %1389 = vperm.xlu0 %1388, %v34
    %v1390 = vpop.permute.xlu0 %1389
    %1391 = vset.pattern.permute.xlu0 0
    %1392 = vperm.xlu0 %1391, %v35
    %v1393 = vpop.permute.xlu0 %1392
    %vm1394 = vcmp.eq.s32.totalorder %v39, %v1390
    %vm1395 = vcmp.eq.s32.totalorder %v39, %v1393
    %v1396 = vsel %vm1394, 1, 0
    %v1397 = vsel %vm1395, 1, 0
    %v1398 = vcvt.s32.f32 %v1396
    %v1399 = vcvt.s32.f32 %v1397
    %1400 = vmatprep.subr.mxu0 0.0
    %1401 = vmatpush1.msra.mxu0 %v12
    %1402 = vmatprep.subr.mxu0 0.0
    %1403 = vmatpush1.msra.mxu0 %v13
    %1404 = vmatprep.subr.mxu0 0.0
    %1405 = vmatpush1.msra.mxu0 %v14
    %1406 = vmatprep.subr.mxu0 0.0
    %1407 = vmatpush1.msra.mxu0 %v15
    %1408 = vmatprep.subr.mxu0 0.0
    %1409 = vmatpush1.msra.mxu0 %v16
    %1410 = vmatprep.subr.mxu0 0.0
    %1411 = vmatpush1.msra.mxu0 %v17
    %1412 = vmatprep.subr.mxu0 0.0
    %1413 = vmatpush1.msra.mxu0 %v18
    %1414 = vmatprep.subr.mxu0 0.0
    %1415 = vmatpush1.msra.mxu0 %v19
    %1416 = vmatprep.subr.mxu0 0.0
    %1417 = vmatpush1.msra.mxu0 %v20
    %1418 = vmatprep.subr.mxu0 0.0
    %1419 = vmatpush1.msra.mxu0 %v21
    %1420 = vmatprep.subr.mxu0 0.0
    %1421 = vmatpush1.msra.mxu0 %v22
    %1422 = vmatprep.subr.mxu0 0.0
    %1423 = vmatpush1.msra.mxu0 %v23
    %1424 = vmatprep.subr.mxu0 0.0
    %1425 = vmatpush1.msra.mxu0 %v24
    %1426 = vmatprep.subr.mxu0 0.0
    %1427 = vmatpush1.msra.mxu0 %v25
    %1428 = vmatprep.subr.mxu0 0.0
    %1429 = vmatpush1.msra.mxu0 %v26
    %1430 = vmatprep.subr.mxu0 0.0
    %1431 = vmatpush1.msra.mxu0 %v27
    %1432 = vmatprep.subr.mxu0 0.0
    %1433 = vmatpush1.msra.mxu0 0.0
    %1434 = vmatprep.subr.mxu0 0.0
    %1435 = vmatpush1.msra.mxu0 0.0
    %1436 = vmatprep.subr.mxu0 0.0
    %1437 = vmatpush1.msra.mxu0 0.0
    %1438 = vmatprep.subr.mxu0 0.0
    %1439 = vmatpush1.msra.mxu0 0.0
    %1440 = vmatprep.subr.mxu0 0.0
    %1441 = vmatpush1.msra.mxu0 0.0
    %1442 = vmatprep.subr.mxu0 0.0
    %1443 = vmatpush1.msra.mxu0 0.0
    %1444 = vmatprep.subr.mxu0 0.0
    %1445 = vmatpush1.msra.mxu0 0.0
    %1446 = vmatprep.subr.mxu0 0.0
    %1447 = vmatpush1.msra.mxu0 0.0
    %1448 = vmatprep.subr.mxu0 0.0
    %1449 = vmatpush1.msra.mxu0 0.0
    %1450 = vmatprep.subr.mxu0 0.0
    %1451 = vmatpush1.msra.mxu0 0.0
    %1452 = vmatprep.subr.mxu0 0.0
    %1453 = vmatpush1.msra.mxu0 0.0
    %1454 = vmatprep.subr.mxu0 0.0
    %1455 = vmatpush1.msra.mxu0 0.0
    %1456 = vmatprep.subr.mxu0 0.0
    %1457 = vmatpush1.msra.mxu0 0.0
    %1458 = vmatprep.subr.mxu0 0.0
    %1459 = vmatpush1.msra.mxu0 0.0
    %1460 = vmatprep.subr.mxu0 0.0
    %1461 = vmatpush1.msra.mxu0 0.0
    %1462 = vmatprep.subr.mxu0 0.0
    %1463 = vmatpush1.msra.mxu0 0.0
    %1464 = vmatprep.mubr.f32.mxu0 0.0
    %1465 = vmatmul.mubr.f32.gmra.mrb[0].mxu0 %v1398
    %v1466 = vpop.f32.mrb[0].mxu0
    %v1467 = vadd.f32 0.0, %v1466
    %v1468 = vpop.f32.mrb[0].mxu0
    %1469 = vmatprep.mubr.f32.mxu0 0.0
    %1470 = vmatmul.mubr.f32.gmra.mrb[0].mxu0 %v1399
    %v1471 = vpop.f32.mrb[0].mxu0
    %v1472 = vadd.f32 0.0, %v1471
    %v1473 = vpop.f32.mrb[0].mxu0
    %1474 = vdwg.mxu0
    %v1475 = vmul.f32 %v1467, %v1467
    %v1476 = vmul.f32 %v1472, %v1472
    %v1477 = vsel %vm129, %v1475, 0.0
    %1478 = vadd.xlane.f32.xlu0 %v1477
    %v1479 = vpop.xlane.xlu0 %1478
    %v1480 = vsel %vm129, %v1476, 0.0
    %1481 = vadd.xlane.f32.xlu0 %v1480
    %v1482 = vpop.xlane.xlu0 %1481
    %v1483 = vmul.f32 %v1479, %v136
    %v1484 = vmul.f32 %v1482, %v136
    %v1485 = vadd.f32 %v1483, 1e-06
    %v1486 = vadd.f32 %v1484, 1e-06
    %v1487 = vrsqrt.pop %v1485
    %v1488 = vrsqrt.pop %v1486
    %v1489 = vmul.f32 %v1467, %v1487
    %v1490 = vmul.f32 %v1472, %v1488
    %v1491 = vld [vmem:[%s1 + $0x158] sm:$0x1]
    %v1492 = vlaneseq
    %v1493 = vshrl.u32 %v1492, 7
    %v1494 = vsub.s32 0, %v1493
    %v1495 = vrot.slane %v1491, %v1494
    %v1496 = vmul.f32 %v1489, %v1495
    %v1497 = vmul.f32 %v1490, %v1495
    %v1498 = vld [vmem:[%s1 + $0x178] sm:$0xff]
    %v1499 = vld [vmem:[%s1 + $0x180] sm:$0xff]
    %v1500 = vld [vmem:[%s1 + $0x188] sm:$0xff]
    %v1501 = vld [vmem:[%s1 + $0x190] sm:$0xff]
    %v1503 = vsel %vm129, %v1496, 0
    %v1506 = vsel %vm129, %v1497, 0
    %1508 = vmatprep.subr.mxu0 0.0
    %1509 = vmatpush1.msra.mxu0 %v1498
    %1510 = vmatprep.subr.mxu0 0.0
    %1511 = vmatpush1.msra.mxu0 %v1499
    %1512 = vmatprep.subr.mxu0 0.0
    %1513 = vmatpush1.msra.mxu0 %v1500
    %1514 = vmatprep.subr.mxu0 0.0
    %1515 = vmatpush1.msra.mxu0 %v1501
    %1516 = vmatprep.subr.mxu0 0.0
    %1517 = vmatpush1.msra.mxu0 0.0
    %1518 = vmatprep.subr.mxu0 0.0
    %1519 = vmatpush1.msra.mxu0 0.0
    %1520 = vmatprep.subr.mxu0 0.0
    %1521 = vmatpush1.msra.mxu0 0.0
    %1522 = vmatprep.subr.mxu0 0.0
    %1523 = vmatpush1.msra.mxu0 0.0
    %1524 = vmatprep.subr.mxu0 0.0
    %1525 = vmatpush1.msra.mxu0 0.0
    %1526 = vmatprep.subr.mxu0 0.0
    %1527 = vmatpush1.msra.mxu0 0.0
    %1528 = vmatprep.subr.mxu0 0.0
    %1529 = vmatpush1.msra.mxu0 0.0
    %1530 = vmatprep.subr.mxu0 0.0
    %1531 = vmatpush1.msra.mxu0 0.0
    %1532 = vmatprep.subr.mxu0 0.0
    %1533 = vmatpush1.msra.mxu0 0.0
    %1534 = vmatprep.subr.mxu0 0.0
    %1535 = vmatpush1.msra.mxu0 0.0
    %1536 = vmatprep.subr.mxu0 0.0
    %1537 = vmatpush1.msra.mxu0 0.0
    %1538 = vmatprep.subr.mxu0 0.0
    %1539 = vmatpush1.msra.mxu0 0.0
    %1540 = vmatprep.subr.mxu0 0.0
    %1541 = vmatpush1.msra.mxu0 0.0
    %1542 = vmatprep.subr.mxu0 0.0
    %1543 = vmatpush1.msra.mxu0 0.0
    %1544 = vmatprep.subr.mxu0 0.0
    %1545 = vmatpush1.msra.mxu0 0.0
    %1546 = vmatprep.subr.mxu0 0.0
    %1547 = vmatpush1.msra.mxu0 0.0
    %1548 = vmatprep.subr.mxu0 0.0
    %1549 = vmatpush1.msra.mxu0 0.0
    %1550 = vmatprep.subr.mxu0 0.0
    %1551 = vmatpush1.msra.mxu0 0.0
    %1552 = vmatprep.subr.mxu0 0.0
    %1553 = vmatpush1.msra.mxu0 0.0
    %1554 = vmatprep.subr.mxu0 0.0
    %1555 = vmatpush1.msra.mxu0 0.0
    %1556 = vmatprep.subr.mxu0 0.0
    %1557 = vmatpush1.msra.mxu0 0.0
    %1558 = vmatprep.subr.mxu0 0.0
    %1559 = vmatpush1.msra.mxu0 0.0
    %1560 = vmatprep.subr.mxu0 0.0
    %1561 = vmatpush1.msra.mxu0 0.0
    %1562 = vmatprep.subr.mxu0 0.0
    %1563 = vmatpush1.msra.mxu0 0.0
    %1564 = vmatprep.subr.mxu0 0.0
    %1565 = vmatpush1.msra.mxu0 0.0
    %1566 = vmatprep.subr.mxu0 0.0
    %1567 = vmatpush1.msra.mxu0 0.0
    %1568 = vmatprep.subr.mxu0 0.0
    %1569 = vmatpush1.msra.mxu0 0.0
    %1570 = vmatprep.subr.mxu0 0.0
    %1571 = vmatpush1.msra.mxu0 0.0
    %1572 = vmatprep.mubr.f32.mxu0 0.0
    %1573 = vmatmul.mubr.f32.gmra.mrb[0].mxu0 %v1503
    %v1574 = vpop.f32.mrb[0].mxu0
    %v1575 = vadd.f32 0.0, %v1574
    %v1576 = vpop.f32.mrb[0].mxu0
    %1577 = vmatprep.mubr.f32.mxu0 0.0
    %1578 = vmatmul.mubr.f32.gmra.mrb[0].mxu0 %v1506
    %v1579 = vpop.f32.mrb[0].mxu0
    %v1580 = vadd.f32 0.0, %v1579
    %v1581 = vpop.f32.mrb[0].mxu0
    %1582 = vdwg.mxu0
    %v1583 = vld [vmem:[%s1 + $0x2b8] sm:$0xff]
    %v1584 = vld [vmem:[%s1 + $0x2c0] sm:$0xff]
    %1587 = vrot.lane.b32.xlu0 %v1575, 96
    %v1588 = vpop.permute.xlu0 %1587
    %1589 = vrot.lane.b32.xlu0 %v1580, 96
    %v1590 = vpop.permute.xlu0 %1589
    %v1591 = vsel %vm245, %v1575, 0
    %v1593 = vsel %vm245, %v1580, 0
    %v1595 = vsel %vm245, %v1588, 0
    %v1597 = vsel %vm245, %v1590, 0
    %1599 = vmatprep.subr.mxu0 0.0
    %1600 = vmatpush1.xpose.msra.mxu0 %v1595
    %1601 = vmatprep.subr.mxu0 0.0
    %1602 = vmatpush1.xpose.msra.mxu0 %v1597
    %1603 = vmatprep.subr.mxu0 0.0
    %1604 = vmatpush1.xpose.msra.mxu0 0.0
    %1605 = vmatprep.subr.mxu0 0.0
    %1606 = vmatpush1.xpose.msra.mxu0 0.0
    %1607 = vmatprep.subr.mxu0 0.0
    %1608 = vmatpush1.xpose.msra.mxu0 0.0
    %1609 = vmatprep.subr.mxu0 0.0
    %1610 = vmatpush1.xpose.msra.mxu0 0.0
    %1611 = vmatprep.subr.mxu0 0.0
    %1612 = vmatpush1.xpose.msra.mxu0 0.0
    %1613 = vmatprep.subr.mxu0 0.0
    %1614 = vmatpush1.xpose.msra.mxu0 0.0
    %1615 = vmatprep.subr.mxu0 0.0
    %1616 = vmatpush1.xpose.msra.mxu0 0.0
    %1617 = vmatprep.subr.mxu0 0.0
    %1618 = vmatpush1.xpose.msra.mxu0 0.0
    %1619 = vmatprep.subr.mxu0 0.0
    %1620 = vmatpush1.xpose.msra.mxu0 0.0
    %1621 = vmatprep.subr.mxu0 0.0
    %1622 = vmatpush1.xpose.msra.mxu0 0.0
    %1623 = vmatprep.subr.mxu0 0.0
    %1624 = vmatpush1.xpose.msra.mxu0 0.0
    %1625 = vmatprep.subr.mxu0 0.0
    %1626 = vmatpush1.xpose.msra.mxu0 0.0
    %1627 = vmatprep.subr.mxu0 0.0
    %1628 = vmatpush1.xpose.msra.mxu0 0.0
    %1629 = vmatprep.subr.mxu0 0.0
    %1630 = vmatpush1.xpose.msra.mxu0 0.0
    %1631 = vmatprep.subr.mxu0 0.0
    %1632 = vmatpush1.xpose.msra.mxu0 0.0
    %1633 = vmatprep.subr.mxu0 0.0
    %1634 = vmatpush1.xpose.msra.mxu0 0.0
    %1635 = vmatprep.subr.mxu0 0.0
    %1636 = vmatpush1.xpose.msra.mxu0 0.0
    %1637 = vmatprep.subr.mxu0 0.0
    %1638 = vmatpush1.xpose.msra.mxu0 0.0
    %1639 = vmatprep.subr.mxu0 0.0
    %1640 = vmatpush1.xpose.msra.mxu0 0.0
    %1641 = vmatprep.subr.mxu0 0.0
    %1642 = vmatpush1.xpose.msra.mxu0 0.0
    %1643 = vmatprep.subr.mxu0 0.0
    %1644 = vmatpush1.xpose.msra.mxu0 0.0
    %1645 = vmatprep.subr.mxu0 0.0
    %1646 = vmatpush1.xpose.msra.mxu0 0.0
    %1647 = vmatprep.subr.mxu0 0.0
    %1648 = vmatpush1.xpose.msra.mxu0 0.0
    %1649 = vmatprep.subr.mxu0 0.0
    %1650 = vmatpush1.xpose.msra.mxu0 0.0
    %1651 = vmatprep.subr.mxu0 0.0
    %1652 = vmatpush1.xpose.msra.mxu0 0.0
    %1653 = vmatprep.subr.mxu0 0.0
    %1654 = vmatpush1.xpose.msra.mxu0 0.0
    %1655 = vmatprep.subr.mxu0 0.0
    %1656 = vmatpush1.xpose.msra.mxu0 0.0
    %1657 = vmatprep.subr.mxu0 0.0
    %1658 = vmatpush1.xpose.msra.mxu0 0.0
    %1659 = vmatprep.subr.mxu0 0.0
    %1660 = vmatpush1.xpose.msra.mxu0 0.0
    %1661 = vmatprep.subr.mxu0 0.0
    %1662 = vmatpush1.xpose.msra.mxu0 0.0
    %1663 = vmatprep.mubr.f32.mxu0 0.0
    %1664 = vmatmul.mubr.f32.gmra.mrb[0].mxu0 %v1591
    %v1665 = vpop.f32.mrb[0].mxu0
    %v1666 = vadd.f32 %v1583, %v1665
    %v1667 = vpop.f32.mrb[0].mxu0
    %1668 = vmatprep.mubr.f32.mxu0 0.0
    %1669 = vmatmul.mubr.f32.gmra.mrb[0].mxu0 %v1593
    %v1670 = vpop.f32.mrb[0].mxu0
    %v1671 = vadd.f32 %v1584, %v1670
    %v1672 = vpop.f32.mrb[0].mxu0
    %1673 = vdwg.mxu0
    %v1674 = vsel %vm329, %v1666, -inf
    %1675 = vmax.xlane.f32.xlu0 %v1674
    %v1676 = vpop.xlane.xlu0 %1675
    %v1677 = vsel %vm329, %v1671, -inf
    %1678 = vmax.xlane.f32.xlu0 %v1677
    %v1679 = vpop.xlane.xlu0 %1678
    %v1680 = vsub.f32 %v1666, %v1676
    %v1681 = vsub.f32 %v1671, %v1679
    %v1682 = vmul.f32 %v1680, 1.442695
    %v1683 = vpow.pop %v1682
    %v1684 = vmul.f32 %v1681, 1.442695
    %v1685 = vpow.pop %v1684
    %v1686 = vsel %vm329, %v1683, 0.0
    %1687 = vadd.xlane.f32.xlu0 %v1686
    %v1688 = vpop.xlane.xlu0 %1687
    %v1689 = vsel %vm329, %v1685, 0.0
    %1690 = vadd.xlane.f32.xlu0 %v1689
    %v1691 = vpop.xlane.xlu0 %1690
    %v1692 = vrcp.pop %v1688
    %v1693 = vrcp.pop %v1691
    %v1694 = vmul.f32 %v1683, %v1692
    %v1695 = vmul.f32 %v1685, %v1693
    %1696 = vrot.lane.b32.xlu0 %v1575, 64
    %v1697 = vpop.permute.xlu0 %1696
    %1698 = vrot.lane.b32.xlu0 %v1580, 64
    %v1699 = vpop.permute.xlu0 %1698
    %v1703 = vsel %vm329, %v1694, 0
    %v1706 = vsel %vm329, %v1695, 0
    %1708 = vmatprep.subr.mxu0 0.0
    %1709 = vmatpush1.msra.mxu0 %v1697
    %1710 = vmatprep.subr.mxu0 0.0
    %1711 = vmatpush1.msra.mxu0 %v1699
    %1712 = vmatprep.subr.mxu0 0.0
    %1713 = vmatpush1.msra.mxu0 0.0
    %1714 = vmatprep.subr.mxu0 0.0
    %1715 = vmatpush1.msra.mxu0 0.0
    %1716 = vmatprep.subr.mxu0 0.0
    %1717 = vmatpush1.msra.mxu0 0.0
    %1718 = vmatprep.subr.mxu0 0.0
    %1719 = vmatpush1.msra.mxu0 0.0
    %1720 = vmatprep.subr.mxu0 0.0
    %1721 = vmatpush1.msra.mxu0 0.0
    %1722 = vmatprep.subr.mxu0 0.0
    %1723 = vmatpush1.msra.mxu0 0.0
    %1724 = vmatprep.subr.mxu0 0.0
    %1725 = vmatpush1.msra.mxu0 0.0
    %1726 = vmatprep.subr.mxu0 0.0
    %1727 = vmatpush1.msra.mxu0 0.0
    %1728 = vmatprep.subr.mxu0 0.0
    %1729 = vmatpush1.msra.mxu0 0.0
    %1730 = vmatprep.subr.mxu0 0.0
    %1731 = vmatpush1.msra.mxu0 0.0
    %1732 = vmatprep.subr.mxu0 0.0
    %1733 = vmatpush1.msra.mxu0 0.0
    %1734 = vmatprep.subr.mxu0 0.0
    %1735 = vmatpush1.msra.mxu0 0.0
    %1736 = vmatprep.subr.mxu0 0.0
    %1737 = vmatpush1.msra.mxu0 0.0
    %1738 = vmatprep.subr.mxu0 0.0
    %1739 = vmatpush1.msra.mxu0 0.0
    %1740 = vmatprep.subr.mxu0 0.0
    %1741 = vmatpush1.msra.mxu0 0.0
    %1742 = vmatprep.subr.mxu0 0.0
    %1743 = vmatpush1.msra.mxu0 0.0
    %1744 = vmatprep.subr.mxu0 0.0
    %1745 = vmatpush1.msra.mxu0 0.0
    %1746 = vmatprep.subr.mxu0 0.0
    %1747 = vmatpush1.msra.mxu0 0.0
    %1748 = vmatprep.subr.mxu0 0.0
    %1749 = vmatpush1.msra.mxu0 0.0
    %1750 = vmatprep.subr.mxu0 0.0
    %1751 = vmatpush1.msra.mxu0 0.0
    %1752 = vmatprep.subr.mxu0 0.0
    %1753 = vmatpush1.msra.mxu0 0.0
    %1754 = vmatprep.subr.mxu0 0.0
    %1755 = vmatpush1.msra.mxu0 0.0
    %1756 = vmatprep.subr.mxu0 0.0
    %1757 = vmatpush1.msra.mxu0 0.0
    %1758 = vmatprep.subr.mxu0 0.0
    %1759 = vmatpush1.msra.mxu0 0.0
    %1760 = vmatprep.subr.mxu0 0.0
    %1761 = vmatpush1.msra.mxu0 0.0
    %1762 = vmatprep.subr.mxu0 0.0
    %1763 = vmatpush1.msra.mxu0 0.0
    %1764 = vmatprep.subr.mxu0 0.0
    %1765 = vmatpush1.msra.mxu0 0.0
    %1766 = vmatprep.subr.mxu0 0.0
    %1767 = vmatpush1.msra.mxu0 0.0
    %1768 = vmatprep.subr.mxu0 0.0
    %1769 = vmatpush1.msra.mxu0 0.0
    %1770 = vmatprep.subr.mxu0 0.0
    %1771 = vmatpush1.msra.mxu0 0.0
    %1772 = vmatprep.mubr.f32.mxu0 0.0
    %1773 = vmatmul.mubr.f32.gmra.mrb[0].mxu0 %v1703
    %v1774 = vpop.f32.mrb[0].mxu0
    %v1775 = vadd.f32 0.0, %v1774
    %v1776 = vpop.f32.mrb[0].mxu0
    %1777 = vmatprep.mubr.f32.mxu0 0.0
    %1778 = vmatmul.mubr.f32.gmra.mrb[0].mxu0 %v1706
    %v1779 = vpop.f32.mrb[0].mxu0
    %v1780 = vadd.f32 0.0, %v1779
    %v1781 = vpop.f32.mrb[0].mxu0
    %1782 = vdwg.mxu0
    %v1783 = vld [vmem:[%s1 + $0x2c8] sm:$0xff]
    %v1784 = vld [vmem:[%s1 + $0x2d0] sm:$0xff]
    %1785 = vrot.lane.b32.xlu0 %v1575, 120
    %v1786 = vpop.permute.xlu0 %1785
    %1787 = vrot.lane.b32.xlu0 %v1580, 120
    %v1788 = vpop.permute.xlu0 %1787
    %1789 = vrot.lane.b32.xlu0 %v1575, 88
    %v1790 = vpop.permute.xlu0 %1789
    %1791 = vrot.lane.b32.xlu0 %v1580, 88
    %v1792 = vpop.permute.xlu0 %1791
    %v1793 = vsel %vm245, %v1786, 0
    %v1795 = vsel %vm245, %v1788, 0
    %v1797 = vsel %vm245, %v1790, 0
    %v1799 = vsel %vm245, %v1792, 0
    %1801 = vmatprep.subr.mxu0 0.0
    %1802 = vmatpush1.xpose.msra.mxu0 %v1797
    %1803 = vmatprep.subr.mxu0 0.0
    %1804 = vmatpush1.xpose.msra.mxu0 %v1799
    %1805 = vmatprep.subr.mxu0 0.0
    %1806 = vmatpush1.xpose.msra.mxu0 0.0
    %1807 = vmatprep.subr.mxu0 0.0
    %1808 = vmatpush1.xpose.msra.mxu0 0.0
    %1809 = vmatprep.subr.mxu0 0.0
    %1810 = vmatpush1.xpose.msra.mxu0 0.0
    %1811 = vmatprep.subr.mxu0 0.0
    %1812 = vmatpush1.xpose.msra.mxu0 0.0
    %1813 = vmatprep.subr.mxu0 0.0
    %1814 = vmatpush1.xpose.msra.mxu0 0.0
    %1815 = vmatprep.subr.mxu0 0.0
    %1816 = vmatpush1.xpose.msra.mxu0 0.0
    %1817 = vmatprep.subr.mxu0 0.0
    %1818 = vmatpush1.xpose.msra.mxu0 0.0
    %1819 = vmatprep.subr.mxu0 0.0
    %1820 = vmatpush1.xpose.msra.mxu0 0.0
    %1821 = vmatprep.subr.mxu0 0.0
    %1822 = vmatpush1.xpose.msra.mxu0 0.0
    %1823 = vmatprep.subr.mxu0 0.0
    %1824 = vmatpush1.xpose.msra.mxu0 0.0
    %1825 = vmatprep.subr.mxu0 0.0
    %1826 = vmatpush1.xpose.msra.mxu0 0.0
    %1827 = vmatprep.subr.mxu0 0.0
    %1828 = vmatpush1.xpose.msra.mxu0 0.0
    %1829 = vmatprep.subr.mxu0 0.0
    %1830 = vmatpush1.xpose.msra.mxu0 0.0
    %1831 = vmatprep.subr.mxu0 0.0
    %1832 = vmatpush1.xpose.msra.mxu0 0.0
    %1833 = vmatprep.subr.mxu0 0.0
    %1834 = vmatpush1.xpose.msra.mxu0 0.0
    %1835 = vmatprep.subr.mxu0 0.0
    %1836 = vmatpush1.xpose.msra.mxu0 0.0
    %1837 = vmatprep.subr.mxu0 0.0
    %1838 = vmatpush1.xpose.msra.mxu0 0.0
    %1839 = vmatprep.subr.mxu0 0.0
    %1840 = vmatpush1.xpose.msra.mxu0 0.0
    %1841 = vmatprep.subr.mxu0 0.0
    %1842 = vmatpush1.xpose.msra.mxu0 0.0
    %1843 = vmatprep.subr.mxu0 0.0
    %1844 = vmatpush1.xpose.msra.mxu0 0.0
    %1845 = vmatprep.subr.mxu0 0.0
    %1846 = vmatpush1.xpose.msra.mxu0 0.0
    %1847 = vmatprep.subr.mxu0 0.0
    %1848 = vmatpush1.xpose.msra.mxu0 0.0
    %1849 = vmatprep.subr.mxu0 0.0
    %1850 = vmatpush1.xpose.msra.mxu0 0.0
    %1851 = vmatprep.subr.mxu0 0.0
    %1852 = vmatpush1.xpose.msra.mxu0 0.0
    %1853 = vmatprep.subr.mxu0 0.0
    %1854 = vmatpush1.xpose.msra.mxu0 0.0
    %1855 = vmatprep.subr.mxu0 0.0
    %1856 = vmatpush1.xpose.msra.mxu0 0.0
    %1857 = vmatprep.subr.mxu0 0.0
    %1858 = vmatpush1.xpose.msra.mxu0 0.0
    %1859 = vmatprep.subr.mxu0 0.0
    %1860 = vmatpush1.xpose.msra.mxu0 0.0
    %1861 = vmatprep.subr.mxu0 0.0
    %1862 = vmatpush1.xpose.msra.mxu0 0.0
    %1863 = vmatprep.subr.mxu0 0.0
    %1864 = vmatpush1.xpose.msra.mxu0 0.0
    %1865 = vmatprep.mubr.f32.mxu0 0.0
    %1866 = vmatmul.mubr.f32.gmra.mrb[0].mxu0 %v1793
    %v1867 = vpop.f32.mrb[0].mxu0
    %v1868 = vadd.f32 %v1783, %v1867
    %v1869 = vpop.f32.mrb[0].mxu0
    %1870 = vmatprep.mubr.f32.mxu0 0.0
    %1871 = vmatmul.mubr.f32.gmra.mrb[0].mxu0 %v1795
    %v1872 = vpop.f32.mrb[0].mxu0
    %v1873 = vadd.f32 %v1784, %v1872
    %v1874 = vpop.f32.mrb[0].mxu0
    %1875 = vdwg.mxu0
    %v1876 = vsel %vm329, %v1868, -inf
    %1877 = vmax.xlane.f32.xlu0 %v1876
    %v1878 = vpop.xlane.xlu0 %1877
    %v1879 = vsel %vm329, %v1873, -inf
    %1880 = vmax.xlane.f32.xlu0 %v1879
    %v1881 = vpop.xlane.xlu0 %1880
    %v1882 = vsub.f32 %v1868, %v1878
    %v1883 = vsub.f32 %v1873, %v1881
    %v1884 = vmul.f32 %v1882, 1.442695
    %v1885 = vpow.pop %v1884
    %v1886 = vmul.f32 %v1883, 1.442695
    %v1887 = vpow.pop %v1886
    %v1888 = vsel %vm329, %v1885, 0.0
    %1889 = vadd.xlane.f32.xlu0 %v1888
    %v1890 = vpop.xlane.xlu0 %1889
    %v1891 = vsel %vm329, %v1887, 0.0
    %1892 = vadd.xlane.f32.xlu0 %v1891
    %v1893 = vpop.xlane.xlu0 %1892
    %v1894 = vrcp.pop %v1890
    %v1895 = vrcp.pop %v1893
    %v1896 = vmul.f32 %v1885, %v1894
    %v1897 = vmul.f32 %v1887, %v1895
    %1898 = vrot.lane.b32.xlu0 %v1575, 56
    %v1899 = vpop.permute.xlu0 %1898
    %1900 = vrot.lane.b32.xlu0 %v1580, 56
    %v1901 = vpop.permute.xlu0 %1900
    %v1905 = vsel %vm329, %v1896, 0
    %v1908 = vsel %vm329, %v1897, 0
    %1910 = vmatprep.subr.mxu0 0.0
    %1911 = vmatpush1.msra.mxu0 %v1899
    %1912 = vmatprep.subr.mxu0 0.0
    %1913 = vmatpush1.msra.mxu0 %v1901
    %1914 = vmatprep.subr.mxu0 0.0
    %1915 = vmatpush1.msra.mxu0 0.0
    %1916 = vmatprep.subr.mxu0 0.0
    %1917 = vmatpush1.msra.mxu0 0.0
    %1918 = vmatprep.subr.mxu0 0.0
    %1919 = vmatpush1.msra.mxu0 0.0
    %1920 = vmatprep.subr.mxu0 0.0
    %1921 = vmatpush1.msra.mxu0 0.0
    %1922 = vmatprep.subr.mxu0 0.0
    %1923 = vmatpush1.msra.mxu0 0.0
    %1924 = vmatprep.subr.mxu0 0.0
    %1925 = vmatpush1.msra.mxu0 0.0
    %1926 = vmatprep.subr.mxu0 0.0
    %1927 = vmatpush1.msra.mxu0 0.0
    %1928 = vmatprep.subr.mxu0 0.0
    %1929 = vmatpush1.msra.mxu0 0.0
    %1930 = vmatprep.subr.mxu0 0.0
    %1931 = vmatpush1.msra.mxu0 0.0
    %1932 = vmatprep.subr.mxu0 0.0
    %1933 = vmatpush1.msra.mxu0 0.0
    %1934 = vmatprep.subr.mxu0 0.0
    %1935 = vmatpush1.msra.mxu0 0.0
    %1936 = vmatprep.subr.mxu0 0.0
    %1937 = vmatpush1.msra.mxu0 0.0
    %1938 = vmatprep.subr.mxu0 0.0
    %1939 = vmatpush1.msra.mxu0 0.0
    %1940 = vmatprep.subr.mxu0 0.0
    %1941 = vmatpush1.msra.mxu0 0.0
    %1942 = vmatprep.subr.mxu0 0.0
    %1943 = vmatpush1.msra.mxu0 0.0
    %1944 = vmatprep.subr.mxu0 0.0
    %1945 = vmatpush1.msra.mxu0 0.0
    %1946 = vmatprep.subr.mxu0 0.0
    %1947 = vmatpush1.msra.mxu0 0.0
    %1948 = vmatprep.subr.mxu0 0.0
    %1949 = vmatpush1.msra.mxu0 0.0
    %1950 = vmatprep.subr.mxu0 0.0
    %1951 = vmatpush1.msra.mxu0 0.0
    %1952 = vmatprep.subr.mxu0 0.0
    %1953 = vmatpush1.msra.mxu0 0.0
    %1954 = vmatprep.subr.mxu0 0.0
    %1955 = vmatpush1.msra.mxu0 0.0
    %1956 = vmatprep.subr.mxu0 0.0
    %1957 = vmatpush1.msra.mxu0 0.0
    %1958 = vmatprep.subr.mxu0 0.0
    %1959 = vmatpush1.msra.mxu0 0.0
    %1960 = vmatprep.subr.mxu0 0.0
    %1961 = vmatpush1.msra.mxu0 0.0
    %1962 = vmatprep.subr.mxu0 0.0
    %1963 = vmatpush1.msra.mxu0 0.0
    %1964 = vmatprep.subr.mxu0 0.0
    %1965 = vmatpush1.msra.mxu0 0.0
    %1966 = vmatprep.subr.mxu0 0.0
    %1967 = vmatpush1.msra.mxu0 0.0
    %1968 = vmatprep.subr.mxu0 0.0
    %1969 = vmatpush1.msra.mxu0 0.0
    %1970 = vmatprep.subr.mxu0 0.0
    %1971 = vmatpush1.msra.mxu0 0.0
    %1972 = vmatprep.subr.mxu0 0.0
    %1973 = vmatpush1.msra.mxu0 0.0
    %1974 = vmatprep.mubr.f32.mxu0 0.0
    %1975 = vmatmul.mubr.f32.gmra.mrb[0].mxu0 %v1905
    %v1976 = vpop.f32.mrb[0].mxu0
    %v1977 = vadd.f32 0.0, %v1976
    %v1978 = vpop.f32.mrb[0].mxu0
    %1979 = vmatprep.mubr.f32.mxu0 0.0
    %1980 = vmatmul.mubr.f32.gmra.mrb[0].mxu0 %v1908
    %v1981 = vpop.f32.mrb[0].mxu0
    %v1982 = vadd.f32 0.0, %v1981
    %v1983 = vpop.f32.mrb[0].mxu0
    %1984 = vdwg.mxu0
    %v1985 = vld [vmem:[%s1 + $0x2d8] sm:$0xff]
    %v1986 = vld [vmem:[%s1 + $0x2e0] sm:$0xff]
    %1987 = vrot.lane.b32.xlu0 %v1575, 112
    %v1988 = vpop.permute.xlu0 %1987
    %1989 = vrot.lane.b32.xlu0 %v1580, 112
    %v1990 = vpop.permute.xlu0 %1989
    %1991 = vrot.lane.b32.xlu0 %v1575, 80
    %v1992 = vpop.permute.xlu0 %1991
    %1993 = vrot.lane.b32.xlu0 %v1580, 80
    %v1994 = vpop.permute.xlu0 %1993
    %v1995 = vsel %vm245, %v1988, 0
    %v1997 = vsel %vm245, %v1990, 0
    %v1999 = vsel %vm245, %v1992, 0
    %v2001 = vsel %vm245, %v1994, 0
    %2003 = vmatprep.subr.mxu0 0.0
    %2004 = vmatpush1.xpose.msra.mxu0 %v1999
    %2005 = vmatprep.subr.mxu0 0.0
    %2006 = vmatpush1.xpose.msra.mxu0 %v2001
    %2007 = vmatprep.subr.mxu0 0.0
    %2008 = vmatpush1.xpose.msra.mxu0 0.0
    %2009 = vmatprep.subr.mxu0 0.0
    %2010 = vmatpush1.xpose.msra.mxu0 0.0
    %2011 = vmatprep.subr.mxu0 0.0
    %2012 = vmatpush1.xpose.msra.mxu0 0.0
    %2013 = vmatprep.subr.mxu0 0.0
    %2014 = vmatpush1.xpose.msra.mxu0 0.0
    %2015 = vmatprep.subr.mxu0 0.0
    %2016 = vmatpush1.xpose.msra.mxu0 0.0
    %2017 = vmatprep.subr.mxu0 0.0
    %2018 = vmatpush1.xpose.msra.mxu0 0.0
    %2019 = vmatprep.subr.mxu0 0.0
    %2020 = vmatpush1.xpose.msra.mxu0 0.0
    %2021 = vmatprep.subr.mxu0 0.0
    %2022 = vmatpush1.xpose.msra.mxu0 0.0
    %2023 = vmatprep.subr.mxu0 0.0
    %2024 = vmatpush1.xpose.msra.mxu0 0.0
    %2025 = vmatprep.subr.mxu0 0.0
    %2026 = vmatpush1.xpose.msra.mxu0 0.0
    %2027 = vmatprep.subr.mxu0 0.0
    %2028 = vmatpush1.xpose.msra.mxu0 0.0
    %2029 = vmatprep.subr.mxu0 0.0
    %2030 = vmatpush1.xpose.msra.mxu0 0.0
    %2031 = vmatprep.subr.mxu0 0.0
    %2032 = vmatpush1.xpose.msra.mxu0 0.0
    %2033 = vmatprep.subr.mxu0 0.0
    %2034 = vmatpush1.xpose.msra.mxu0 0.0
    %2035 = vmatprep.subr.mxu0 0.0
    %2036 = vmatpush1.xpose.msra.mxu0 0.0
    %2037 = vmatprep.subr.mxu0 0.0
    %2038 = vmatpush1.xpose.msra.mxu0 0.0
    %2039 = vmatprep.subr.mxu0 0.0
    %2040 = vmatpush1.xpose.msra.mxu0 0.0
    %2041 = vmatprep.subr.mxu0 0.0
    %2042 = vmatpush1.xpose.msra.mxu0 0.0
    %2043 = vmatprep.subr.mxu0 0.0
    %2044 = vmatpush1.xpose.msra.mxu0 0.0
    %2045 = vmatprep.subr.mxu0 0.0
    %2046 = vmatpush1.xpose.msra.mxu0 0.0
    %2047 = vmatprep.subr.mxu0 0.0
    %2048 = vmatpush1.xpose.msra.mxu0 0.0
    %2049 = vmatprep.subr.mxu0 0.0
    %2050 = vmatpush1.xpose.msra.mxu0 0.0
    %2051 = vmatprep.subr.mxu0 0.0
    %2052 = vmatpush1.xpose.msra.mxu0 0.0
    %2053 = vmatprep.subr.mxu0 0.0
    %2054 = vmatpush1.xpose.msra.mxu0 0.0
    %2055 = vmatprep.subr.mxu0 0.0
    %2056 = vmatpush1.xpose.msra.mxu0 0.0
    %2057 = vmatprep.subr.mxu0 0.0
    %2058 = vmatpush1.xpose.msra.mxu0 0.0
    %2059 = vmatprep.subr.mxu0 0.0
    %2060 = vmatpush1.xpose.msra.mxu0 0.0
    %2061 = vmatprep.subr.mxu0 0.0
    %2062 = vmatpush1.xpose.msra.mxu0 0.0
    %2063 = vmatprep.subr.mxu0 0.0
    %2064 = vmatpush1.xpose.msra.mxu0 0.0
    %2065 = vmatprep.subr.mxu0 0.0
    %2066 = vmatpush1.xpose.msra.mxu0 0.0
    %2067 = vmatprep.mubr.f32.mxu0 0.0
    %2068 = vmatmul.mubr.f32.gmra.mrb[0].mxu0 %v1995
    %v2069 = vpop.f32.mrb[0].mxu0
    %v2070 = vadd.f32 %v1985, %v2069
    %v2071 = vpop.f32.mrb[0].mxu0
    %2072 = vmatprep.mubr.f32.mxu0 0.0
    %2073 = vmatmul.mubr.f32.gmra.mrb[0].mxu0 %v1997
    %v2074 = vpop.f32.mrb[0].mxu0
    %v2075 = vadd.f32 %v1986, %v2074
    %v2076 = vpop.f32.mrb[0].mxu0
    %2077 = vdwg.mxu0
    %v2078 = vsel %vm329, %v2070, -inf
    %2079 = vmax.xlane.f32.xlu0 %v2078
    %v2080 = vpop.xlane.xlu0 %2079
    %v2081 = vsel %vm329, %v2075, -inf
    %2082 = vmax.xlane.f32.xlu0 %v2081
    %v2083 = vpop.xlane.xlu0 %2082
    %v2084 = vsub.f32 %v2070, %v2080
    %v2085 = vsub.f32 %v2075, %v2083
    %v2086 = vmul.f32 %v2084, 1.442695
    %v2087 = vpow.pop %v2086
    %v2088 = vmul.f32 %v2085, 1.442695
    %v2089 = vpow.pop %v2088
    %v2090 = vsel %vm329, %v2087, 0.0
    %2091 = vadd.xlane.f32.xlu0 %v2090
    %v2092 = vpop.xlane.xlu0 %2091
    %v2093 = vsel %vm329, %v2089, 0.0
    %2094 = vadd.xlane.f32.xlu0 %v2093
    %v2095 = vpop.xlane.xlu0 %2094
    %v2096 = vrcp.pop %v2092
    %v2097 = vrcp.pop %v2095
    %v2098 = vmul.f32 %v2087, %v2096
    %v2099 = vmul.f32 %v2089, %v2097
    %2100 = vrot.lane.b32.xlu0 %v1575, 48
    %v2101 = vpop.permute.xlu0 %2100
    %2102 = vrot.lane.b32.xlu0 %v1580, 48
    %v2103 = vpop.permute.xlu0 %2102
    %v2107 = vsel %vm329, %v2098, 0
    %v2110 = vsel %vm329, %v2099, 0
    %2112 = vmatprep.subr.mxu0 0.0
    %2113 = vmatpush1.msra.mxu0 %v2101
    %2114 = vmatprep.subr.mxu0 0.0
    %2115 = vmatpush1.msra.mxu0 %v2103
    %2116 = vmatprep.subr.mxu0 0.0
    %2117 = vmatpush1.msra.mxu0 0.0
    %2118 = vmatprep.subr.mxu0 0.0
    %2119 = vmatpush1.msra.mxu0 0.0
    %2120 = vmatprep.subr.mxu0 0.0
    %2121 = vmatpush1.msra.mxu0 0.0
    %2122 = vmatprep.subr.mxu0 0.0
    %2123 = vmatpush1.msra.mxu0 0.0
    %2124 = vmatprep.subr.mxu0 0.0
    %2125 = vmatpush1.msra.mxu0 0.0
    %2126 = vmatprep.subr.mxu0 0.0
    %2127 = vmatpush1.msra.mxu0 0.0
    %2128 = vmatprep.subr.mxu0 0.0
    %2129 = vmatpush1.msra.mxu0 0.0
    %2130 = vmatprep.subr.mxu0 0.0
    %2131 = vmatpush1.msra.mxu0 0.0
    %2132 = vmatprep.subr.mxu0 0.0
    %2133 = vmatpush1.msra.mxu0 0.0
    %2134 = vmatprep.subr.mxu0 0.0
    %2135 = vmatpush1.msra.mxu0 0.0
    %2136 = vmatprep.subr.mxu0 0.0
    %2137 = vmatpush1.msra.mxu0 0.0
    %2138 = vmatprep.subr.mxu0 0.0
    %2139 = vmatpush1.msra.mxu0 0.0
    %2140 = vmatprep.subr.mxu0 0.0
    %2141 = vmatpush1.msra.mxu0 0.0
    %2142 = vmatprep.subr.mxu0 0.0
    %2143 = vmatpush1.msra.mxu0 0.0
    %2144 = vmatprep.subr.mxu0 0.0
    %2145 = vmatpush1.msra.mxu0 0.0
    %2146 = vmatprep.subr.mxu0 0.0
    %2147 = vmatpush1.msra.mxu0 0.0
    %2148 = vmatprep.subr.mxu0 0.0
    %2149 = vmatpush1.msra.mxu0 0.0
    %2150 = vmatprep.subr.mxu0 0.0
    %2151 = vmatpush1.msra.mxu0 0.0
    %2152 = vmatprep.subr.mxu0 0.0
    %2153 = vmatpush1.msra.mxu0 0.0
    %2154 = vmatprep.subr.mxu0 0.0
    %2155 = vmatpush1.msra.mxu0 0.0
    %2156 = vmatprep.subr.mxu0 0.0
    %2157 = vmatpush1.msra.mxu0 0.0
    %2158 = vmatprep.subr.mxu0 0.0
    %2159 = vmatpush1.msra.mxu0 0.0
    %2160 = vmatprep.subr.mxu0 0.0
    %2161 = vmatpush1.msra.mxu0 0.0
    %2162 = vmatprep.subr.mxu0 0.0
    %2163 = vmatpush1.msra.mxu0 0.0
    %2164 = vmatprep.subr.mxu0 0.0
    %2165 = vmatpush1.msra.mxu0 0.0
    %2166 = vmatprep.subr.mxu0 0.0
    %2167 = vmatpush1.msra.mxu0 0.0
    %2168 = vmatprep.subr.mxu0 0.0
    %2169 = vmatpush1.msra.mxu0 0.0
    %2170 = vmatprep.subr.mxu0 0.0
    %2171 = vmatpush1.msra.mxu0 0.0
    %2172 = vmatprep.subr.mxu0 0.0
    %2173 = vmatpush1.msra.mxu0 0.0
    %2174 = vmatprep.subr.mxu0 0.0
    %2175 = vmatpush1.msra.mxu0 0.0
    %2176 = vmatprep.mubr.f32.mxu0 0.0
    %2177 = vmatmul.mubr.f32.gmra.mrb[0].mxu0 %v2107
    %v2178 = vpop.f32.mrb[0].mxu0
    %v2179 = vadd.f32 0.0, %v2178
    %v2180 = vpop.f32.mrb[0].mxu0
    %2181 = vmatprep.mubr.f32.mxu0 0.0
    %2182 = vmatmul.mubr.f32.gmra.mrb[0].mxu0 %v2110
    %v2183 = vpop.f32.mrb[0].mxu0
    %v2184 = vadd.f32 0.0, %v2183
    %v2185 = vpop.f32.mrb[0].mxu0
    %2186 = vdwg.mxu0
    %v2187 = vld [vmem:[%s1 + $0x2e8] sm:$0xff]
    %v2188 = vld [vmem:[%s1 + $0x2f0] sm:$0xff]
    %2189 = vrot.lane.b32.xlu0 %v1575, 104
    %v2190 = vpop.permute.xlu0 %2189
    %2191 = vrot.lane.b32.xlu0 %v1580, 104
    %v2192 = vpop.permute.xlu0 %2191
    %2193 = vrot.lane.b32.xlu0 %v1575, 72
    %v2194 = vpop.permute.xlu0 %2193
    %2195 = vrot.lane.b32.xlu0 %v1580, 72
    %v2196 = vpop.permute.xlu0 %2195
    %v2197 = vsel %vm245, %v2190, 0
    %v2199 = vsel %vm245, %v2192, 0
    %v2201 = vsel %vm245, %v2194, 0
    %v2203 = vsel %vm245, %v2196, 0
    %2205 = vmatprep.subr.mxu0 0.0
    %2206 = vmatpush1.xpose.msra.mxu0 %v2201
    %2207 = vmatprep.subr.mxu0 0.0
    %2208 = vmatpush1.xpose.msra.mxu0 %v2203
    %2209 = vmatprep.subr.mxu0 0.0
    %2210 = vmatpush1.xpose.msra.mxu0 0.0
    %2211 = vmatprep.subr.mxu0 0.0
    %2212 = vmatpush1.xpose.msra.mxu0 0.0
    %2213 = vmatprep.subr.mxu0 0.0
    %2214 = vmatpush1.xpose.msra.mxu0 0.0
    %2215 = vmatprep.subr.mxu0 0.0
    %2216 = vmatpush1.xpose.msra.mxu0 0.0
    %2217 = vmatprep.subr.mxu0 0.0
    %2218 = vmatpush1.xpose.msra.mxu0 0.0
    %2219 = vmatprep.subr.mxu0 0.0
    %2220 = vmatpush1.xpose.msra.mxu0 0.0
    %2221 = vmatprep.subr.mxu0 0.0
    %2222 = vmatpush1.xpose.msra.mxu0 0.0
    %2223 = vmatprep.subr.mxu0 0.0
    %2224 = vmatpush1.xpose.msra.mxu0 0.0
    %2225 = vmatprep.subr.mxu0 0.0
    %2226 = vmatpush1.xpose.msra.mxu0 0.0
    %2227 = vmatprep.subr.mxu0 0.0
    %2228 = vmatpush1.xpose.msra.mxu0 0.0
    %2229 = vmatprep.subr.mxu0 0.0
    %2230 = vmatpush1.xpose.msra.mxu0 0.0
    %2231 = vmatprep.subr.mxu0 0.0
    %2232 = vmatpush1.xpose.msra.mxu0 0.0
    %2233 = vmatprep.subr.mxu0 0.0
    %2234 = vmatpush1.xpose.msra.mxu0 0.0
    %2235 = vmatprep.subr.mxu0 0.0
    %2236 = vmatpush1.xpose.msra.mxu0 0.0
    %2237 = vmatprep.subr.mxu0 0.0
    %2238 = vmatpush1.xpose.msra.mxu0 0.0
    %2239 = vmatprep.subr.mxu0 0.0
    %2240 = vmatpush1.xpose.msra.mxu0 0.0
    %2241 = vmatprep.subr.mxu0 0.0
    %2242 = vmatpush1.xpose.msra.mxu0 0.0
    %2243 = vmatprep.subr.mxu0 0.0
    %2244 = vmatpush1.xpose.msra.mxu0 0.0
    %2245 = vmatprep.subr.mxu0 0.0
    %2246 = vmatpush1.xpose.msra.mxu0 0.0
    %2247 = vmatprep.subr.mxu0 0.0
    %2248 = vmatpush1.xpose.msra.mxu0 0.0
    %2249 = vmatprep.subr.mxu0 0.0
    %2250 = vmatpush1.xpose.msra.mxu0 0.0
    %2251 = vmatprep.subr.mxu0 0.0
    %2252 = vmatpush1.xpose.msra.mxu0 0.0
    %2253 = vmatprep.subr.mxu0 0.0
    %2254 = vmatpush1.xpose.msra.mxu0 0.0
    %2255 = vmatprep.subr.mxu0 0.0
    %2256 = vmatpush1.xpose.msra.mxu0 0.0
    %2257 = vmatprep.subr.mxu0 0.0
    %2258 = vmatpush1.xpose.msra.mxu0 0.0
    %2259 = vmatprep.subr.mxu0 0.0
    %2260 = vmatpush1.xpose.msra.mxu0 0.0
    %2261 = vmatprep.subr.mxu0 0.0
    %2262 = vmatpush1.xpose.msra.mxu0 0.0
    %2263 = vmatprep.subr.mxu0 0.0
    %2264 = vmatpush1.xpose.msra.mxu0 0.0
    %2265 = vmatprep.subr.mxu0 0.0
    %2266 = vmatpush1.xpose.msra.mxu0 0.0
    %2267 = vmatprep.subr.mxu0 0.0
    %2268 = vmatpush1.xpose.msra.mxu0 0.0
    %2269 = vmatprep.mubr.f32.mxu0 0.0
    %2270 = vmatmul.mubr.f32.gmra.mrb[0].mxu0 %v2197
    %v2271 = vpop.f32.mrb[0].mxu0
    %v2272 = vadd.f32 %v2187, %v2271
    %v2273 = vpop.f32.mrb[0].mxu0
    %2274 = vmatprep.mubr.f32.mxu0 0.0
    %2275 = vmatmul.mubr.f32.gmra.mrb[0].mxu0 %v2199
    %v2276 = vpop.f32.mrb[0].mxu0
    %v2277 = vadd.f32 %v2188, %v2276
    %v2278 = vpop.f32.mrb[0].mxu0
    %2279 = vdwg.mxu0
    %v2280 = vsel %vm329, %v2272, -inf
    %2281 = vmax.xlane.f32.xlu0 %v2280
    %v2282 = vpop.xlane.xlu0 %2281
    %v2283 = vsel %vm329, %v2277, -inf
    %2284 = vmax.xlane.f32.xlu0 %v2283
    %v2285 = vpop.xlane.xlu0 %2284
    %v2286 = vsub.f32 %v2272, %v2282
    %v2287 = vsub.f32 %v2277, %v2285
    %v2288 = vmul.f32 %v2286, 1.442695
    %v2289 = vpow.pop %v2288
    %v2290 = vmul.f32 %v2287, 1.442695
    %v2291 = vpow.pop %v2290
    %v2292 = vsel %vm329, %v2289, 0.0
    %2293 = vadd.xlane.f32.xlu0 %v2292
    %v2294 = vpop.xlane.xlu0 %2293
    %v2295 = vsel %vm329, %v2291, 0.0
    %2296 = vadd.xlane.f32.xlu0 %v2295
    %v2297 = vpop.xlane.xlu0 %2296
    %v2298 = vrcp.pop %v2294
    %v2299 = vrcp.pop %v2297
    %v2300 = vmul.f32 %v2289, %v2298
    %v2301 = vmul.f32 %v2291, %v2299
    %2302 = vrot.lane.b32.xlu0 %v1575, 40
    %v2303 = vpop.permute.xlu0 %2302
    %2304 = vrot.lane.b32.xlu0 %v1580, 40
    %v2305 = vpop.permute.xlu0 %2304
    %v2309 = vsel %vm329, %v2300, 0
    %v2312 = vsel %vm329, %v2301, 0
    %2314 = vmatprep.subr.mxu0 0.0
    %2315 = vmatpush1.msra.mxu0 %v2303
    %2316 = vmatprep.subr.mxu0 0.0
    %2317 = vmatpush1.msra.mxu0 %v2305
    %2318 = vmatprep.subr.mxu0 0.0
    %2319 = vmatpush1.msra.mxu0 0.0
    %2320 = vmatprep.subr.mxu0 0.0
    %2321 = vmatpush1.msra.mxu0 0.0
    %2322 = vmatprep.subr.mxu0 0.0
    %2323 = vmatpush1.msra.mxu0 0.0
    %2324 = vmatprep.subr.mxu0 0.0
    %2325 = vmatpush1.msra.mxu0 0.0
    %2326 = vmatprep.subr.mxu0 0.0
    %2327 = vmatpush1.msra.mxu0 0.0
    %2328 = vmatprep.subr.mxu0 0.0
    %2329 = vmatpush1.msra.mxu0 0.0
    %2330 = vmatprep.subr.mxu0 0.0
    %2331 = vmatpush1.msra.mxu0 0.0
    %2332 = vmatprep.subr.mxu0 0.0
    %2333 = vmatpush1.msra.mxu0 0.0
    %2334 = vmatprep.subr.mxu0 0.0
    %2335 = vmatpush1.msra.mxu0 0.0
    %2336 = vmatprep.subr.mxu0 0.0
    %2337 = vmatpush1.msra.mxu0 0.0
    %2338 = vmatprep.subr.mxu0 0.0
    %2339 = vmatpush1.msra.mxu0 0.0
    %2340 = vmatprep.subr.mxu0 0.0
    %2341 = vmatpush1.msra.mxu0 0.0
    %2342 = vmatprep.subr.mxu0 0.0
    %2343 = vmatpush1.msra.mxu0 0.0
    %2344 = vmatprep.subr.mxu0 0.0
    %2345 = vmatpush1.msra.mxu0 0.0
    %2346 = vmatprep.subr.mxu0 0.0
    %2347 = vmatpush1.msra.mxu0 0.0
    %2348 = vmatprep.subr.mxu0 0.0
    %2349 = vmatpush1.msra.mxu0 0.0
    %2350 = vmatprep.subr.mxu0 0.0
    %2351 = vmatpush1.msra.mxu0 0.0
    %2352 = vmatprep.subr.mxu0 0.0
    %2353 = vmatpush1.msra.mxu0 0.0
    %2354 = vmatprep.subr.mxu0 0.0
    %2355 = vmatpush1.msra.mxu0 0.0
    %2356 = vmatprep.subr.mxu0 0.0
    %2357 = vmatpush1.msra.mxu0 0.0
    %2358 = vmatprep.subr.mxu0 0.0
    %2359 = vmatpush1.msra.mxu0 0.0
    %2360 = vmatprep.subr.mxu0 0.0
    %2361 = vmatpush1.msra.mxu0 0.0
    %2362 = vmatprep.subr.mxu0 0.0
    %2363 = vmatpush1.msra.mxu0 0.0
    %2364 = vmatprep.subr.mxu0 0.0
    %2365 = vmatpush1.msra.mxu0 0.0
    %2366 = vmatprep.subr.mxu0 0.0
    %2367 = vmatpush1.msra.mxu0 0.0
    %2368 = vmatprep.subr.mxu0 0.0
    %2369 = vmatpush1.msra.mxu0 0.0
    %2370 = vmatprep.subr.mxu0 0.0
    %2371 = vmatpush1.msra.mxu0 0.0
    %2372 = vmatprep.subr.mxu0 0.0
    %2373 = vmatpush1.msra.mxu0 0.0
    %2374 = vmatprep.subr.mxu0 0.0
    %2375 = vmatpush1.msra.mxu0 0.0
    %2376 = vmatprep.subr.mxu0 0.0
    %2377 = vmatpush1.msra.mxu0 0.0
    %2378 = vmatprep.mubr.f32.mxu0 0.0
    %2379 = vmatmul.mubr.f32.gmra.mrb[0].mxu0 %v2309
    %v2380 = vpop.f32.mrb[0].mxu0
    %v2381 = vadd.f32 0.0, %v2380
    %v2382 = vpop.f32.mrb[0].mxu0
    %2383 = vmatprep.mubr.f32.mxu0 0.0
    %2384 = vmatmul.mubr.f32.gmra.mrb[0].mxu0 %v2312
    %v2385 = vpop.f32.mrb[0].mxu0
    %v2386 = vadd.f32 0.0, %v2385
    %v2387 = vpop.f32.mrb[0].mxu0
    %2388 = vdwg.mxu0
    %2391 = vrot.lane.b32.xlu0 %v1977, 8
    %v2392 = vpop.permute.xlu0 %2391
    %2393 = vrot.lane.b32.xlu0 %v1982, 8
    %v2394 = vpop.permute.xlu0 %2393
    %2399 = vrot.lane.b32.xlu0 %v2179, 16
    %v2400 = vpop.permute.xlu0 %2399
    %2401 = vrot.lane.b32.xlu0 %v2184, 16
    %v2402 = vpop.permute.xlu0 %2401
    %2407 = vrot.lane.b32.xlu0 %v2381, 24
    %v2408 = vpop.permute.xlu0 %2407
    %2409 = vrot.lane.b32.xlu0 %v2386, 24
    %v2410 = vpop.permute.xlu0 %2409
    %v2413 = vsel %vm245, %v1775, %v2392
    %v2414 = vsel %vm245, %v1780, %v2394
    %v2415 = vsel %vm329, %v2413, %v2400
    %v2416 = vsel %vm329, %v2414, %v2402
    %v2417 = vsel %vm1073, %v2415, %v2408
    %v2418 = vsel %vm1073, %v2416, %v2410
    %v2419 = vld [vmem:[%s1 + $0x198] sm:$0xff]
    %v2420 = vld [vmem:[%s1 + $0x1a0] sm:$0xff]
    %v2421 = vld [vmem:[%s1 + $0x1a8] sm:$0xff]
    %v2422 = vld [vmem:[%s1 + $0x1b0] sm:$0xff]
    %v2424 = vsel %vm129, %v2417, 0
    %v2427 = vsel %vm129, %v2418, 0
    %2429 = vmatprep.subr.mxu0 0.0
    %2430 = vmatpush1.msra.mxu0 %v2419
    %2431 = vmatprep.subr.mxu0 0.0
    %2432 = vmatpush1.msra.mxu0 %v2420
    %2433 = vmatprep.subr.mxu0 0.0
    %2434 = vmatpush1.msra.mxu0 %v2421
    %2435 = vmatprep.subr.mxu0 0.0
    %2436 = vmatpush1.msra.mxu0 %v2422
    %2437 = vmatprep.subr.mxu0 0.0
    %2438 = vmatpush1.msra.mxu0 0.0
    %2439 = vmatprep.subr.mxu0 0.0
    %2440 = vmatpush1.msra.mxu0 0.0
    %2441 = vmatprep.subr.mxu0 0.0
    %2442 = vmatpush1.msra.mxu0 0.0
    %2443 = vmatprep.subr.mxu0 0.0
    %2444 = vmatpush1.msra.mxu0 0.0
    %2445 = vmatprep.subr.mxu0 0.0
    %2446 = vmatpush1.msra.mxu0 0.0
    %2447 = vmatprep.subr.mxu0 0.0
    %2448 = vmatpush1.msra.mxu0 0.0
    %2449 = vmatprep.subr.mxu0 0.0
    %2450 = vmatpush1.msra.mxu0 0.0
    %2451 = vmatprep.subr.mxu0 0.0
    %2452 = vmatpush1.msra.mxu0 0.0
    %2453 = vmatprep.subr.mxu0 0.0
    %2454 = vmatpush1.msra.mxu0 0.0
    %2455 = vmatprep.subr.mxu0 0.0
    %2456 = vmatpush1.msra.mxu0 0.0
    %2457 = vmatprep.subr.mxu0 0.0
    %2458 = vmatpush1.msra.mxu0 0.0
    %2459 = vmatprep.subr.mxu0 0.0
    %2460 = vmatpush1.msra.mxu0 0.0
    %2461 = vmatprep.subr.mxu0 0.0
    %2462 = vmatpush1.msra.mxu0 0.0
    %2463 = vmatprep.subr.mxu0 0.0
    %2464 = vmatpush1.msra.mxu0 0.0
    %2465 = vmatprep.subr.mxu0 0.0
    %2466 = vmatpush1.msra.mxu0 0.0
    %2467 = vmatprep.subr.mxu0 0.0
    %2468 = vmatpush1.msra.mxu0 0.0
    %2469 = vmatprep.subr.mxu0 0.0
    %2470 = vmatpush1.msra.mxu0 0.0
    %2471 = vmatprep.subr.mxu0 0.0
    %2472 = vmatpush1.msra.mxu0 0.0
    %2473 = vmatprep.subr.mxu0 0.0
    %2474 = vmatpush1.msra.mxu0 0.0
    %2475 = vmatprep.subr.mxu0 0.0
    %2476 = vmatpush1.msra.mxu0 0.0
    %2477 = vmatprep.subr.mxu0 0.0
    %2478 = vmatpush1.msra.mxu0 0.0
    %2479 = vmatprep.subr.mxu0 0.0
    %2480 = vmatpush1.msra.mxu0 0.0
    %2481 = vmatprep.subr.mxu0 0.0
    %2482 = vmatpush1.msra.mxu0 0.0
    %2483 = vmatprep.subr.mxu0 0.0
    %2484 = vmatpush1.msra.mxu0 0.0
    %2485 = vmatprep.subr.mxu0 0.0
    %2486 = vmatpush1.msra.mxu0 0.0
    %2487 = vmatprep.subr.mxu0 0.0
    %2488 = vmatpush1.msra.mxu0 0.0
    %2489 = vmatprep.subr.mxu0 0.0
    %2490 = vmatpush1.msra.mxu0 0.0
    %2491 = vmatprep.subr.mxu0 0.0
    %2492 = vmatpush1.msra.mxu0 0.0
    %2493 = vmatprep.mubr.f32.mxu0 0.0
    %2494 = vmatmul.mubr.f32.gmra.mrb[0].mxu0 %v2424
    %v2495 = vpop.f32.mrb[0].mxu0
    %v2496 = vadd.f32 0.0, %v2495
    %v2497 = vpop.f32.mrb[0].mxu0
    %2498 = vmatprep.mubr.f32.mxu0 0.0
    %2499 = vmatmul.mubr.f32.gmra.mrb[0].mxu0 %v2427
    %v2500 = vpop.f32.mrb[0].mxu0
    %v2501 = vadd.f32 0.0, %v2500
    %v2502 = vpop.f32.mrb[0].mxu0
    %2503 = vdwg.mxu0
    %v2504 = vadd.f32 %v1467, %v2496
    %v2505 = vadd.f32 %v1472, %v2501
    %v2506 = vmul.f32 %v2504, %v2504
    %v2507 = vmul.f32 %v2505, %v2505
    %v2508 = vsel %vm129, %v2506, 0.0
    %2509 = vadd.xlane.f32.xlu0 %v2508
    %v2510 = vpop.xlane.xlu0 %2509
    %v2511 = vsel %vm129, %v2507, 0.0
    %2512 = vadd.xlane.f32.xlu0 %v2511
    %v2513 = vpop.xlane.xlu0 %2512
    %v2514 = vmul.f32 %v2510, %v136
    %v2515 = vmul.f32 %v2513, %v136
    %v2516 = vadd.f32 %v2514, 1e-06
    %v2517 = vadd.f32 %v2515, 1e-06
    %v2518 = vrsqrt.pop %v2516
    %v2519 = vrsqrt.pop %v2517
    %v2520 = vmul.f32 %v2504, %v2518
    %v2521 = vmul.f32 %v2505, %v2519
    %v2522 = vld [vmem:[%s1 + $0x160] sm:$0x1]
    %v2523 = vlaneseq
    %v2524 = vshrl.u32 %v2523, 7
    %v2525 = vsub.s32 0, %v2524
    %v2526 = vrot.slane %v2522, %v2525
    %v2527 = vmul.f32 %v2520, %v2526
    %v2528 = vmul.f32 %v2521, %v2526
    %v2529 = vld [vmem:[%s1 + $0x1b8] sm:$0xff]
    %v2530 = vld [vmem:[%s1 + $0x1c0] sm:$0xff]
    %v2531 = vld [vmem:[%s1 + $0x1c8] sm:$0xff]
    %v2532 = vld [vmem:[%s1 + $0x1d0] sm:$0xff]
    %v2534 = vsel %vm129, %v2527, 0
    %v2537 = vsel %vm129, %v2528, 0
    %2539 = vmatprep.subr.mxu0 0.0
    %2540 = vmatpush1.msra.mxu0 %v2529
    %2541 = vmatprep.subr.mxu0 0.0
    %2542 = vmatpush1.msra.mxu0 %v2530
    %2543 = vmatprep.subr.mxu0 0.0
    %2544 = vmatpush1.msra.mxu0 %v2531
    %2545 = vmatprep.subr.mxu0 0.0
    %2546 = vmatpush1.msra.mxu0 %v2532
    %2547 = vmatprep.subr.mxu0 0.0
    %2548 = vmatpush1.msra.mxu0 0.0
    %2549 = vmatprep.subr.mxu0 0.0
    %2550 = vmatpush1.msra.mxu0 0.0
    %2551 = vmatprep.subr.mxu0 0.0
    %2552 = vmatpush1.msra.mxu0 0.0
    %2553 = vmatprep.subr.mxu0 0.0
    %2554 = vmatpush1.msra.mxu0 0.0
    %2555 = vmatprep.subr.mxu0 0.0
    %2556 = vmatpush1.msra.mxu0 0.0
    %2557 = vmatprep.subr.mxu0 0.0
    %2558 = vmatpush1.msra.mxu0 0.0
    %2559 = vmatprep.subr.mxu0 0.0
    %2560 = vmatpush1.msra.mxu0 0.0
    %2561 = vmatprep.subr.mxu0 0.0
    %2562 = vmatpush1.msra.mxu0 0.0
    %2563 = vmatprep.subr.mxu0 0.0
    %2564 = vmatpush1.msra.mxu0 0.0
    %2565 = vmatprep.subr.mxu0 0.0
    %2566 = vmatpush1.msra.mxu0 0.0
    %2567 = vmatprep.subr.mxu0 0.0
    %2568 = vmatpush1.msra.mxu0 0.0
    %2569 = vmatprep.subr.mxu0 0.0
    %2570 = vmatpush1.msra.mxu0 0.0
    %2571 = vmatprep.subr.mxu0 0.0
    %2572 = vmatpush1.msra.mxu0 0.0
    %2573 = vmatprep.subr.mxu0 0.0
    %2574 = vmatpush1.msra.mxu0 0.0
    %2575 = vmatprep.subr.mxu0 0.0
    %2576 = vmatpush1.msra.mxu0 0.0
    %2577 = vmatprep.subr.mxu0 0.0
    %2578 = vmatpush1.msra.mxu0 0.0
    %2579 = vmatprep.subr.mxu0 0.0
    %2580 = vmatpush1.msra.mxu0 0.0
    %2581 = vmatprep.subr.mxu0 0.0
    %2582 = vmatpush1.msra.mxu0 0.0
    %2583 = vmatprep.subr.mxu0 0.0
    %2584 = vmatpush1.msra.mxu0 0.0
    %2585 = vmatprep.subr.mxu0 0.0
    %2586 = vmatpush1.msra.mxu0 0.0
    %2587 = vmatprep.subr.mxu0 0.0
    %2588 = vmatpush1.msra.mxu0 0.0
    %2589 = vmatprep.subr.mxu0 0.0
    %2590 = vmatpush1.msra.mxu0 0.0
    %2591 = vmatprep.subr.mxu0 0.0
    %2592 = vmatpush1.msra.mxu0 0.0
    %2593 = vmatprep.subr.mxu0 0.0
    %2594 = vmatpush1.msra.mxu0 0.0
    %2595 = vmatprep.subr.mxu0 0.0
    %2596 = vmatpush1.msra.mxu0 0.0
    %2597 = vmatprep.subr.mxu0 0.0
    %2598 = vmatpush1.msra.mxu0 0.0
    %2599 = vmatprep.subr.mxu0 0.0
    %2600 = vmatpush1.msra.mxu0 0.0
    %2601 = vmatprep.subr.mxu0 0.0
    %2602 = vmatpush1.msra.mxu0 0.0
    %2603 = vmatprep.mubr.f32.mxu0 0.0
    %2604 = vmatmul.mubr.f32.gmra.mrb[0].mxu0 %v2534
    %v2605 = vpop.f32.mrb[0].mxu0
    %v2606 = vadd.f32 0.0, %v2605
    %v2607 = vpop.f32.mrb[0].mxu0
    %2608 = vmatprep.mubr.f32.mxu0 0.0
    %2609 = vmatmul.mubr.f32.gmra.mrb[0].mxu0 %v2537
    %v2610 = vpop.f32.mrb[0].mxu0
    %v2611 = vadd.f32 0.0, %v2610
    %v2612 = vpop.f32.mrb[0].mxu0
    %2613 = vdwg.mxu0
    %v2614 = vld [vmem:[%s1 + $0x1d8] sm:$0xff]
    %v2615 = vld [vmem:[%s1 + $0x1e0] sm:$0xff]
    %v2616 = vld [vmem:[%s1 + $0x1e8] sm:$0xff]
    %v2617 = vld [vmem:[%s1 + $0x1f0] sm:$0xff]
    %v2619 = vsel %vm129, %v1386, 0
    %v2622 = vsel %vm129, %v1387, 0
    %2624 = vmatprep.subr.mxu0 0.0
    %2625 = vmatpush1.msra.mxu0 %v2614
    %2626 = vmatprep.subr.mxu0 0.0
    %2627 = vmatpush1.msra.mxu0 %v2615
    %2628 = vmatprep.subr.mxu0 0.0
    %2629 = vmatpush1.msra.mxu0 %v2616
    %2630 = vmatprep.subr.mxu0 0.0
    %2631 = vmatpush1.msra.mxu0 %v2617
    %2632 = vmatprep.subr.mxu0 0.0
    %2633 = vmatpush1.msra.mxu0 0.0
    %2634 = vmatprep.subr.mxu0 0.0
    %2635 = vmatpush1.msra.mxu0 0.0
    %2636 = vmatprep.subr.mxu0 0.0
    %2637 = vmatpush1.msra.mxu0 0.0
    %2638 = vmatprep.subr.mxu0 0.0
    %2639 = vmatpush1.msra.mxu0 0.0
    %2640 = vmatprep.subr.mxu0 0.0
    %2641 = vmatpush1.msra.mxu0 0.0
    %2642 = vmatprep.subr.mxu0 0.0
    %2643 = vmatpush1.msra.mxu0 0.0
    %2644 = vmatprep.subr.mxu0 0.0
    %2645 = vmatpush1.msra.mxu0 0.0
    %2646 = vmatprep.subr.mxu0 0.0
    %2647 = vmatpush1.msra.mxu0 0.0
    %2648 = vmatprep.subr.mxu0 0.0
    %2649 = vmatpush1.msra.mxu0 0.0
    %2650 = vmatprep.subr.mxu0 0.0
    %2651 = vmatpush1.msra.mxu0 0.0
    %2652 = vmatprep.subr.mxu0 0.0
    %2653 = vmatpush1.msra.mxu0 0.0
    %2654 = vmatprep.subr.mxu0 0.0
    %2655 = vmatpush1.msra.mxu0 0.0
    %2656 = vmatprep.subr.mxu0 0.0
    %2657 = vmatpush1.msra.mxu0 0.0
    %2658 = vmatprep.subr.mxu0 0.0
    %2659 = vmatpush1.msra.mxu0 0.0
    %2660 = vmatprep.subr.mxu0 0.0
    %2661 = vmatpush1.msra.mxu0 0.0
    %2662 = vmatprep.subr.mxu0 0.0
    %2663 = vmatpush1.msra.mxu0 0.0
    %2664 = vmatprep.subr.mxu0 0.0
    %2665 = vmatpush1.msra.mxu0 0.0
    %2666 = vmatprep.subr.mxu0 0.0
    %2667 = vmatpush1.msra.mxu0 0.0
    %2668 = vmatprep.subr.mxu0 0.0
    %2669 = vmatpush1.msra.mxu0 0.0
    %2670 = vmatprep.subr.mxu0 0.0
    %2671 = vmatpush1.msra.mxu0 0.0
    %2672 = vmatprep.subr.mxu0 0.0
    %2673 = vmatpush1.msra.mxu0 0.0
    %2674 = vmatprep.subr.mxu0 0.0
    %2675 = vmatpush1.msra.mxu0 0.0
    %2676 = vmatprep.subr.mxu0 0.0
    %2677 = vmatpush1.msra.mxu0 0.0
    %2678 = vmatprep.subr.mxu0 0.0
    %2679 = vmatpush1.msra.mxu0 0.0
    %2680 = vmatprep.subr.mxu0 0.0
    %2681 = vmatpush1.msra.mxu0 0.0
    %2682 = vmatprep.subr.mxu0 0.0
    %2683 = vmatpush1.msra.mxu0 0.0
    %2684 = vmatprep.subr.mxu0 0.0
    %2685 = vmatpush1.msra.mxu0 0.0
    %2686 = vmatprep.subr.mxu0 0.0
    %2687 = vmatpush1.msra.mxu0 0.0
    %2688 = vmatprep.mubr.f32.mxu0 0.0
    %2689 = vmatmul.mubr.f32.gmra.mrb[0].mxu0 %v2619
    %v2690 = vpop.f32.mrb[0].mxu0
    %v2691 = vadd.f32 0.0, %v2690
    %v2692 = vpop.f32.mrb[0].mxu0
    %2693 = vmatprep.mubr.f32.mxu0 0.0
    %2694 = vmatmul.mubr.f32.gmra.mrb[0].mxu0 %v2622
    %v2695 = vpop.f32.mrb[0].mxu0
    %v2696 = vadd.f32 0.0, %v2695
    %v2697 = vpop.f32.mrb[0].mxu0
    %2698 = vdwg.mxu0
    %v2699 = vld [vmem:[%s1 + $0x2f8] sm:$0xff]
    %v2700 = vld [vmem:[%s1 + $0x300] sm:$0xff]
    %v2702 = vsel %vm245, %v2606, 0
    %v2705 = vsel %vm245, %v2611, 0
    %v2708 = vsel %vm245, %v2691, 0
    %v2711 = vsel %vm245, %v2696, 0
    %2713 = vmatprep.subr.mxu0 0.0
    %2714 = vmatpush1.xpose.msra.mxu0 %v2708
    %2715 = vmatprep.subr.mxu0 0.0
    %2716 = vmatpush1.xpose.msra.mxu0 %v2711
    %2717 = vmatprep.subr.mxu0 0.0
    %2718 = vmatpush1.xpose.msra.mxu0 0.0
    %2719 = vmatprep.subr.mxu0 0.0
    %2720 = vmatpush1.xpose.msra.mxu0 0.0
    %2721 = vmatprep.subr.mxu0 0.0
    %2722 = vmatpush1.xpose.msra.mxu0 0.0
    %2723 = vmatprep.subr.mxu0 0.0
    %2724 = vmatpush1.xpose.msra.mxu0 0.0
    %2725 = vmatprep.subr.mxu0 0.0
    %2726 = vmatpush1.xpose.msra.mxu0 0.0
    %2727 = vmatprep.subr.mxu0 0.0
    %2728 = vmatpush1.xpose.msra.mxu0 0.0
    %2729 = vmatprep.subr.mxu0 0.0
    %2730 = vmatpush1.xpose.msra.mxu0 0.0
    %2731 = vmatprep.subr.mxu0 0.0
    %2732 = vmatpush1.xpose.msra.mxu0 0.0
    %2733 = vmatprep.subr.mxu0 0.0
    %2734 = vmatpush1.xpose.msra.mxu0 0.0
    %2735 = vmatprep.subr.mxu0 0.0
    %2736 = vmatpush1.xpose.msra.mxu0 0.0
    %2737 = vmatprep.subr.mxu0 0.0
    %2738 = vmatpush1.xpose.msra.mxu0 0.0
    %2739 = vmatprep.subr.mxu0 0.0
    %2740 = vmatpush1.xpose.msra.mxu0 0.0
    %2741 = vmatprep.subr.mxu0 0.0
    %2742 = vmatpush1.xpose.msra.mxu0 0.0
    %2743 = vmatprep.subr.mxu0 0.0
    %2744 = vmatpush1.xpose.msra.mxu0 0.0
    %2745 = vmatprep.subr.mxu0 0.0
    %2746 = vmatpush1.xpose.msra.mxu0 0.0
    %2747 = vmatprep.subr.mxu0 0.0
    %2748 = vmatpush1.xpose.msra.mxu0 0.0
    %2749 = vmatprep.subr.mxu0 0.0
    %2750 = vmatpush1.xpose.msra.mxu0 0.0
    %2751 = vmatprep.subr.mxu0 0.0
    %2752 = vmatpush1.xpose.msra.mxu0 0.0
    %2753 = vmatprep.subr.mxu0 0.0
    %2754 = vmatpush1.xpose.msra.mxu0 0.0
    %2755 = vmatprep.subr.mxu0 0.0
    %2756 = vmatpush1.xpose.msra.mxu0 0.0
    %2757 = vmatprep.subr.mxu0 0.0
    %2758 = vmatpush1.xpose.msra.mxu0 0.0
    %2759 = vmatprep.subr.mxu0 0.0
    %2760 = vmatpush1.xpose.msra.mxu0 0.0
    %2761 = vmatprep.subr.mxu0 0.0
    %2762 = vmatpush1.xpose.msra.mxu0 0.0
    %2763 = vmatprep.subr.mxu0 0.0
    %2764 = vmatpush1.xpose.msra.mxu0 0.0
    %2765 = vmatprep.subr.mxu0 0.0
    %2766 = vmatpush1.xpose.msra.mxu0 0.0
    %2767 = vmatprep.subr.mxu0 0.0
    %2768 = vmatpush1.xpose.msra.mxu0 0.0
    %2769 = vmatprep.subr.mxu0 0.0
    %2770 = vmatpush1.xpose.msra.mxu0 0.0
    %2771 = vmatprep.subr.mxu0 0.0
    %2772 = vmatpush1.xpose.msra.mxu0 0.0
    %2773 = vmatprep.subr.mxu0 0.0
    %2774 = vmatpush1.xpose.msra.mxu0 0.0
    %2775 = vmatprep.subr.mxu0 0.0
    %2776 = vmatpush1.xpose.msra.mxu0 0.0
    %2777 = vmatprep.mubr.f32.mxu0 0.0
    %2778 = vmatmul.mubr.f32.gmra.mrb[0].mxu0 %v2702
    %v2779 = vpop.f32.mrb[0].mxu0
    %v2780 = vadd.f32 %v2699, %v2779
    %v2781 = vpop.f32.mrb[0].mxu0
    %2782 = vmatprep.mubr.f32.mxu0 0.0
    %2783 = vmatmul.mubr.f32.gmra.mrb[0].mxu0 %v2705
    %v2784 = vpop.f32.mrb[0].mxu0
    %v2785 = vadd.f32 %v2700, %v2784
    %v2786 = vpop.f32.mrb[0].mxu0
    %2787 = vdwg.mxu0
    %v2788 = vsel %vm329, %v2780, -inf
    %2789 = vmax.xlane.f32.xlu0 %v2788
    %v2790 = vpop.xlane.xlu0 %2789
    %v2791 = vsel %vm329, %v2785, -inf
    %2792 = vmax.xlane.f32.xlu0 %v2791
    %v2793 = vpop.xlane.xlu0 %2792
    %v2794 = vsub.f32 %v2780, %v2790
    %v2795 = vsub.f32 %v2785, %v2793
    %v2796 = vmul.f32 %v2794, 1.442695
    %v2797 = vpow.pop %v2796
    %v2798 = vmul.f32 %v2795, 1.442695
    %v2799 = vpow.pop %v2798
    %v2800 = vsel %vm329, %v2797, 0.0
    %2801 = vadd.xlane.f32.xlu0 %v2800
    %v2802 = vpop.xlane.xlu0 %2801
    %v2803 = vsel %vm329, %v2799, 0.0
    %2804 = vadd.xlane.f32.xlu0 %v2803
    %v2805 = vpop.xlane.xlu0 %2804
    %v2806 = vrcp.pop %v2802
    %v2807 = vrcp.pop %v2805
    %v2808 = vmul.f32 %v2797, %v2806
    %v2809 = vmul.f32 %v2799, %v2807
    %2810 = vrot.lane.b32.xlu0 %v2691, 96
    %v2811 = vpop.permute.xlu0 %2810
    %2812 = vrot.lane.b32.xlu0 %v2696, 96
    %v2813 = vpop.permute.xlu0 %2812
    %v2817 = vsel %vm329, %v2808, 0
    %v2820 = vsel %vm329, %v2809, 0
    %2822 = vmatprep.subr.mxu0 0.0
    %2823 = vmatpush1.msra.mxu0 %v2811
    %2824 = vmatprep.subr.mxu0 0.0
    %2825 = vmatpush1.msra.mxu0 %v2813
    %2826 = vmatprep.subr.mxu0 0.0
    %2827 = vmatpush1.msra.mxu0 0.0
    %2828 = vmatprep.subr.mxu0 0.0
    %2829 = vmatpush1.msra.mxu0 0.0
    %2830 = vmatprep.subr.mxu0 0.0
    %2831 = vmatpush1.msra.mxu0 0.0
    %2832 = vmatprep.subr.mxu0 0.0
    %2833 = vmatpush1.msra.mxu0 0.0
    %2834 = vmatprep.subr.mxu0 0.0
    %2835 = vmatpush1.msra.mxu0 0.0
    %2836 = vmatprep.subr.mxu0 0.0
    %2837 = vmatpush1.msra.mxu0 0.0
    %2838 = vmatprep.subr.mxu0 0.0
    %2839 = vmatpush1.msra.mxu0 0.0
    %2840 = vmatprep.subr.mxu0 0.0
    %2841 = vmatpush1.msra.mxu0 0.0
    %2842 = vmatprep.subr.mxu0 0.0
    %2843 = vmatpush1.msra.mxu0 0.0
    %2844 = vmatprep.subr.mxu0 0.0
    %2845 = vmatpush1.msra.mxu0 0.0
    %2846 = vmatprep.subr.mxu0 0.0
    %2847 = vmatpush1.msra.mxu0 0.0
    %2848 = vmatprep.subr.mxu0 0.0
    %2849 = vmatpush1.msra.mxu0 0.0
    %2850 = vmatprep.subr.mxu0 0.0
    %2851 = vmatpush1.msra.mxu0 0.0
    %2852 = vmatprep.subr.mxu0 0.0
    %2853 = vmatpush1.msra.mxu0 0.0
    %2854 = vmatprep.subr.mxu0 0.0
    %2855 = vmatpush1.msra.mxu0 0.0
    %2856 = vmatprep.subr.mxu0 0.0
    %2857 = vmatpush1.msra.mxu0 0.0
    %2858 = vmatprep.subr.mxu0 0.0
    %2859 = vmatpush1.msra.mxu0 0.0
    %2860 = vmatprep.subr.mxu0 0.0
    %2861 = vmatpush1.msra.mxu0 0.0
    %2862 = vmatprep.subr.mxu0 0.0
    %2863 = vmatpush1.msra.mxu0 0.0
    %2864 = vmatprep.subr.mxu0 0.0
    %2865 = vmatpush1.msra.mxu0 0.0
    %2866 = vmatprep.subr.mxu0 0.0
    %2867 = vmatpush1.msra.mxu0 0.0
    %2868 = vmatprep.subr.mxu0 0.0
    %2869 = vmatpush1.msra.mxu0 0.0
    %2870 = vmatprep.subr.mxu0 0.0
    %2871 = vmatpush1.msra.mxu0 0.0
    %2872 = vmatprep.subr.mxu0 0.0
    %2873 = vmatpush1.msra.mxu0 0.0
    %2874 = vmatprep.subr.mxu0 0.0
    %2875 = vmatpush1.msra.mxu0 0.0
    %2876 = vmatprep.subr.mxu0 0.0
    %2877 = vmatpush1.msra.mxu0 0.0
    %2878 = vmatprep.subr.mxu0 0.0
    %2879 = vmatpush1.msra.mxu0 0.0
    %2880 = vmatprep.subr.mxu0 0.0
    %2881 = vmatpush1.msra.mxu0 0.0
    %2882 = vmatprep.subr.mxu0 0.0
    %2883 = vmatpush1.msra.mxu0 0.0
    %2884 = vmatprep.subr.mxu0 0.0
    %2885 = vmatpush1.msra.mxu0 0.0
    %2886 = vmatprep.mubr.f32.mxu0 0.0
    %2887 = vmatmul.mubr.f32.gmra.mrb[0].mxu0 %v2817
    %v2888 = vpop.f32.mrb[0].mxu0
    %v2889 = vadd.f32 0.0, %v2888
    %v2890 = vpop.f32.mrb[0].mxu0
    %2891 = vmatprep.mubr.f32.mxu0 0.0
    %2892 = vmatmul.mubr.f32.gmra.mrb[0].mxu0 %v2820
    %v2893 = vpop.f32.mrb[0].mxu0
    %v2894 = vadd.f32 0.0, %v2893
    %v2895 = vpop.f32.mrb[0].mxu0
    %2896 = vdwg.mxu0
    %v2897 = vld [vmem:[%s1 + $0x308] sm:$0xff]
    %v2898 = vld [vmem:[%s1 + $0x310] sm:$0xff]
    %2899 = vrot.lane.b32.xlu0 %v2606, 120
    %v2900 = vpop.permute.xlu0 %2899
    %2901 = vrot.lane.b32.xlu0 %v2611, 120
    %v2902 = vpop.permute.xlu0 %2901
    %2903 = vrot.lane.b32.xlu0 %v2691, 120
    %v2904 = vpop.permute.xlu0 %2903
    %2905 = vrot.lane.b32.xlu0 %v2696, 120
    %v2906 = vpop.permute.xlu0 %2905
    %v2907 = vsel %vm245, %v2900, 0
    %v2909 = vsel %vm245, %v2902, 0
    %v2911 = vsel %vm245, %v2904, 0
    %v2913 = vsel %vm245, %v2906, 0
    %2915 = vmatprep.subr.mxu0 0.0
    %2916 = vmatpush1.xpose.msra.mxu0 %v2911
    %2917 = vmatprep.subr.mxu0 0.0
    %2918 = vmatpush1.xpose.msra.mxu0 %v2913
    %2919 = vmatprep.subr.mxu0 0.0
    %2920 = vmatpush1.xpose.msra.mxu0 0.0
    %2921 = vmatprep.subr.mxu0 0.0
    %2922 = vmatpush1.xpose.msra.mxu0 0.0
    %2923 = vmatprep.subr.mxu0 0.0
    %2924 = vmatpush1.xpose.msra.mxu0 0.0
    %2925 = vmatprep.subr.mxu0 0.0
    %2926 = vmatpush1.xpose.msra.mxu0 0.0
    %2927 = vmatprep.subr.mxu0 0.0
    %2928 = vmatpush1.xpose.msra.mxu0 0.0
    %2929 = vmatprep.subr.mxu0 0.0
    %2930 = vmatpush1.xpose.msra.mxu0 0.0
    %2931 = vmatprep.subr.mxu0 0.0
    %2932 = vmatpush1.xpose.msra.mxu0 0.0
    %2933 = vmatprep.subr.mxu0 0.0
    %2934 = vmatpush1.xpose.msra.mxu0 0.0
    %2935 = vmatprep.subr.mxu0 0.0
    %2936 = vmatpush1.xpose.msra.mxu0 0.0
    %2937 = vmatprep.subr.mxu0 0.0
    %2938 = vmatpush1.xpose.msra.mxu0 0.0
    %2939 = vmatprep.subr.mxu0 0.0
    %2940 = vmatpush1.xpose.msra.mxu0 0.0
    %2941 = vmatprep.subr.mxu0 0.0
    %2942 = vmatpush1.xpose.msra.mxu0 0.0
    %2943 = vmatprep.subr.mxu0 0.0
    %2944 = vmatpush1.xpose.msra.mxu0 0.0
    %2945 = vmatprep.subr.mxu0 0.0
    %2946 = vmatpush1.xpose.msra.mxu0 0.0
    %2947 = vmatprep.subr.mxu0 0.0
    %2948 = vmatpush1.xpose.msra.mxu0 0.0
    %2949 = vmatprep.subr.mxu0 0.0
    %2950 = vmatpush1.xpose.msra.mxu0 0.0
    %2951 = vmatprep.subr.mxu0 0.0
    %2952 = vmatpush1.xpose.msra.mxu0 0.0
    %2953 = vmatprep.subr.mxu0 0.0
    %2954 = vmatpush1.xpose.msra.mxu0 0.0
    %2955 = vmatprep.subr.mxu0 0.0
    %2956 = vmatpush1.xpose.msra.mxu0 0.0
    %2957 = vmatprep.subr.mxu0 0.0
    %2958 = vmatpush1.xpose.msra.mxu0 0.0
    %2959 = vmatprep.subr.mxu0 0.0
    %2960 = vmatpush1.xpose.msra.mxu0 0.0
    %2961 = vmatprep.subr.mxu0 0.0
    %2962 = vmatpush1.xpose.msra.mxu0 0.0
    %2963 = vmatprep.subr.mxu0 0.0
    %2964 = vmatpush1.xpose.msra.mxu0 0.0
    %2965 = vmatprep.subr.mxu0 0.0
    %2966 = vmatpush1.xpose.msra.mxu0 0.0
    %2967 = vmatprep.subr.mxu0 0.0
    %2968 = vmatpush1.xpose.msra.mxu0 0.0
    %2969 = vmatprep.subr.mxu0 0.0
    %2970 = vmatpush1.xpose.msra.mxu0 0.0
    %2971 = vmatprep.subr.mxu0 0.0
    %2972 = vmatpush1.xpose.msra.mxu0 0.0
    %2973 = vmatprep.subr.mxu0 0.0
    %2974 = vmatpush1.xpose.msra.mxu0 0.0
    %2975 = vmatprep.subr.mxu0 0.0
    %2976 = vmatpush1.xpose.msra.mxu0 0.0
    %2977 = vmatprep.subr.mxu0 0.0
    %2978 = vmatpush1.xpose.msra.mxu0 0.0
    %2979 = vmatprep.mubr.f32.mxu0 0.0
    %2980 = vmatmul.mubr.f32.gmra.mrb[0].mxu0 %v2907
    %v2981 = vpop.f32.mrb[0].mxu0
    %v2982 = vadd.f32 %v2897, %v2981
    %v2983 = vpop.f32.mrb[0].mxu0
    %2984 = vmatprep.mubr.f32.mxu0 0.0
    %2985 = vmatmul.mubr.f32.gmra.mrb[0].mxu0 %v2909
    %v2986 = vpop.f32.mrb[0].mxu0
    %v2987 = vadd.f32 %v2898, %v2986
    %v2988 = vpop.f32.mrb[0].mxu0
    %2989 = vdwg.mxu0
    %v2990 = vsel %vm329, %v2982, -inf
    %2991 = vmax.xlane.f32.xlu0 %v2990
    %v2992 = vpop.xlane.xlu0 %2991
    %v2993 = vsel %vm329, %v2987, -inf
    %2994 = vmax.xlane.f32.xlu0 %v2993
    %v2995 = vpop.xlane.xlu0 %2994
    %v2996 = vsub.f32 %v2982, %v2992
    %v2997 = vsub.f32 %v2987, %v2995
    %v2998 = vmul.f32 %v2996, 1.442695
    %v2999 = vpow.pop %v2998
    %v3000 = vmul.f32 %v2997, 1.442695
    %v3001 = vpow.pop %v3000
    %v3002 = vsel %vm329, %v2999, 0.0
    %3003 = vadd.xlane.f32.xlu0 %v3002
    %v3004 = vpop.xlane.xlu0 %3003
    %v3005 = vsel %vm329, %v3001, 0.0
    %3006 = vadd.xlane.f32.xlu0 %v3005
    %v3007 = vpop.xlane.xlu0 %3006
    %v3008 = vrcp.pop %v3004
    %v3009 = vrcp.pop %v3007
    %v3010 = vmul.f32 %v2999, %v3008
    %v3011 = vmul.f32 %v3001, %v3009
    %3012 = vrot.lane.b32.xlu0 %v2691, 88
    %v3013 = vpop.permute.xlu0 %3012
    %3014 = vrot.lane.b32.xlu0 %v2696, 88
    %v3015 = vpop.permute.xlu0 %3014
    %v3019 = vsel %vm329, %v3010, 0
    %v3022 = vsel %vm329, %v3011, 0
    %3024 = vmatprep.subr.mxu0 0.0
    %3025 = vmatpush1.msra.mxu0 %v3013
    %3026 = vmatprep.subr.mxu0 0.0
    %3027 = vmatpush1.msra.mxu0 %v3015
    %3028 = vmatprep.subr.mxu0 0.0
    %3029 = vmatpush1.msra.mxu0 0.0
    %3030 = vmatprep.subr.mxu0 0.0
    %3031 = vmatpush1.msra.mxu0 0.0
    %3032 = vmatprep.subr.mxu0 0.0
    %3033 = vmatpush1.msra.mxu0 0.0
    %3034 = vmatprep.subr.mxu0 0.0
    %3035 = vmatpush1.msra.mxu0 0.0
    %3036 = vmatprep.subr.mxu0 0.0
    %3037 = vmatpush1.msra.mxu0 0.0
    %3038 = vmatprep.subr.mxu0 0.0
    %3039 = vmatpush1.msra.mxu0 0.0
    %3040 = vmatprep.subr.mxu0 0.0
    %3041 = vmatpush1.msra.mxu0 0.0
    %3042 = vmatprep.subr.mxu0 0.0
    %3043 = vmatpush1.msra.mxu0 0.0
    %3044 = vmatprep.subr.mxu0 0.0
    %3045 = vmatpush1.msra.mxu0 0.0
    %3046 = vmatprep.subr.mxu0 0.0
    %3047 = vmatpush1.msra.mxu0 0.0
    %3048 = vmatprep.subr.mxu0 0.0
    %3049 = vmatpush1.msra.mxu0 0.0
    %3050 = vmatprep.subr.mxu0 0.0
    %3051 = vmatpush1.msra.mxu0 0.0
    %3052 = vmatprep.subr.mxu0 0.0
    %3053 = vmatpush1.msra.mxu0 0.0
    %3054 = vmatprep.subr.mxu0 0.0
    %3055 = vmatpush1.msra.mxu0 0.0
    %3056 = vmatprep.subr.mxu0 0.0
    %3057 = vmatpush1.msra.mxu0 0.0
    %3058 = vmatprep.subr.mxu0 0.0
    %3059 = vmatpush1.msra.mxu0 0.0
    %3060 = vmatprep.subr.mxu0 0.0
    %3061 = vmatpush1.msra.mxu0 0.0
    %3062 = vmatprep.subr.mxu0 0.0
    %3063 = vmatpush1.msra.mxu0 0.0
    %3064 = vmatprep.subr.mxu0 0.0
    %3065 = vmatpush1.msra.mxu0 0.0
    %3066 = vmatprep.subr.mxu0 0.0
    %3067 = vmatpush1.msra.mxu0 0.0
    %3068 = vmatprep.subr.mxu0 0.0
    %3069 = vmatpush1.msra.mxu0 0.0
    %3070 = vmatprep.subr.mxu0 0.0
    %3071 = vmatpush1.msra.mxu0 0.0
    %3072 = vmatprep.subr.mxu0 0.0
    %3073 = vmatpush1.msra.mxu0 0.0
    %3074 = vmatprep.subr.mxu0 0.0
    %3075 = vmatpush1.msra.mxu0 0.0
    %3076 = vmatprep.subr.mxu0 0.0
    %3077 = vmatpush1.msra.mxu0 0.0
    %3078 = vmatprep.subr.mxu0 0.0
    %3079 = vmatpush1.msra.mxu0 0.0
    %3080 = vmatprep.subr.mxu0 0.0
    %3081 = vmatpush1.msra.mxu0 0.0
    %3082 = vmatprep.subr.mxu0 0.0
    %3083 = vmatpush1.msra.mxu0 0.0
    %3084 = vmatprep.subr.mxu0 0.0
    %3085 = vmatpush1.msra.mxu0 0.0
    %3086 = vmatprep.subr.mxu0 0.0
    %3087 = vmatpush1.msra.mxu0 0.0
    %3088 = vmatprep.mubr.f32.mxu0 0.0
    %3089 = vmatmul.mubr.f32.gmra.mrb[0].mxu0 %v3019
    %v3090 = vpop.f32.mrb[0].mxu0
    %v3091 = vadd.f32 0.0, %v3090
    %v3092 = vpop.f32.mrb[0].mxu0
    %3093 = vmatprep.mubr.f32.mxu0 0.0
    %3094 = vmatmul.mubr.f32.gmra.mrb[0].mxu0 %v3022
    %v3095 = vpop.f32.mrb[0].mxu0
    %v3096 = vadd.f32 0.0, %v3095
    %v3097 = vpop.f32.mrb[0].mxu0
    %3098 = vdwg.mxu0
    %v3099 = vld [vmem:[%s1 + $0x318] sm:$0xff]
    %v3100 = vld [vmem:[%s1 + $0x320] sm:$0xff]
    %3101 = vrot.lane.b32.xlu0 %v2606, 112
    %v3102 = vpop.permute.xlu0 %3101
    %3103 = vrot.lane.b32.xlu0 %v2611, 112
    %v3104 = vpop.permute.xlu0 %3103
    %3105 = vrot.lane.b32.xlu0 %v2691, 112
    %v3106 = vpop.permute.xlu0 %3105
    %3107 = vrot.lane.b32.xlu0 %v2696, 112
    %v3108 = vpop.permute.xlu0 %3107
    %v3109 = vsel %vm245, %v3102, 0
    %v3111 = vsel %vm245, %v3104, 0
    %v3113 = vsel %vm245, %v3106, 0
    %v3115 = vsel %vm245, %v3108, 0
    %3117 = vmatprep.subr.mxu0 0.0
    %3118 = vmatpush1.xpose.msra.mxu0 %v3113
    %3119 = vmatprep.subr.mxu0 0.0
    %3120 = vmatpush1.xpose.msra.mxu0 %v3115
    %3121 = vmatprep.subr.mxu0 0.0
    %3122 = vmatpush1.xpose.msra.mxu0 0.0
    %3123 = vmatprep.subr.mxu0 0.0
    %3124 = vmatpush1.xpose.msra.mxu0 0.0
    %3125 = vmatprep.subr.mxu0 0.0
    %3126 = vmatpush1.xpose.msra.mxu0 0.0
    %3127 = vmatprep.subr.mxu0 0.0
    %3128 = vmatpush1.xpose.msra.mxu0 0.0
    %3129 = vmatprep.subr.mxu0 0.0
    %3130 = vmatpush1.xpose.msra.mxu0 0.0
    %3131 = vmatprep.subr.mxu0 0.0
    %3132 = vmatpush1.xpose.msra.mxu0 0.0
    %3133 = vmatprep.subr.mxu0 0.0
    %3134 = vmatpush1.xpose.msra.mxu0 0.0
    %3135 = vmatprep.subr.mxu0 0.0
    %3136 = vmatpush1.xpose.msra.mxu0 0.0
    %3137 = vmatprep.subr.mxu0 0.0
    %3138 = vmatpush1.xpose.msra.mxu0 0.0
    %3139 = vmatprep.subr.mxu0 0.0
    %3140 = vmatpush1.xpose.msra.mxu0 0.0
    %3141 = vmatprep.subr.mxu0 0.0
    %3142 = vmatpush1.xpose.msra.mxu0 0.0
    %3143 = vmatprep.subr.mxu0 0.0
    %3144 = vmatpush1.xpose.msra.mxu0 0.0
    %3145 = vmatprep.subr.mxu0 0.0
    %3146 = vmatpush1.xpose.msra.mxu0 0.0
    %3147 = vmatprep.subr.mxu0 0.0
    %3148 = vmatpush1.xpose.msra.mxu0 0.0
    %3149 = vmatprep.subr.mxu0 0.0
    %3150 = vmatpush1.xpose.msra.mxu0 0.0
    %3151 = vmatprep.subr.mxu0 0.0
    %3152 = vmatpush1.xpose.msra.mxu0 0.0
    %3153 = vmatprep.subr.mxu0 0.0
    %3154 = vmatpush1.xpose.msra.mxu0 0.0
    %3155 = vmatprep.subr.mxu0 0.0
    %3156 = vmatpush1.xpose.msra.mxu0 0.0
    %3157 = vmatprep.subr.mxu0 0.0
    %3158 = vmatpush1.xpose.msra.mxu0 0.0
    %3159 = vmatprep.subr.mxu0 0.0
    %3160 = vmatpush1.xpose.msra.mxu0 0.0
    %3161 = vmatprep.subr.mxu0 0.0
    %3162 = vmatpush1.xpose.msra.mxu0 0.0
    %3163 = vmatprep.subr.mxu0 0.0
    %3164 = vmatpush1.xpose.msra.mxu0 0.0
    %3165 = vmatprep.subr.mxu0 0.0
    %3166 = vmatpush1.xpose.msra.mxu0 0.0
    %3167 = vmatprep.subr.mxu0 0.0
    %3168 = vmatpush1.xpose.msra.mxu0 0.0
    %3169 = vmatprep.subr.mxu0 0.0
    %3170 = vmatpush1.xpose.msra.mxu0 0.0
    %3171 = vmatprep.subr.mxu0 0.0
    %3172 = vmatpush1.xpose.msra.mxu0 0.0
    %3173 = vmatprep.subr.mxu0 0.0
    %3174 = vmatpush1.xpose.msra.mxu0 0.0
    %3175 = vmatprep.subr.mxu0 0.0
    %3176 = vmatpush1.xpose.msra.mxu0 0.0
    %3177 = vmatprep.subr.mxu0 0.0
    %3178 = vmatpush1.xpose.msra.mxu0 0.0
    %3179 = vmatprep.subr.mxu0 0.0
    %3180 = vmatpush1.xpose.msra.mxu0 0.0
    %3181 = vmatprep.mubr.f32.mxu0 0.0
    %3182 = vmatmul.mubr.f32.gmra.mrb[0].mxu0 %v3109
    %v3183 = vpop.f32.mrb[0].mxu0
    %v3184 = vadd.f32 %v3099, %v3183
    %v3185 = vpop.f32.mrb[0].mxu0
    %3186 = vmatprep.mubr.f32.mxu0 0.0
    %3187 = vmatmul.mubr.f32.gmra.mrb[0].mxu0 %v3111
    %v3188 = vpop.f32.mrb[0].mxu0
    %v3189 = vadd.f32 %v3100, %v3188
    %v3190 = vpop.f32.mrb[0].mxu0
    %3191 = vdwg.mxu0
    %v3192 = vsel %vm329, %v3184, -inf
    %3193 = vmax.xlane.f32.xlu0 %v3192
    %v3194 = vpop.xlane.xlu0 %3193
    %v3195 = vsel %vm329, %v3189, -inf
    %3196 = vmax.xlane.f32.xlu0 %v3195
    %v3197 = vpop.xlane.xlu0 %3196
    %v3198 = vsub.f32 %v3184, %v3194
    %v3199 = vsub.f32 %v3189, %v3197
    %v3200 = vmul.f32 %v3198, 1.442695
    %v3201 = vpow.pop %v3200
    %v3202 = vmul.f32 %v3199, 1.442695
    %v3203 = vpow.pop %v3202
    %v3204 = vsel %vm329, %v3201, 0.0
    %3205 = vadd.xlane.f32.xlu0 %v3204
    %v3206 = vpop.xlane.xlu0 %3205
    %v3207 = vsel %vm329, %v3203, 0.0
    %3208 = vadd.xlane.f32.xlu0 %v3207
    %v3209 = vpop.xlane.xlu0 %3208
    %v3210 = vrcp.pop %v3206
    %v3211 = vrcp.pop %v3209
    %v3212 = vmul.f32 %v3201, %v3210
    %v3213 = vmul.f32 %v3203, %v3211
    %3214 = vrot.lane.b32.xlu0 %v2691, 80
    %v3215 = vpop.permute.xlu0 %3214
    %3216 = vrot.lane.b32.xlu0 %v2696, 80
    %v3217 = vpop.permute.xlu0 %3216
    %v3221 = vsel %vm329, %v3212, 0
    %v3224 = vsel %vm329, %v3213, 0
    %3226 = vmatprep.subr.mxu0 0.0
    %3227 = vmatpush1.msra.mxu0 %v3215
    %3228 = vmatprep.subr.mxu0 0.0
    %3229 = vmatpush1.msra.mxu0 %v3217
    %3230 = vmatprep.subr.mxu0 0.0
    %3231 = vmatpush1.msra.mxu0 0.0
    %3232 = vmatprep.subr.mxu0 0.0
    %3233 = vmatpush1.msra.mxu0 0.0
    %3234 = vmatprep.subr.mxu0 0.0
    %3235 = vmatpush1.msra.mxu0 0.0
    %3236 = vmatprep.subr.mxu0 0.0
    %3237 = vmatpush1.msra.mxu0 0.0
    %3238 = vmatprep.subr.mxu0 0.0
    %3239 = vmatpush1.msra.mxu0 0.0
    %3240 = vmatprep.subr.mxu0 0.0
    %3241 = vmatpush1.msra.mxu0 0.0
    %3242 = vmatprep.subr.mxu0 0.0
    %3243 = vmatpush1.msra.mxu0 0.0
    %3244 = vmatprep.subr.mxu0 0.0
    %3245 = vmatpush1.msra.mxu0 0.0
    %3246 = vmatprep.subr.mxu0 0.0
    %3247 = vmatpush1.msra.mxu0 0.0
    %3248 = vmatprep.subr.mxu0 0.0
    %3249 = vmatpush1.msra.mxu0 0.0
    %3250 = vmatprep.subr.mxu0 0.0
    %3251 = vmatpush1.msra.mxu0 0.0
    %3252 = vmatprep.subr.mxu0 0.0
    %3253 = vmatpush1.msra.mxu0 0.0
    %3254 = vmatprep.subr.mxu0 0.0
    %3255 = vmatpush1.msra.mxu0 0.0
    %3256 = vmatprep.subr.mxu0 0.0
    %3257 = vmatpush1.msra.mxu0 0.0
    %3258 = vmatprep.subr.mxu0 0.0
    %3259 = vmatpush1.msra.mxu0 0.0
    %3260 = vmatprep.subr.mxu0 0.0
    %3261 = vmatpush1.msra.mxu0 0.0
    %3262 = vmatprep.subr.mxu0 0.0
    %3263 = vmatpush1.msra.mxu0 0.0
    %3264 = vmatprep.subr.mxu0 0.0
    %3265 = vmatpush1.msra.mxu0 0.0
    %3266 = vmatprep.subr.mxu0 0.0
    %3267 = vmatpush1.msra.mxu0 0.0
    %3268 = vmatprep.subr.mxu0 0.0
    %3269 = vmatpush1.msra.mxu0 0.0
    %3270 = vmatprep.subr.mxu0 0.0
    %3271 = vmatpush1.msra.mxu0 0.0
    %3272 = vmatprep.subr.mxu0 0.0
    %3273 = vmatpush1.msra.mxu0 0.0
    %3274 = vmatprep.subr.mxu0 0.0
    %3275 = vmatpush1.msra.mxu0 0.0
    %3276 = vmatprep.subr.mxu0 0.0
    %3277 = vmatpush1.msra.mxu0 0.0
    %3278 = vmatprep.subr.mxu0 0.0
    %3279 = vmatpush1.msra.mxu0 0.0
    %3280 = vmatprep.subr.mxu0 0.0
    %3281 = vmatpush1.msra.mxu0 0.0
    %3282 = vmatprep.subr.mxu0 0.0
    %3283 = vmatpush1.msra.mxu0 0.0
    %3284 = vmatprep.subr.mxu0 0.0
    %3285 = vmatpush1.msra.mxu0 0.0
    %3286 = vmatprep.subr.mxu0 0.0
    %3287 = vmatpush1.msra.mxu0 0.0
    %3288 = vmatprep.subr.mxu0 0.0
    %3289 = vmatpush1.msra.mxu0 0.0
    %3290 = vmatprep.mubr.f32.mxu0 0.0
    %3291 = vmatmul.mubr.f32.gmra.mrb[0].mxu0 %v3221
    %v3292 = vpop.f32.mrb[0].mxu0
    %v3293 = vadd.f32 0.0, %v3292
    %v3294 = vpop.f32.mrb[0].mxu0
    %3295 = vmatprep.mubr.f32.mxu0 0.0
    %3296 = vmatmul.mubr.f32.gmra.mrb[0].mxu0 %v3224
    %v3297 = vpop.f32.mrb[0].mxu0
    %v3298 = vadd.f32 0.0, %v3297
    %v3299 = vpop.f32.mrb[0].mxu0
    %3300 = vdwg.mxu0
    %v3301 = vld [vmem:[%s1 + $0x328] sm:$0xff]
    %v3302 = vld [vmem:[%s1 + $0x330] sm:$0xff]
    %3303 = vrot.lane.b32.xlu0 %v2606, 104
    %v3304 = vpop.permute.xlu0 %3303
    %3305 = vrot.lane.b32.xlu0 %v2611, 104
    %v3306 = vpop.permute.xlu0 %3305
    %3307 = vrot.lane.b32.xlu0 %v2691, 104
    %v3308 = vpop.permute.xlu0 %3307
    %3309 = vrot.lane.b32.xlu0 %v2696, 104
    %v3310 = vpop.permute.xlu0 %3309
    %v3311 = vsel %vm245, %v3304, 0
    %v3313 = vsel %vm245, %v3306, 0
    %v3315 = vsel %vm245, %v3308, 0
    %v3317 = vsel %vm245, %v3310, 0
    %3319 = vmatprep.subr.mxu0 0.0
    %3320 = vmatpush1.xpose.msra.mxu0 %v3315
    %3321 = vmatprep.subr.mxu0 0.0
    %3322 = vmatpush1.xpose.msra.mxu0 %v3317
    %3323 = vmatprep.subr.mxu0 0.0
    %3324 = vmatpush1.xpose.msra.mxu0 0.0
    %3325 = vmatprep.subr.mxu0 0.0
    %3326 = vmatpush1.xpose.msra.mxu0 0.0
    %3327 = vmatprep.subr.mxu0 0.0
    %3328 = vmatpush1.xpose.msra.mxu0 0.0
    %3329 = vmatprep.subr.mxu0 0.0
    %3330 = vmatpush1.xpose.msra.mxu0 0.0
    %3331 = vmatprep.subr.mxu0 0.0
    %3332 = vmatpush1.xpose.msra.mxu0 0.0
    %3333 = vmatprep.subr.mxu0 0.0
    %3334 = vmatpush1.xpose.msra.mxu0 0.0
    %3335 = vmatprep.subr.mxu0 0.0
    %3336 = vmatpush1.xpose.msra.mxu0 0.0
    %3337 = vmatprep.subr.mxu0 0.0
    %3338 = vmatpush1.xpose.msra.mxu0 0.0
    %3339 = vmatprep.subr.mxu0 0.0
    %3340 = vmatpush1.xpose.msra.mxu0 0.0
    %3341 = vmatprep.subr.mxu0 0.0
    %3342 = vmatpush1.xpose.msra.mxu0 0.0
    %3343 = vmatprep.subr.mxu0 0.0
    %3344 = vmatpush1.xpose.msra.mxu0 0.0
    %3345 = vmatprep.subr.mxu0 0.0
    %3346 = vmatpush1.xpose.msra.mxu0 0.0
    %3347 = vmatprep.subr.mxu0 0.0
    %3348 = vmatpush1.xpose.msra.mxu0 0.0
    %3349 = vmatprep.subr.mxu0 0.0
    %3350 = vmatpush1.xpose.msra.mxu0 0.0
    %3351 = vmatprep.subr.mxu0 0.0
    %3352 = vmatpush1.xpose.msra.mxu0 0.0
    %3353 = vmatprep.subr.mxu0 0.0
    %3354 = vmatpush1.xpose.msra.mxu0 0.0
    %3355 = vmatprep.subr.mxu0 0.0
    %3356 = vmatpush1.xpose.msra.mxu0 0.0
    %3357 = vmatprep.subr.mxu0 0.0
    %3358 = vmatpush1.xpose.msra.mxu0 0.0
    %3359 = vmatprep.subr.mxu0 0.0
    %3360 = vmatpush1.xpose.msra.mxu0 0.0
    %3361 = vmatprep.subr.mxu0 0.0
    %3362 = vmatpush1.xpose.msra.mxu0 0.0
    %3363 = vmatprep.subr.mxu0 0.0
    %3364 = vmatpush1.xpose.msra.mxu0 0.0
    %3365 = vmatprep.subr.mxu0 0.0
    %3366 = vmatpush1.xpose.msra.mxu0 0.0
    %3367 = vmatprep.subr.mxu0 0.0
    %3368 = vmatpush1.xpose.msra.mxu0 0.0
    %3369 = vmatprep.subr.mxu0 0.0
    %3370 = vmatpush1.xpose.msra.mxu0 0.0
    %3371 = vmatprep.subr.mxu0 0.0
    %3372 = vmatpush1.xpose.msra.mxu0 0.0
    %3373 = vmatprep.subr.mxu0 0.0
    %3374 = vmatpush1.xpose.msra.mxu0 0.0
    %3375 = vmatprep.subr.mxu0 0.0
    %3376 = vmatpush1.xpose.msra.mxu0 0.0
    %3377 = vmatprep.subr.mxu0 0.0
    %3378 = vmatpush1.xpose.msra.mxu0 0.0
    %3379 = vmatprep.subr.mxu0 0.0
    %3380 = vmatpush1.xpose.msra.mxu0 0.0
    %3381 = vmatprep.subr.mxu0 0.0
    %3382 = vmatpush1.xpose.msra.mxu0 0.0
    %3383 = vmatprep.mubr.f32.mxu0 0.0
    %3384 = vmatmul.mubr.f32.gmra.mrb[0].mxu0 %v3311
    %v3385 = vpop.f32.mrb[0].mxu0
    %v3386 = vadd.f32 %v3301, %v3385
    %v3387 = vpop.f32.mrb[0].mxu0
    %3388 = vmatprep.mubr.f32.mxu0 0.0
    %3389 = vmatmul.mubr.f32.gmra.mrb[0].mxu0 %v3313
    %v3390 = vpop.f32.mrb[0].mxu0
    %v3391 = vadd.f32 %v3302, %v3390
    %v3392 = vpop.f32.mrb[0].mxu0
    %3393 = vdwg.mxu0
    %v3394 = vsel %vm329, %v3386, -inf
    %3395 = vmax.xlane.f32.xlu0 %v3394
    %v3396 = vpop.xlane.xlu0 %3395
    %v3397 = vsel %vm329, %v3391, -inf
    %3398 = vmax.xlane.f32.xlu0 %v3397
    %v3399 = vpop.xlane.xlu0 %3398
    %v3400 = vsub.f32 %v3386, %v3396
    %v3401 = vsub.f32 %v3391, %v3399
    %v3402 = vmul.f32 %v3400, 1.442695
    %v3403 = vpow.pop %v3402
    %v3404 = vmul.f32 %v3401, 1.442695
    %v3405 = vpow.pop %v3404
    %v3406 = vsel %vm329, %v3403, 0.0
    %3407 = vadd.xlane.f32.xlu0 %v3406
    %v3408 = vpop.xlane.xlu0 %3407
    %v3409 = vsel %vm329, %v3405, 0.0
    %3410 = vadd.xlane.f32.xlu0 %v3409
    %v3411 = vpop.xlane.xlu0 %3410
    %v3412 = vrcp.pop %v3408
    %v3413 = vrcp.pop %v3411
    %v3414 = vmul.f32 %v3403, %v3412
    %v3415 = vmul.f32 %v3405, %v3413
    %3416 = vrot.lane.b32.xlu0 %v2691, 72
    %v3417 = vpop.permute.xlu0 %3416
    %3418 = vrot.lane.b32.xlu0 %v2696, 72
    %v3419 = vpop.permute.xlu0 %3418
    %v3423 = vsel %vm329, %v3414, 0
    %v3426 = vsel %vm329, %v3415, 0
    %3428 = vmatprep.subr.mxu0 0.0
    %3429 = vmatpush1.msra.mxu0 %v3417
    %3430 = vmatprep.subr.mxu0 0.0
    %3431 = vmatpush1.msra.mxu0 %v3419
    %3432 = vmatprep.subr.mxu0 0.0
    %3433 = vmatpush1.msra.mxu0 0.0
    %3434 = vmatprep.subr.mxu0 0.0
    %3435 = vmatpush1.msra.mxu0 0.0
    %3436 = vmatprep.subr.mxu0 0.0
    %3437 = vmatpush1.msra.mxu0 0.0
    %3438 = vmatprep.subr.mxu0 0.0
    %3439 = vmatpush1.msra.mxu0 0.0
    %3440 = vmatprep.subr.mxu0 0.0
    %3441 = vmatpush1.msra.mxu0 0.0
    %3442 = vmatprep.subr.mxu0 0.0
    %3443 = vmatpush1.msra.mxu0 0.0
    %3444 = vmatprep.subr.mxu0 0.0
    %3445 = vmatpush1.msra.mxu0 0.0
    %3446 = vmatprep.subr.mxu0 0.0
    %3447 = vmatpush1.msra.mxu0 0.0
    %3448 = vmatprep.subr.mxu0 0.0
    %3449 = vmatpush1.msra.mxu0 0.0
    %3450 = vmatprep.subr.mxu0 0.0
    %3451 = vmatpush1.msra.mxu0 0.0
    %3452 = vmatprep.subr.mxu0 0.0
    %3453 = vmatpush1.msra.mxu0 0.0
    %3454 = vmatprep.subr.mxu0 0.0
    %3455 = vmatpush1.msra.mxu0 0.0
    %3456 = vmatprep.subr.mxu0 0.0
    %3457 = vmatpush1.msra.mxu0 0.0
    %3458 = vmatprep.subr.mxu0 0.0
    %3459 = vmatpush1.msra.mxu0 0.0
    %3460 = vmatprep.subr.mxu0 0.0
    %3461 = vmatpush1.msra.mxu0 0.0
    %3462 = vmatprep.subr.mxu0 0.0
    %3463 = vmatpush1.msra.mxu0 0.0
    %3464 = vmatprep.subr.mxu0 0.0
    %3465 = vmatpush1.msra.mxu0 0.0
    %3466 = vmatprep.subr.mxu0 0.0
    %3467 = vmatpush1.msra.mxu0 0.0
    %3468 = vmatprep.subr.mxu0 0.0
    %3469 = vmatpush1.msra.mxu0 0.0
    %3470 = vmatprep.subr.mxu0 0.0
    %3471 = vmatpush1.msra.mxu0 0.0
    %3472 = vmatprep.subr.mxu0 0.0
    %3473 = vmatpush1.msra.mxu0 0.0
    %3474 = vmatprep.subr.mxu0 0.0
    %3475 = vmatpush1.msra.mxu0 0.0
    %3476 = vmatprep.subr.mxu0 0.0
    %3477 = vmatpush1.msra.mxu0 0.0
    %3478 = vmatprep.subr.mxu0 0.0
    %3479 = vmatpush1.msra.mxu0 0.0
    %3480 = vmatprep.subr.mxu0 0.0
    %3481 = vmatpush1.msra.mxu0 0.0
    %3482 = vmatprep.subr.mxu0 0.0
    %3483 = vmatpush1.msra.mxu0 0.0
    %3484 = vmatprep.subr.mxu0 0.0
    %3485 = vmatpush1.msra.mxu0 0.0
    %3486 = vmatprep.subr.mxu0 0.0
    %3487 = vmatpush1.msra.mxu0 0.0
    %3488 = vmatprep.subr.mxu0 0.0
    %3489 = vmatpush1.msra.mxu0 0.0
    %3490 = vmatprep.subr.mxu0 0.0
    %3491 = vmatpush1.msra.mxu0 0.0
    %3492 = vmatprep.mubr.f32.mxu0 0.0
    %3493 = vmatmul.mubr.f32.gmra.mrb[0].mxu0 %v3423
    %v3494 = vpop.f32.mrb[0].mxu0
    %v3495 = vadd.f32 0.0, %v3494
    %v3496 = vpop.f32.mrb[0].mxu0
    %3497 = vmatprep.mubr.f32.mxu0 0.0
    %3498 = vmatmul.mubr.f32.gmra.mrb[0].mxu0 %v3426
    %v3499 = vpop.f32.mrb[0].mxu0
    %v3500 = vadd.f32 0.0, %v3499
    %v3501 = vpop.f32.mrb[0].mxu0
    %3502 = vdwg.mxu0
    %3505 = vrot.lane.b32.xlu0 %v3091, 8
    %v3506 = vpop.permute.xlu0 %3505
    %3507 = vrot.lane.b32.xlu0 %v3096, 8
    %v3508 = vpop.permute.xlu0 %3507
    %3513 = vrot.lane.b32.xlu0 %v3293, 16
    %v3514 = vpop.permute.xlu0 %3513
    %3515 = vrot.lane.b32.xlu0 %v3298, 16
    %v3516 = vpop.permute.xlu0 %3515
    %3521 = vrot.lane.b32.xlu0 %v3495, 24
    %v3522 = vpop.permute.xlu0 %3521
    %3523 = vrot.lane.b32.xlu0 %v3500, 24
    %v3524 = vpop.permute.xlu0 %3523
    %v3527 = vsel %vm245, %v2889, %v3506
    %v3528 = vsel %vm245, %v2894, %v3508
    %v3529 = vsel %vm329, %v3527, %v3514
    %v3530 = vsel %vm329, %v3528, %v3516
    %v3531 = vsel %vm1073, %v3529, %v3522
    %v3532 = vsel %vm1073, %v3530, %v3524
    %v3533 = vld [vmem:[%s1 + $0x1f8] sm:$0xff]
    %v3534 = vld [vmem:[%s1 + $0x200] sm:$0xff]
    %v3535 = vld [vmem:[%s1 + $0x208] sm:$0xff]
    %v3536 = vld [vmem:[%s1 + $0x210] sm:$0xff]
    %v3538 = vsel %vm129, %v3531, 0
    %v3541 = vsel %vm129, %v3532, 0
    %3543 = vmatprep.subr.mxu0 0.0
    %3544 = vmatpush1.msra.mxu0 %v3533
    %3545 = vmatprep.subr.mxu0 0.0
    %3546 = vmatpush1.msra.mxu0 %v3534
    %3547 = vmatprep.subr.mxu0 0.0
    %3548 = vmatpush1.msra.mxu0 %v3535
    %3549 = vmatprep.subr.mxu0 0.0
    %3550 = vmatpush1.msra.mxu0 %v3536
    %3551 = vmatprep.subr.mxu0 0.0
    %3552 = vmatpush1.msra.mxu0 0.0
    %3553 = vmatprep.subr.mxu0 0.0
    %3554 = vmatpush1.msra.mxu0 0.0
    %3555 = vmatprep.subr.mxu0 0.0
    %3556 = vmatpush1.msra.mxu0 0.0
    %3557 = vmatprep.subr.mxu0 0.0
    %3558 = vmatpush1.msra.mxu0 0.0
    %3559 = vmatprep.subr.mxu0 0.0
    %3560 = vmatpush1.msra.mxu0 0.0
    %3561 = vmatprep.subr.mxu0 0.0
    %3562 = vmatpush1.msra.mxu0 0.0
    %3563 = vmatprep.subr.mxu0 0.0
    %3564 = vmatpush1.msra.mxu0 0.0
    %3565 = vmatprep.subr.mxu0 0.0
    %3566 = vmatpush1.msra.mxu0 0.0
    %3567 = vmatprep.subr.mxu0 0.0
    %3568 = vmatpush1.msra.mxu0 0.0
    %3569 = vmatprep.subr.mxu0 0.0
    %3570 = vmatpush1.msra.mxu0 0.0
    %3571 = vmatprep.subr.mxu0 0.0
    %3572 = vmatpush1.msra.mxu0 0.0
    %3573 = vmatprep.subr.mxu0 0.0
    %3574 = vmatpush1.msra.mxu0 0.0
    %3575 = vmatprep.subr.mxu0 0.0
    %3576 = vmatpush1.msra.mxu0 0.0
    %3577 = vmatprep.subr.mxu0 0.0
    %3578 = vmatpush1.msra.mxu0 0.0
    %3579 = vmatprep.subr.mxu0 0.0
    %3580 = vmatpush1.msra.mxu0 0.0
    %3581 = vmatprep.subr.mxu0 0.0
    %3582 = vmatpush1.msra.mxu0 0.0
    %3583 = vmatprep.subr.mxu0 0.0
    %3584 = vmatpush1.msra.mxu0 0.0
    %3585 = vmatprep.subr.mxu0 0.0
    %3586 = vmatpush1.msra.mxu0 0.0
    %3587 = vmatprep.subr.mxu0 0.0
    %3588 = vmatpush1.msra.mxu0 0.0
    %3589 = vmatprep.subr.mxu0 0.0
    %3590 = vmatpush1.msra.mxu0 0.0
    %3591 = vmatprep.subr.mxu0 0.0
    %3592 = vmatpush1.msra.mxu0 0.0
    %3593 = vmatprep.subr.mxu0 0.0
    %3594 = vmatpush1.msra.mxu0 0.0
    %3595 = vmatprep.subr.mxu0 0.0
    %3596 = vmatpush1.msra.mxu0 0.0
    %3597 = vmatprep.subr.mxu0 0.0
    %3598 = vmatpush1.msra.mxu0 0.0
    %3599 = vmatprep.subr.mxu0 0.0
    %3600 = vmatpush1.msra.mxu0 0.0
    %3601 = vmatprep.subr.mxu0 0.0
    %3602 = vmatpush1.msra.mxu0 0.0
    %3603 = vmatprep.subr.mxu0 0.0
    %3604 = vmatpush1.msra.mxu0 0.0
    %3605 = vmatprep.subr.mxu0 0.0
    %3606 = vmatpush1.msra.mxu0 0.0
    %3607 = vmatprep.mubr.f32.mxu0 0.0
    %3608 = vmatmul.mubr.f32.gmra.mrb[0].mxu0 %v3538
    %v3609 = vpop.f32.mrb[0].mxu0
    %v3610 = vadd.f32 0.0, %v3609
    %v3611 = vpop.f32.mrb[0].mxu0
    %3612 = vmatprep.mubr.f32.mxu0 0.0
    %3613 = vmatmul.mubr.f32.gmra.mrb[0].mxu0 %v3541
    %v3614 = vpop.f32.mrb[0].mxu0
    %v3615 = vadd.f32 0.0, %v3614
    %v3616 = vpop.f32.mrb[0].mxu0
    %3617 = vdwg.mxu0
    %v3618 = vadd.f32 %v2504, %v3610
    %v3619 = vadd.f32 %v2505, %v3615
    %v3620 = vmul.f32 %v3618, %v3618
    %v3621 = vmul.f32 %v3619, %v3619
    %v3622 = vsel %vm129, %v3620, 0.0
    %3623 = vadd.xlane.f32.xlu0 %v3622
    %v3624 = vpop.xlane.xlu0 %3623
    %v3625 = vsel %vm129, %v3621, 0.0
    %3626 = vadd.xlane.f32.xlu0 %v3625
    %v3627 = vpop.xlane.xlu0 %3626
    %v3628 = vmul.f32 %v3624, %v136
    %v3629 = vmul.f32 %v3627, %v136
    %v3630 = vadd.f32 %v3628, 1e-06
    %v3631 = vadd.f32 %v3629, 1e-06
    %v3632 = vrsqrt.pop %v3630
    %v3633 = vrsqrt.pop %v3631
    %v3634 = vmul.f32 %v3618, %v3632
    %v3635 = vmul.f32 %v3619, %v3633
    %v3636 = vld [vmem:[%s1 + $0x168] sm:$0x1]
    %v3637 = vlaneseq
    %v3638 = vshrl.u32 %v3637, 7
    %v3639 = vsub.s32 0, %v3638
    %v3640 = vrot.slane %v3636, %v3639
    %v3641 = vmul.f32 %v3634, %v3640
    %v3642 = vmul.f32 %v3635, %v3640
    %v3643 = vld [vmem:[%s1 + $0x218] sm:$0xff]
    %v3644 = vld [vmem:[%s1 + $0x220] sm:$0xff]
    %v3645 = vld [vmem:[%s1 + $0x228] sm:$0xff]
    %v3646 = vld [vmem:[%s1 + $0x230] sm:$0xff]
    %v3648 = vsel %vm129, %v3641, 0
    %v3651 = vsel %vm129, %v3642, 0
    %3653 = vmatprep.subr.mxu0 0.0
    %3654 = vmatpush1.msra.mxu0 %v3643
    %3655 = vmatprep.subr.mxu0 0.0
    %3656 = vmatpush1.msra.mxu0 %v3644
    %3657 = vmatprep.subr.mxu0 0.0
    %3658 = vmatpush1.msra.mxu0 %v3645
    %3659 = vmatprep.subr.mxu0 0.0
    %3660 = vmatpush1.msra.mxu0 %v3646
    %3661 = vmatprep.subr.mxu0 0.0
    %3662 = vmatpush1.msra.mxu0 0.0
    %3663 = vmatprep.subr.mxu0 0.0
    %3664 = vmatpush1.msra.mxu0 0.0
    %3665 = vmatprep.subr.mxu0 0.0
    %3666 = vmatpush1.msra.mxu0 0.0
    %3667 = vmatprep.subr.mxu0 0.0
    %3668 = vmatpush1.msra.mxu0 0.0
    %3669 = vmatprep.subr.mxu0 0.0
    %3670 = vmatpush1.msra.mxu0 0.0
    %3671 = vmatprep.subr.mxu0 0.0
    %3672 = vmatpush1.msra.mxu0 0.0
    %3673 = vmatprep.subr.mxu0 0.0
    %3674 = vmatpush1.msra.mxu0 0.0
    %3675 = vmatprep.subr.mxu0 0.0
    %3676 = vmatpush1.msra.mxu0 0.0
    %3677 = vmatprep.subr.mxu0 0.0
    %3678 = vmatpush1.msra.mxu0 0.0
    %3679 = vmatprep.subr.mxu0 0.0
    %3680 = vmatpush1.msra.mxu0 0.0
    %3681 = vmatprep.subr.mxu0 0.0
    %3682 = vmatpush1.msra.mxu0 0.0
    %3683 = vmatprep.subr.mxu0 0.0
    %3684 = vmatpush1.msra.mxu0 0.0
    %3685 = vmatprep.subr.mxu0 0.0
    %3686 = vmatpush1.msra.mxu0 0.0
    %3687 = vmatprep.subr.mxu0 0.0
    %3688 = vmatpush1.msra.mxu0 0.0
    %3689 = vmatprep.subr.mxu0 0.0
    %3690 = vmatpush1.msra.mxu0 0.0
    %3691 = vmatprep.subr.mxu0 0.0
    %3692 = vmatpush1.msra.mxu0 0.0
    %3693 = vmatprep.subr.mxu0 0.0
    %3694 = vmatpush1.msra.mxu0 0.0
    %3695 = vmatprep.subr.mxu0 0.0
    %3696 = vmatpush1.msra.mxu0 0.0
    %3697 = vmatprep.subr.mxu0 0.0
    %3698 = vmatpush1.msra.mxu0 0.0
    %3699 = vmatprep.subr.mxu0 0.0
    %3700 = vmatpush1.msra.mxu0 0.0
    %3701 = vmatprep.subr.mxu0 0.0
    %3702 = vmatpush1.msra.mxu0 0.0
    %3703 = vmatprep.subr.mxu0 0.0
    %3704 = vmatpush1.msra.mxu0 0.0
    %3705 = vmatprep.subr.mxu0 0.0
    %3706 = vmatpush1.msra.mxu0 0.0
    %3707 = vmatprep.subr.mxu0 0.0
    %3708 = vmatpush1.msra.mxu0 0.0
    %3709 = vmatprep.subr.mxu0 0.0
    %3710 = vmatpush1.msra.mxu0 0.0
    %3711 = vmatprep.subr.mxu0 0.0
    %3712 = vmatpush1.msra.mxu0 0.0
    %3713 = vmatprep.subr.mxu0 0.0
    %3714 = vmatpush1.msra.mxu0 0.0
    %3715 = vmatprep.subr.mxu0 0.0
    %3716 = vmatpush1.msra.mxu0 0.0
    %3717 = vmatprep.mubr.f32.mxu0 0.0
    %3718 = vmatmul.mubr.f32.gmra.mrb[0].mxu0 %v3648
    %v3719 = vpop.f32.mrb[0].mxu0
    %v3720 = vadd.f32 0.0, %v3719
    %v3721 = vpop.f32.mrb[0].mxu0
    %3722 = vmatprep.mubr.f32.mxu0 0.0
    %3723 = vmatmul.mubr.f32.gmra.mrb[0].mxu0 %v3651
    %v3724 = vpop.f32.mrb[0].mxu0
    %v3725 = vadd.f32 0.0, %v3724
    %v3726 = vpop.f32.mrb[0].mxu0
    %3727 = vdwg.mxu0
    %v3728 = vmax.f32 %v3720, 0.0
    %v3729 = vmax.f32 %v3725, 0.0
    %v3730 = vld [vmem:[%s1 + $0x238] sm:$0xff]
    %v3731 = vld [vmem:[%s1 + $0x240] sm:$0xff]
    %v3732 = vld [vmem:[%s1 + $0x248] sm:$0xff]
    %v3733 = vld [vmem:[%s1 + $0x250] sm:$0xff]
    %v3734 = vld [vmem:[%s1 + $0x258] sm:$0xff]
    %v3735 = vld [vmem:[%s1 + $0x260] sm:$0xff]
    %v3736 = vld [vmem:[%s1 + $0x268] sm:$0xff]
    %v3737 = vld [vmem:[%s1 + $0x270] sm:$0xff]
    %v3739 = vsel %vm1281, %v3728, 0
    %v3742 = vsel %vm1281, %v3729, 0
    %3744 = vmatprep.subr.mxu0 0.0
    %3745 = vmatpush1.msra.mxu0 %v3730
    %3746 = vmatprep.subr.mxu0 0.0
    %3747 = vmatpush1.msra.mxu0 %v3731
    %3748 = vmatprep.subr.mxu0 0.0
    %3749 = vmatpush1.msra.mxu0 %v3732
    %3750 = vmatprep.subr.mxu0 0.0
    %3751 = vmatpush1.msra.mxu0 %v3733
    %3752 = vmatprep.subr.mxu0 0.0
    %3753 = vmatpush1.msra.mxu0 %v3734
    %3754 = vmatprep.subr.mxu0 0.0
    %3755 = vmatpush1.msra.mxu0 %v3735
    %3756 = vmatprep.subr.mxu0 0.0
    %3757 = vmatpush1.msra.mxu0 %v3736
    %3758 = vmatprep.subr.mxu0 0.0
    %3759 = vmatpush1.msra.mxu0 %v3737
    %3760 = vmatprep.subr.mxu0 0.0
    %3761 = vmatpush1.msra.mxu0 0.0
    %3762 = vmatprep.subr.mxu0 0.0
    %3763 = vmatpush1.msra.mxu0 0.0
    %3764 = vmatprep.subr.mxu0 0.0
    %3765 = vmatpush1.msra.mxu0 0.0
    %3766 = vmatprep.subr.mxu0 0.0
    %3767 = vmatpush1.msra.mxu0 0.0
    %3768 = vmatprep.subr.mxu0 0.0
    %3769 = vmatpush1.msra.mxu0 0.0
    %3770 = vmatprep.subr.mxu0 0.0
    %3771 = vmatpush1.msra.mxu0 0.0
    %3772 = vmatprep.subr.mxu0 0.0
    %3773 = vmatpush1.msra.mxu0 0.0
    %3774 = vmatprep.subr.mxu0 0.0
    %3775 = vmatpush1.msra.mxu0 0.0
    %3776 = vmatprep.subr.mxu0 0.0
    %3777 = vmatpush1.msra.mxu0 0.0
    %3778 = vmatprep.subr.mxu0 0.0
    %3779 = vmatpush1.msra.mxu0 0.0
    %3780 = vmatprep.subr.mxu0 0.0
    %3781 = vmatpush1.msra.mxu0 0.0
    %3782 = vmatprep.subr.mxu0 0.0
    %3783 = vmatpush1.msra.mxu0 0.0
    %3784 = vmatprep.subr.mxu0 0.0
    %3785 = vmatpush1.msra.mxu0 0.0
    %3786 = vmatprep.subr.mxu0 0.0
    %3787 = vmatpush1.msra.mxu0 0.0
    %3788 = vmatprep.subr.mxu0 0.0
    %3789 = vmatpush1.msra.mxu0 0.0
    %3790 = vmatprep.subr.mxu0 0.0
    %3791 = vmatpush1.msra.mxu0 0.0
    %3792 = vmatprep.subr.mxu0 0.0
    %3793 = vmatpush1.msra.mxu0 0.0
    %3794 = vmatprep.subr.mxu0 0.0
    %3795 = vmatpush1.msra.mxu0 0.0
    %3796 = vmatprep.subr.mxu0 0.0
    %3797 = vmatpush1.msra.mxu0 0.0
    %3798 = vmatprep.subr.mxu0 0.0
    %3799 = vmatpush1.msra.mxu0 0.0
    %3800 = vmatprep.subr.mxu0 0.0
    %3801 = vmatpush1.msra.mxu0 0.0
    %3802 = vmatprep.subr.mxu0 0.0
    %3803 = vmatpush1.msra.mxu0 0.0
    %3804 = vmatprep.subr.mxu0 0.0
    %3805 = vmatpush1.msra.mxu0 0.0
    %3806 = vmatprep.subr.mxu0 0.0
    %3807 = vmatpush1.msra.mxu0 0.0
    %3808 = vmatprep.mubr.f32.mxu0 0.0
    %3809 = vmatmul.mubr.f32.gmra.mrb[0].mxu0 %v3739
    %v3810 = vpop.f32.mrb[0].mxu0
    %v3811 = vadd.f32 0.0, %v3810
    %v3812 = vpop.f32.mrb[0].mxu0
    %3813 = vmatprep.mubr.f32.mxu0 0.0
    %3814 = vmatmul.mubr.f32.gmra.mrb[0].mxu0 %v3742
    %v3815 = vpop.f32.mrb[0].mxu0
    %v3816 = vadd.f32 0.0, %v3815
    %v3817 = vpop.f32.mrb[0].mxu0
    %3818 = vdwg.mxu0
    %v3819 = vadd.f32 %v3618, %v3811
    %v3820 = vadd.f32 %v3619, %v3816
    %v3821 = vmul.f32 %v3819, %v3819
    %v3822 = vmul.f32 %v3820, %v3820
    %v3823 = vsel %vm129, %v3821, 0.0
    %3824 = vadd.xlane.f32.xlu0 %v3823
    %v3825 = vpop.xlane.xlu0 %3824
    %v3826 = vsel %vm129, %v3822, 0.0
    %3827 = vadd.xlane.f32.xlu0 %v3826
    %v3828 = vpop.xlane.xlu0 %3827
    %v3829 = vmul.f32 %v3825, %v136
    %v3830 = vmul.f32 %v3828, %v136
    %v3831 = vadd.f32 %v3829, 1e-06
    %v3832 = vadd.f32 %v3830, 1e-06
    %v3833 = vrsqrt.pop %v3831
    %v3834 = vrsqrt.pop %v3832
    %v3835 = vmul.f32 %v3819, %v3833
    %v3836 = vmul.f32 %v3820, %v3834
    %v3837 = vld [vmem:[%s1 + $0x170] sm:$0x1]
    %v3838 = vlaneseq
    %v3839 = vshrl.u32 %v3838, 7
    %v3840 = vsub.s32 0, %v3839
    %v3841 = vrot.slane %v3837, %v3840
    %v3842 = vmul.f32 %v3835, %v3841
    %v3843 = vmul.f32 %v3836, %v3841
    %v3844 = vmul.f32 %v3842, 0.17677669
    %v3845 = vmul.f32 %v3843, 0.17677669
    %v3847 = vsel %vm129, %v3844, 0
    %v3850 = vsel %vm129, %v3845, 0
    %3852 = vmatprep.subr.mxu0 0.0
    %3853 = vmatpush1.msra.mxu0 %v28
    %3854 = vmatprep.subr.mxu0 0.0
    %3855 = vmatpush1.msra.mxu0 %v29
    %3856 = vmatprep.subr.mxu0 0.0
    %3857 = vmatpush1.msra.mxu0 %v30
    %3858 = vmatprep.subr.mxu0 0.0
    %3859 = vmatpush1.msra.mxu0 %v31
    %3860 = vmatprep.subr.mxu0 0.0
    %3861 = vmatpush1.msra.mxu0 0.0
    %3862 = vmatprep.subr.mxu0 0.0
    %3863 = vmatpush1.msra.mxu0 0.0
    %3864 = vmatprep.subr.mxu0 0.0
    %3865 = vmatpush1.msra.mxu0 0.0
    %3866 = vmatprep.subr.mxu0 0.0
    %3867 = vmatpush1.msra.mxu0 0.0
    %3868 = vmatprep.subr.mxu0 0.0
    %3869 = vmatpush1.msra.mxu0 0.0
    %3870 = vmatprep.subr.mxu0 0.0
    %3871 = vmatpush1.msra.mxu0 0.0
    %3872 = vmatprep.subr.mxu0 0.0
    %3873 = vmatpush1.msra.mxu0 0.0
    %3874 = vmatprep.subr.mxu0 0.0
    %3875 = vmatpush1.msra.mxu0 0.0
    %3876 = vmatprep.subr.mxu0 0.0
    %3877 = vmatpush1.msra.mxu0 0.0
    %3878 = vmatprep.subr.mxu0 0.0
    %3879 = vmatpush1.msra.mxu0 0.0
    %3880 = vmatprep.subr.mxu0 0.0
    %3881 = vmatpush1.msra.mxu0 0.0
    %3882 = vmatprep.subr.mxu0 0.0
    %3883 = vmatpush1.msra.mxu0 0.0
    %3884 = vmatprep.subr.mxu0 0.0
    %3885 = vmatpush1.msra.mxu0 0.0
    %3886 = vmatprep.subr.mxu0 0.0
    %3887 = vmatpush1.msra.mxu0 0.0
    %3888 = vmatprep.subr.mxu0 0.0
    %3889 = vmatpush1.msra.mxu0 0.0
    %3890 = vmatprep.subr.mxu0 0.0
    %3891 = vmatpush1.msra.mxu0 0.0
    %3892 = vmatprep.subr.mxu0 0.0
    %3893 = vmatpush1.msra.mxu0 0.0
    %3894 = vmatprep.subr.mxu0 0.0
    %3895 = vmatpush1.msra.mxu0 0.0
    %3896 = vmatprep.subr.mxu0 0.0
    %3897 = vmatpush1.msra.mxu0 0.0
    %3898 = vmatprep.subr.mxu0 0.0
    %3899 = vmatpush1.msra.mxu0 0.0
    %3900 = vmatprep.subr.mxu0 0.0
    %3901 = vmatpush1.msra.mxu0 0.0
    %3902 = vmatprep.subr.mxu0 0.0
    %3903 = vmatpush1.msra.mxu0 0.0
    %3904 = vmatprep.subr.mxu0 0.0
    %3905 = vmatpush1.msra.mxu0 0.0
    %3906 = vmatprep.subr.mxu0 0.0
    %3907 = vmatpush1.msra.mxu0 0.0
    %3908 = vmatprep.subr.mxu0 0.0
    %3909 = vmatpush1.msra.mxu0 0.0
    %3910 = vmatprep.subr.mxu0 0.0
    %3911 = vmatpush1.msra.mxu0 0.0
    %3912 = vmatprep.subr.mxu0 0.0
    %3913 = vmatpush1.msra.mxu0 0.0
    %3914 = vmatprep.subr.mxu0 0.0
    %3915 = vmatpush1.msra.mxu0 0.0
    %3916 = vmatprep.mubr.f32.mxu0 0.0
    %3917 = vmatmul.mubr.f32.gmra.mrb[0].mxu0 %v3847
    %v3918 = vpop.f32.mrb[0].mxu0
    %v3919 = vadd.f32 0.0, %v3918
    %v3920 = vpop.f32.mrb[0].mxu0
    %3921 = vmatprep.mubr.f32.mxu0 0.0
    %3922 = vmatmul.mubr.f32.gmra.mrb[0].mxu0 %v3850
    %v3923 = vpop.f32.mrb[0].mxu0
    %v3924 = vadd.f32 0.0, %v3923
    %v3925 = vpop.f32.mrb[0].mxu0
    %3926 = vdwg.mxu0
    %3927 = vmax.xlane.f32.xlu0 %v3919
    %v3928 = vpop.xlane.xlu0 %3927
    %3929 = vmax.xlane.f32.xlu0 %v3924
    %v3930 = vpop.xlane.xlu0 %3929
    %v3931 = vsub.f32 %v3919, %v3928
    %v3932 = vsub.f32 %v3924, %v3930
    %v3933 = vmul.f32 %v3931, 1.442695
    %v3934 = vpow.pop %v3933
    %v3935 = vmul.f32 %v3932, 1.442695
    %v3936 = vpow.pop %v3935
    %3937 = vadd.xlane.f32.xlu0 %v3934
    %v3938 = vpop.xlane.xlu0 %3937
    %3939 = vadd.xlane.f32.xlu0 %v3936
    %v3940 = vpop.xlane.xlu0 %3939
    %v3941 = vlog2.pop %v3938
    %v3942 = vmul.f32 %v3941, 0.6931472
    %v3943 = vlog2.pop %v3940
    %v3944 = vmul.f32 %v3943, 0.6931472
    %v3945 = vadd.f32 %v3942, %v3928
    %v3946 = vadd.f32 %v3944, %v3930
    %vm3947 = vcmp.eq.s32.totalorder %v36, 4294967196
    %vm3948 = vcmp.eq.s32.totalorder %v37, 4294967196
    %v3949 = vsel %vm3947, 0, %v36
    %v3950 = vsel %vm3948, 0, %v37
    %3951 = vset.pattern.permute.xlu0 0
    %3952 = vperm.xlu0 %3951, %v3949
    %v3953 = vpop.permute.xlu0 %3952
    %3954 = vset.pattern.permute.xlu0 0
    %3955 = vperm.xlu0 %3954, %v3950
    %v3956 = vpop.permute.xlu0 %3955
    %vm3957 = vcmp.eq.s32.totalorder %v39, %v3953
    %vm3958 = vcmp.eq.s32.totalorder %v39, %v3956
    %v3959 = vsel %vm3957, %v3919, 0.0
    %v3960 = vsel %vm3958, %v3924, 0.0
    %3961 = vadd.xlane.f32.xlu0 %v3959
    %v3962 = vpop.xlane.xlu0 %3961
    %3963 = vadd.xlane.f32.xlu0 %v3960
    %v3964 = vpop.xlane.xlu0 %3963
    %v3965 = vsub.f32 %v3945, %v3962
    %v3966 = vsub.f32 %v3946, %v3964
    %vm3967 = vcmp.ne.s32.totalorder %v36, 4294967196
    %vm3968 = vcmp.ne.s32.totalorder %v37, 4294967196
    %v3969 = vsel %vm3967, 1, 0
    %v3970 = vsel %vm3968, 1, 0
    %v3971 = vcvt.s32.f32 %v3969
    %v3972 = vcvt.s32.f32 %v3970
    %v3973 = vmul.f32 %v3965, %v3971
    %v3974 = vmul.f32 %v3966, %v3972
    %vm3975 = vcmask 7168
    %v3976 = vsel %vm3975, %v3973, 0.0
    %v3977 = vsel %vm3975, %v3974, 0.0
    %v3978 = vadd.f32 %v3976, %v3977
    %v3979 = vrot.slane %v3978, 4
    %v3980 = vadd.f32 %v3978, %v3979
    %v3981 = vrot.slane %v3980, 2
    %v3982 = vadd.f32 %v3980, %v3981
    %v3983 = vrot.slane %v3982, 1
    %v3984 = vadd.f32 %v3982, %v3983
    %v3985 = vsel %vm3975, %v3971, 0.0
    %v3986 = vsel %vm3975, %v3972, 0.0
    %v3987 = vadd.f32 %v3985, %v3986
    %v3988 = vrot.slane %v3987, 4
    %v3989 = vadd.f32 %v3987, %v3988
    %v3990 = vrot.slane %v3989, 2
    %v3991 = vadd.f32 %v3989, %v3990
    %v3992 = vrot.slane %v3991, 1
    %v3993 = vadd.f32 %v3991, %v3992
    %v3994 = vmax.f32 %v3993, 1.0
    %v3995 = vrcp.pop %v3994
    %v3996 = vmul.f32 %v3984, %v3995
    %vm3997 = vcmask 0
    %3998 = vst.msk [vmem:[#allocation2] sm:$0x1] %vm3997, %v3996
    // Predicated region
    $region10: #{forward.1} parent=1 // pred_check
      _
    $region11: #{forward.1} parent=1 // pred_check_branch
      %4000 = sbr.rel (0) target = $region13
    $region12: #{forward.1} parent=1 // pred_region
      %s4002 = ssub.s32 16, 16
      %4003 = vsyncadd [#allocation3], %s4002
      %s4005 = sshll.u32 [#allocation2], 4
      %s4006 = int_to_ptr.vmem [resolvable:$true] %s4005
      %4008 = dma.vmem_to_hbm [thread:$0]  %s4006, 16, %s2, [#allocation3]
    $region13: #{forward.1} parent=1 // pred_fallthru
      _
    // Predicated region
    $region14: #{forward.1} parent=1 // pred_check
      _
    $region15: #{forward.1} parent=1 // pred_check_branch
      %4010 = sbr.rel (0) target = $region17
    $region16: #{forward.1} parent=1 // pred_region
      %4011 = dma.done [#allocation3], 16
    $region17: #{forward.1} parent=1 // pred_fallthru
      _
    %4012 = vsyncpa [#allocation3], 1

</llo_original>
